<compile_context>
chip_gen: v5e
topology: v5e:2x2
jax: 0.10.0
libtpu: 0.0.40
codegen_flags: <defaults>
</compile_context>

<pallas_src>
import functools

import jax
import jax.numpy as jnp
from jax import lax
from jax.experimental import pallas as pl
from jax.experimental.pallas import tpu as pltpu


def _make_divisible(v, divisor=4, min_value=None, scaling_factor=0.9):
    if min_value is None:
        min_value = divisor
    new_v = scaling_factor * v
    new_v = max(min_value, int(new_v + divisor / 2) // divisor * divisor)
    if new_v < 0.9 * v:
        new_v += divisor
    return new_v


def _round_up(v, m):
    return ((v + m - 1) // m) * m


def _relu6(x):
    return jnp.minimum(jnp.maximum(x, 0.0), 6.0)


def _bn_scale_bias(x, gamma, beta, mask, count, eps):
    """Training-mode BatchNorm folded to per-channel scale/bias (one FMA to apply).

    x: (C, L) f32 (channels on sublanes, batch*space on lanes); gamma/beta: (C, 1);
    mask: (1, L) of {0,1}, or None when x's pad lanes are known-zero; count: N*H*W.
    NOTE: one-pass E[x^2]-E[x]^2 in f32 -- fine at these shapes within 1e-3; use a two-pass
    (mean-subtracted) form if N*H*W grows to production sizes."""
    xm = x if mask is None else x * mask
    s = jnp.sum(xm, axis=1, keepdims=True)         # (C, 1)
    ss = jnp.sum(xm * x, axis=1, keepdims=True)    # (C, 1)  (xm*x == masked x^2)
    inv_n = 1.0 / count
    mean = s * inv_n
    var = ss * inv_n - mean * mean                 # biased variance (training BN)
    scale = gamma * lax.rsqrt(var + eps)           # rsqrt -> EUP (free slot)
    bias = beta - mean * scale
    return scale, bias


# ----------------------------- Pallas kernel ----------------------------- #

def _inverted_residual_kernel(
    x_ref, mask_in_ref, mask_out_ref,
    w1_ref, g1_ref, b1_ref, w2_ref, g2_ref, b2_ref, w3_ref, g3_ref, b3_ref,
    out_ref,
    *, N, H, W, Wp, Lp, Cin, Cmid, Cout, stride, t, use_residual, eps,
):
    L_total = N * Lp
    x = x_ref[...]                       # (Cin, N*Lp); pad/tail lanes are zero (wrapper)
    cnt_in = float(N * H * W)

    # ---- 1x1 expand conv (VPU broadcast-FMAs) + fused BN1 + ReLU6 ----
    # Kept off the MXU: at Cin=8/Cmid=32 the MXU is <4% utilized and forces relayouts.
    if t != 1:
        w1 = w1_ref[...]                 # (Cmid, Cin)
        h = None
        for ci in range(Cin):            # static unroll, Cin is small
            term = x[ci:ci + 1, :] * w1[:, ci:ci + 1]
            h = term if h is None else h + term
        # h's pad lanes are exactly zero (linear combo of zero-padded x): BN1 stats unmasked.
        sc1, bi1 = _bn_scale_bias(h, g1_ref[...], b1_ref[...], None, cnt_in, eps)
        # Re-zero pad/tail lanes after the affine+ReLU6: they are the depthwise conv's
        # zero padding under the lane-roll scheme below.
        h = _relu6(h * sc1 + bi1) * mask_in_ref[...]
    else:
        h = x                            # pad/tail lanes already zero

    # ---- 3x3 depthwise conv: 9 static lane rotations (XLU) + one FMA each ----
    # Each image segment ends with >= Wp+1 zero lanes and each row with 2 zero lanes, so a
    # circular roll by (kh-1)*Wp + (kw-1) reads exactly the zero-padded 3x3 neighbourhood:
    # no padded scratch slab, no zero-fill, no misaligned window slices.
    w2 = w2_ref[...]                     # (Cmid, 9): column kh*3+kw holds tap (kh, kw)
    acc = None
    for kh in range(3):
        for kw in range(3):
            s = (kh - 1) * Wp + (kw - 1)
            hs = h if s == 0 else pltpu.roll(h, (-s) % L_total, axis=1)
            term = hs * w2[:, kh * 3 + kw: kh * 3 + kw + 1]
            acc = term if acc is None else acc + term

    # ---- stride handling ----
    Ho = (H - 1) // stride + 1
    Wo = (W - 1) // stride + 1
    if stride == 1:
        d = acc
    else:
        # TODO(synk): accumulate only the strided output lattice (or subsample on write-back)
        # instead of full stride-1 compute + in-register subsample; not exercised by the
        # test config (stride == 1).
        Wq = (Wp + stride - 1) // stride
        Lq = out_ref.shape[1] // N
        sub = acc.reshape(Cmid, N, Lp)[:, :, :H * Wp].reshape(Cmid, N, H, Wp)
        sub = sub[:, :, ::stride, ::stride].reshape(Cmid, N, Ho * Wq)
        pad = jnp.zeros((Cmid, N, Lq - Ho * Wq), jnp.float32)
        d = jnp.concatenate([sub, pad], axis=2).reshape(Cmid, N * Lq)

    mask_out = mask_out_ref[...]         # (1, N*Lq); pad lanes of d carry garbage -> mask
    cnt_out = float(N * Ho * Wo)

    # ---- fused BN2 + ReLU6 ----
    sc2, bi2 = _bn_scale_bias(d, g2_ref[...], b2_ref[...], mask_out, cnt_out, eps)
    d = _relu6(d * sc2 + bi2)

    # ---- 1x1 project conv (VPU broadcast-FMAs) + fused BN3 (+ residual) ----
    w3 = w3_ref[...]                     # (Cout, Cmid)
    o = None
    for cm in range(Cmid):               # static unroll
        term = d[cm:cm + 1, :] * w3[:, cm:cm + 1]
        o = term if o is None else o + term
    sc3, bi3 = _bn_scale_bias(o, g3_ref[...], b3_ref[...], mask_out, cnt_out, eps)
    o = o * sc3 + bi3
    if use_residual:                     # stride == 1 and inplanes == outplanes
        o = o + x[:Cout, :]
    out_ref[...] = o                     # full-width, 128-aligned, unmasked store


# --------------------------------- wrapper -------------------------------- #

@functools.partial(jax.jit, static_argnames=("stride", "t", "eps"))
def adaptive_inverted_residual(x_nchw, params, *, stride, t, eps=1e-5):
    """Forward pass of AdaptiveInvertedResidual. NCHW in / NCHW out (PyTorch convention).

    Parameter layouts (PyTorch-native, squeezed):
      w1: (Cmid, Cin)   1x1 expand weight      g1, b1: (Cmid, 1) BN1 weight/bias
      w2: (Cmid, 9)     3x3 depthwise taps     g2, b2: (Cmid, 1) BN2 weight/bias
      w3: (Cout, Cmid)  1x1 project weight     g3, b3: (Cout, 1) BN3 weight/bias
    """
    w1, g1, b1, w2, g2, b2, w3, g3, b3 = params
    N, Cin, H, W = x_nchw.shape
    Cmid = w2.shape[0]
    Cout = w3.shape[0]

    Wp = W + 2                                   # image row + 2 zero pad lanes
    # Per-image segment length: multiple of 128 with >= Wp+1 trailing zero lanes so the
    # depthwise lane-rolls read zeros for the top/bottom halo and never wrap garbage into
    # valid lanes.
    Lp = _round_up(H * Wp + Wp + 1, 128)
    Ho = (H - 1) // stride + 1
    Wo = (W - 1) // stride + 1
    if stride == 1:
        Wq, Lq = Wp, Lp
    else:
        Wq = (Wp + stride - 1) // stride
        Lq = _round_up(Ho * Wq, 128)
    use_residual = (stride == 1) and (Cin == Cout)

    # NCHW -> channels-on-sublanes / (batch*space)-on-lanes slab (Cin, N*Lp).
    x_slab = jnp.pad(x_nchw.astype(jnp.float32),
                     ((0, 0), (0, 0), (0, 0), (0, 2))).reshape(N, Cin, H * Wp)
    x_slab = jnp.pad(x_slab, ((0, 0), (0, 0), (0, Lp - H * Wp)))
    x_slab = jnp.transpose(x_slab, (1, 0, 2)).reshape(Cin, N * Lp)

    lane = jnp.arange(Lp)
    m_in = ((lane < H * Wp) & (lane % Wp < W)).astype(jnp.float32)
    mask_in = jnp.tile(m_in, N).reshape(1, N * Lp)
    lane_o = jnp.arange(Lq)
    m_out = ((lane_o < Ho * Wq) & (lane_o % Wq < Wo)).astype(jnp.float32)
    mask_out = jnp.tile(m_out, N).reshape(1, N * Lq)

    kernel = functools.partial(
        _inverted_residual_kernel,
        N=N, H=H, W=W, Wp=Wp, Lp=Lp, Cin=Cin, Cmid=Cmid, Cout=Cout,
        stride=stride, t=t, use_residual=use_residual, eps=eps,
    )
    out_slab = pl.pallas_call(
        kernel,
        out_shape=jax.ShapeDtypeStruct((Cout, N * Lq), jnp.float32),
        in_specs=[pl.BlockSpec(memory_space=pltpu.MemorySpace.VMEM) for _ in range(12)],
        out_specs=pl.BlockSpec(memory_space=pltpu.MemorySpace.VMEM),
        compiler_params=pltpu.CompilerParams(vmem_limit_bytes=32 * 1024 * 1024),
    )(x_slab, mask_in, mask_out, w1, g1, b1, w2, g2, b2, w3, g3, b3)

    # (Cout, N*Lq) -> NCHW: drop per-image tail lanes and per-row pad lanes.
    out = out_slab.reshape(Cout, N, Lq)[:, :, :Ho * Wq]
    out = jnp.transpose(out, (1, 0, 2)).reshape(N, Cout, Ho, Wq)[:, :, :, :Wo]
    return out


# -------------------------- pure-JAX reference -------------------------- #

def _batchnorm_train(x, gamma, beta, eps):
    # x: (N, H, W, C); gamma/beta: (1, C). Training-mode BN (batch stats, biased variance).
    mean = jnp.mean(x, axis=(0, 1, 2), keepdims=True)
    var = jnp.mean((x - mean) ** 2, axis=(0, 1, 2), keepdims=True)
    return (x - mean) * lax.rsqrt(var + eps) * gamma + beta


def _reference_nchw(x_nchw, params, *, stride, t, eps=1e-5):
    x = jnp.transpose(x_nchw, (0, 2, 3, 1)).astype(jnp.float32)        # NHWC
    w1, g1, b1, w2, g2, b2, w3, g3, b3 = params
    Cin = x.shape[-1]
    Cmid = w2.shape[0]
    Cout = w3.shape[0]
    dn = ("NHWC", "HWIO", "NHWC")
    prec = lax.Precision.HIGHEST
    if t != 1:
        h = lax.conv_general_dilated(x, jnp.transpose(w1).reshape(1, 1, Cin, Cmid),
                                     (1, 1), "VALID", dimension_numbers=dn, precision=prec)
        h = _relu6(_batchnorm_train(h, g1.reshape(1, -1), b1.reshape(1, -1), eps))
    else:
        h = x
    d = lax.conv_general_dilated(h, jnp.transpose(w2).reshape(3, 3, 1, Cmid),
                                 (stride, stride), ((1, 1), (1, 1)), dimension_numbers=dn,
                                 feature_group_count=Cmid, precision=prec)
    d = _relu6(_batchnorm_train(d, g2.reshape(1, -1), b2.reshape(1, -1), eps))
    o = lax.conv_general_dilated(d, jnp.transpose(w3).reshape(1, 1, Cmid, Cout),
                                 (1, 1), "VALID", dimension_numbers=dn, precision=prec)
    o = _batchnorm_train(o, g3.reshape(1, -1), b3.reshape(1, -1), eps)
    if stride == 1 and Cin == Cout:
        o = o + x
    return jnp.transpose(o, (0, 3, 1, 2))


# --------------------------------- main --------------------------------- #

if __name__ == "__main__":
    # Module configuration mirroring AdaptiveInvertedResidual.__init__.
    residual_settings = {"conv1": (8, 32), "conv2": (32, 32), "conv3": (32, 8)}
    stride, t, sf = 1, 6, 0.9
    c1_in = _make_divisible(residual_settings["conv1"][0], scaling_factor=sf)   # 8
    c1_out = _make_divisible(residual_settings["conv1"][1], scaling_factor=sf)  # 32
    c2_in = _make_divisible(residual_settings["conv2"][0], scaling_factor=sf)   # 32
    c2_out = _make_divisible(residual_settings["conv2"][1], scaling_factor=sf)  # 32
    c3_in = _make_divisible(residual_settings["conv3"][0], scaling_factor=sf)   # 32
    c3_out = _make_divisible(residual_settings["conv3"][1], scaling_factor=sf)  # 8
    assert c2_in == c2_out == c1_out and c3_in == c2_out

    N, H, W = 2, 16, 16
    key = jax.random.PRNGKey(0)
    kx, k1, k2, k3 = jax.random.split(key, 4)

    # Input in PyTorch NCHW convention.
    x_nchw = jax.random.normal(kx, (N, c1_in, H, W), jnp.float32)

    # Deterministic synthetic parameters in PyTorch-native (squeezed) layouts; BN affine
    # parameters at PyTorch defaults (weight=1, bias=0); conv weights ~N(0, 0.1).
    w1 = jax.random.normal(k1, (c1_out, c1_in), jnp.float32) * 0.1      # conv1.weight[:, :, 0, 0]
    g1 = jnp.ones((c1_out, 1), jnp.float32)
    b1 = jnp.zeros((c1_out, 1), jnp.float32)
    w2 = jax.random.normal(k2, (c2_out, 9), jnp.float32) * 0.1          # conv2.weight.reshape(C, 9)
    g2 = jnp.ones((c2_out, 1), jnp.float32)
    b2 = jnp.zeros((c2_out, 1), jnp.float32)
    w3 = jax.random.normal(k3, (c3_out, c3_in), jnp.float32) * 0.1      # conv3.weight[:, :, 0, 0]
    g3 = jnp.ones((c3_out, 1), jnp.float32)
    b3 = jnp.zeros((c3_out, 1), jnp.float32)
    params = (w1, g1, b1, w2, g2, b2, w3, g3, b3)

    out = jax.block_until_ready(adaptive_inverted_residual(x_nchw, params, stride=stride, t=t))
    ref = jax.block_until_ready(_reference_nchw(x_nchw, params, stride=stride, t=t))

    Ho = (H - 1) // stride + 1
    Wo = (W - 1) // stride + 1
    assert out.shape == ref.shape == (N, c3_out, Ho, Wo)
    if not bool(jnp.allclose(out, ref, atol=1e-3, rtol=1e-3)):
        raise AssertionError(
            "Pallas kernel mismatch vs reference: max abs err = "
            f"{float(jnp.max(jnp.abs(out - ref)))}"
        )
    print("KERNEL_OK")
</pallas_src>

<mosaic_0001>
module attributes {stable_mosaic.version = 11 : i64} {
  func.func @_inverted_residual_kernel(%arg0: memref<8x768xf32, #tpu.memory_space<vmem>>, %arg1: memref<1x768xf32, #tpu.memory_space<vmem>>, %arg2: memref<1x768xf32, #tpu.memory_space<vmem>>, %arg3: memref<32x8xf32, #tpu.memory_space<vmem>>, %arg4: memref<32x1xf32, #tpu.memory_space<vmem>>, %arg5: memref<32x1xf32, #tpu.memory_space<vmem>>, %arg6: memref<32x9xf32, #tpu.memory_space<vmem>>, %arg7: memref<32x1xf32, #tpu.memory_space<vmem>>, %arg8: memref<32x1xf32, #tpu.memory_space<vmem>>, %arg9: memref<8x32xf32, #tpu.memory_space<vmem>>, %arg10: memref<8x1xf32, #tpu.memory_space<vmem>>, %arg11: memref<8x1xf32, #tpu.memory_space<vmem>>, %arg12: memref<8x768xf32, #tpu.memory_space<vmem>>) attributes {dimension_semantics = [], scalar_prefetch = 0 : i64, scratch_operands = 0 : i64, tpu.core_type = #tpu.core_type<tc>} {
    %c0 = arith.constant 0 : index
    %c0_0 = arith.constant 0 : index
    %0 = vector.load %arg0[%c0, %c0_0] : memref<8x768xf32, #tpu.memory_space<vmem>>, vector<8x768xf32>
    %c0_1 = arith.constant 0 : index
    %c0_2 = arith.constant 0 : index
    %1 = vector.load %arg3[%c0_1, %c0_2] : memref<32x8xf32, #tpu.memory_space<vmem>>, vector<32x8xf32>
    %2 = vector.extract_strided_slice %0 {offsets = [0, 0], sizes = [1, 768], strides = [1, 1]} : vector<8x768xf32> to vector<1x768xf32>
    %3 = vector.extract_strided_slice %1 {offsets = [0, 0], sizes = [32, 1], strides = [1, 1]} : vector<32x8xf32> to vector<32x1xf32>
    %4 = vector.broadcast %2 : vector<1x768xf32> to vector<32x768xf32>
    %5 = vector.broadcast %3 : vector<32x1xf32> to vector<32x768xf32>
    %6 = arith.mulf %4, %5 : vector<32x768xf32>
    %7 = vector.extract_strided_slice %0 {offsets = [1, 0], sizes = [1, 768], strides = [1, 1]} : vector<8x768xf32> to vector<1x768xf32>
    %8 = vector.extract_strided_slice %1 {offsets = [0, 1], sizes = [32, 1], strides = [1, 1]} : vector<32x8xf32> to vector<32x1xf32>
    %9 = vector.broadcast %7 : vector<1x768xf32> to vector<32x768xf32>
    %10 = vector.broadcast %8 : vector<32x1xf32> to vector<32x768xf32>
    %11 = arith.mulf %9, %10 : vector<32x768xf32>
    %12 = arith.addf %6, %11 : vector<32x768xf32>
    %13 = vector.extract_strided_slice %0 {offsets = [2, 0], sizes = [1, 768], strides = [1, 1]} : vector<8x768xf32> to vector<1x768xf32>
    %14 = vector.extract_strided_slice %1 {offsets = [0, 2], sizes = [32, 1], strides = [1, 1]} : vector<32x8xf32> to vector<32x1xf32>
    %15 = vector.broadcast %13 : vector<1x768xf32> to vector<32x768xf32>
    %16 = vector.broadcast %14 : vector<32x1xf32> to vector<32x768xf32>
    %17 = arith.mulf %15, %16 : vector<32x768xf32>
    %18 = arith.addf %12, %17 : vector<32x768xf32>
    %19 = vector.extract_strided_slice %0 {offsets = [3, 0], sizes = [1, 768], strides = [1, 1]} : vector<8x768xf32> to vector<1x768xf32>
    %20 = vector.extract_strided_slice %1 {offsets = [0, 3], sizes = [32, 1], strides = [1, 1]} : vector<32x8xf32> to vector<32x1xf32>
    %21 = vector.broadcast %19 : vector<1x768xf32> to vector<32x768xf32>
    %22 = vector.broadcast %20 : vector<32x1xf32> to vector<32x768xf32>
    %23 = arith.mulf %21, %22 : vector<32x768xf32>
    %24 = arith.addf %18, %23 : vector<32x768xf32>
    %25 = vector.extract_strided_slice %0 {offsets = [4, 0], sizes = [1, 768], strides = [1, 1]} : vector<8x768xf32> to vector<1x768xf32>
    %26 = vector.extract_strided_slice %1 {offsets = [0, 4], sizes = [32, 1], strides = [1, 1]} : vector<32x8xf32> to vector<32x1xf32>
    %27 = vector.broadcast %25 : vector<1x768xf32> to vector<32x768xf32>
    %28 = vector.broadcast %26 : vector<32x1xf32> to vector<32x768xf32>
    %29 = arith.mulf %27, %28 : vector<32x768xf32>
    %30 = arith.addf %24, %29 : vector<32x768xf32>
    %31 = vector.extract_strided_slice %0 {offsets = [5, 0], sizes = [1, 768], strides = [1, 1]} : vector<8x768xf32> to vector<1x768xf32>
    %32 = vector.extract_strided_slice %1 {offsets = [0, 5], sizes = [32, 1], strides = [1, 1]} : vector<32x8xf32> to vector<32x1xf32>
    %33 = vector.broadcast %31 : vector<1x768xf32> to vector<32x768xf32>
    %34 = vector.broadcast %32 : vector<32x1xf32> to vector<32x768xf32>
    %35 = arith.mulf %33, %34 : vector<32x768xf32>
    %36 = arith.addf %30, %35 : vector<32x768xf32>
    %37 = vector.extract_strided_slice %0 {offsets = [6, 0], sizes = [1, 768], strides = [1, 1]} : vector<8x768xf32> to vector<1x768xf32>
    %38 = vector.extract_strided_slice %1 {offsets = [0, 6], sizes = [32, 1], strides = [1, 1]} : vector<32x8xf32> to vector<32x1xf32>
    %39 = vector.broadcast %37 : vector<1x768xf32> to vector<32x768xf32>
    %40 = vector.broadcast %38 : vector<32x1xf32> to vector<32x768xf32>
    %41 = arith.mulf %39, %40 : vector<32x768xf32>
    %42 = arith.addf %36, %41 : vector<32x768xf32>
    %43 = vector.extract_strided_slice %0 {offsets = [7, 0], sizes = [1, 768], strides = [1, 1]} : vector<8x768xf32> to vector<1x768xf32>
    %44 = vector.extract_strided_slice %1 {offsets = [0, 7], sizes = [32, 1], strides = [1, 1]} : vector<32x8xf32> to vector<32x1xf32>
    %45 = vector.broadcast %43 : vector<1x768xf32> to vector<32x768xf32>
    %46 = vector.broadcast %44 : vector<32x1xf32> to vector<32x768xf32>
    %47 = arith.mulf %45, %46 : vector<32x768xf32>
    %48 = arith.addf %42, %47 : vector<32x768xf32>
    %c0_3 = arith.constant 0 : index
    %c0_4 = arith.constant 0 : index
    %49 = vector.load %arg4[%c0_3, %c0_4] : memref<32x1xf32, #tpu.memory_space<vmem>>, vector<32x1xf32>
    %c0_5 = arith.constant 0 : index
    %c0_6 = arith.constant 0 : index
    %50 = vector.load %arg5[%c0_5, %c0_6] : memref<32x1xf32, #tpu.memory_space<vmem>>, vector<32x1xf32>
    %cst = arith.constant dense<0.000000e+00> : vector<32xf32>
    %51 = vector.multi_reduction <add>, %48, %cst [1] : vector<32x768xf32> to vector<32xf32>
    %52 = vector.shape_cast %51 : vector<32xf32> to vector<32x1xf32>
    %53 = arith.mulf %48, %48 : vector<32x768xf32>
    %cst_7 = arith.constant dense<0.000000e+00> : vector<32xf32>
    %54 = vector.multi_reduction <add>, %53, %cst_7 [1] : vector<32x768xf32> to vector<32xf32>
    %55 = vector.shape_cast %54 : vector<32xf32> to vector<32x1xf32>
    %cst_8 = arith.constant 0.001953125 : f32
    %56 = vector.broadcast %cst_8 : f32 to vector<32x1xf32>
    %57 = arith.mulf %52, %56 : vector<32x1xf32>
    %cst_9 = arith.constant 0.001953125 : f32
    %58 = vector.broadcast %cst_9 : f32 to vector<32x1xf32>
    %59 = arith.mulf %55, %58 : vector<32x1xf32>
    %60 = arith.mulf %57, %57 : vector<32x1xf32>
    %61 = arith.subf %59, %60 : vector<32x1xf32>
    %cst_10 = arith.constant 9.99999974E-6 : f32
    %62 = vector.broadcast %cst_10 : f32 to vector<32x1xf32>
    %63 = arith.addf %61, %62 : vector<32x1xf32>
    %64 = math.rsqrt %63 : vector<32x1xf32>
    %65 = arith.mulf %49, %64 : vector<32x1xf32>
    %66 = arith.mulf %57, %65 : vector<32x1xf32>
    %67 = arith.subf %50, %66 : vector<32x1xf32>
    %68 = vector.broadcast %65 : vector<32x1xf32> to vector<32x768xf32>
    %69 = arith.mulf %48, %68 : vector<32x768xf32>
    %70 = vector.broadcast %67 : vector<32x1xf32> to vector<32x768xf32>
    %71 = arith.addf %69, %70 : vector<32x768xf32>
    %cst_11 = arith.constant 0.000000e+00 : f32
    %72 = vector.broadcast %cst_11 : f32 to vector<32x768xf32>
    %73 = arith.maximumf %71, %72 : vector<32x768xf32>
    %cst_12 = arith.constant 6.000000e+00 : f32
    %74 = vector.broadcast %cst_12 : f32 to vector<32x768xf32>
    %75 = arith.minimumf %73, %74 : vector<32x768xf32>
    %c0_13 = arith.constant 0 : index
    %c0_14 = arith.constant 0 : index
    %76 = vector.load %arg1[%c0_13, %c0_14] : memref<1x768xf32, #tpu.memory_space<vmem>>, vector<1x768xf32>
    %77 = vector.broadcast %76 : vector<1x768xf32> to vector<32x768xf32>
    %78 = arith.mulf %75, %77 : vector<32x768xf32>
    %c0_15 = arith.constant 0 : index
    %c0_16 = arith.constant 0 : index
    %79 = vector.load %arg6[%c0_15, %c0_16] : memref<32x9xf32, #tpu.memory_space<vmem>>, vector<32x9xf32>
    %c19_i32 = arith.constant 19 : i32
    %80 = tpu.dynamic_rotate %78 by %c19_i32 dim 1 : vector<32x768xf32>, i32 -> vector<32x768xf32>
    %81 = vector.extract_strided_slice %79 {offsets = [0, 0], sizes = [32, 1], strides = [1, 1]} : vector<32x9xf32> to vector<32x1xf32>
    %82 = vector.broadcast %81 : vector<32x1xf32> to vector<32x768xf32>
    %83 = arith.mulf %80, %82 : vector<32x768xf32>
    %c18_i32 = arith.constant 18 : i32
    %84 = tpu.dynamic_rotate %78 by %c18_i32 dim 1 : vector<32x768xf32>, i32 -> vector<32x768xf32>
    %85 = vector.extract_strided_slice %79 {offsets = [0, 1], sizes = [32, 1], strides = [1, 1]} : vector<32x9xf32> to vector<32x1xf32>
    %86 = vector.broadcast %85 : vector<32x1xf32> to vector<32x768xf32>
    %87 = arith.mulf %84, %86 : vector<32x768xf32>
    %88 = arith.addf %83, %87 : vector<32x768xf32>
    %c17_i32 = arith.constant 17 : i32
    %89 = tpu.dynamic_rotate %78 by %c17_i32 dim 1 : vector<32x768xf32>, i32 -> vector<32x768xf32>
    %90 = vector.extract_strided_slice %79 {offsets = [0, 2], sizes = [32, 1], strides = [1, 1]} : vector<32x9xf32> to vector<32x1xf32>
    %91 = vector.broadcast %90 : vector<32x1xf32> to vector<32x768xf32>
    %92 = arith.mulf %89, %91 : vector<32x768xf32>
    %93 = arith.addf %88, %92 : vector<32x768xf32>
    %c1_i32 = arith.constant 1 : i32
    %94 = tpu.dynamic_rotate %78 by %c1_i32 dim 1 : vector<32x768xf32>, i32 -> vector<32x768xf32>
    %95 = vector.extract_strided_slice %79 {offsets = [0, 3], sizes = [32, 1], strides = [1, 1]} : vector<32x9xf32> to vector<32x1xf32>
    %96 = vector.broadcast %95 : vector<32x1xf32> to vector<32x768xf32>
    %97 = arith.mulf %94, %96 : vector<32x768xf32>
    %98 = arith.addf %93, %97 : vector<32x768xf32>
    %99 = vector.extract_strided_slice %79 {offsets = [0, 4], sizes = [32, 1], strides = [1, 1]} : vector<32x9xf32> to vector<32x1xf32>
    %100 = vector.broadcast %99 : vector<32x1xf32> to vector<32x768xf32>
    %101 = arith.mulf %78, %100 : vector<32x768xf32>
    %102 = arith.addf %98, %101 : vector<32x768xf32>
    %c767_i32 = arith.constant 767 : i32
    %103 = tpu.dynamic_rotate %78 by %c767_i32 dim 1 : vector<32x768xf32>, i32 -> vector<32x768xf32>
    %104 = vector.extract_strided_slice %79 {offsets = [0, 5], sizes = [32, 1], strides = [1, 1]} : vector<32x9xf32> to vector<32x1xf32>
    %105 = vector.broadcast %104 : vector<32x1xf32> to vector<32x768xf32>
    %106 = arith.mulf %103, %105 : vector<32x768xf32>
    %107 = arith.addf %102, %106 : vector<32x768xf32>
    %c751_i32 = arith.constant 751 : i32
    %108 = tpu.dynamic_rotate %78 by %c751_i32 dim 1 : vector<32x768xf32>, i32 -> vector<32x768xf32>
    %109 = vector.extract_strided_slice %79 {offsets = [0, 6], sizes = [32, 1], strides = [1, 1]} : vector<32x9xf32> to vector<32x1xf32>
    %110 = vector.broadcast %109 : vector<32x1xf32> to vector<32x768xf32>
    %111 = arith.mulf %108, %110 : vector<32x768xf32>
    %112 = arith.addf %107, %111 : vector<32x768xf32>
    %c750_i32 = arith.constant 750 : i32
    %113 = tpu.dynamic_rotate %78 by %c750_i32 dim 1 : vector<32x768xf32>, i32 -> vector<32x768xf32>
    %114 = vector.extract_strided_slice %79 {offsets = [0, 7], sizes = [32, 1], strides = [1, 1]} : vector<32x9xf32> to vector<32x1xf32>
    %115 = vector.broadcast %114 : vector<32x1xf32> to vector<32x768xf32>
    %116 = arith.mulf %113, %115 : vector<32x768xf32>
    %117 = arith.addf %112, %116 : vector<32x768xf32>
    %c749_i32 = arith.constant 749 : i32
    %118 = tpu.dynamic_rotate %78 by %c749_i32 dim 1 : vector<32x768xf32>, i32 -> vector<32x768xf32>
    %119 = vector.extract_strided_slice %79 {offsets = [0, 8], sizes = [32, 1], strides = [1, 1]} : vector<32x9xf32> to vector<32x1xf32>
    %120 = vector.broadcast %119 : vector<32x1xf32> to vector<32x768xf32>
    %121 = arith.mulf %118, %120 : vector<32x768xf32>
    %122 = arith.addf %117, %121 : vector<32x768xf32>
    %c0_17 = arith.constant 0 : index
    %c0_18 = arith.constant 0 : index
    %123 = vector.load %arg2[%c0_17, %c0_18] : memref<1x768xf32, #tpu.memory_space<vmem>>, vector<1x768xf32>
    %c0_19 = arith.constant 0 : index
    %c0_20 = arith.constant 0 : index
    %124 = vector.load %arg7[%c0_19, %c0_20] : memref<32x1xf32, #tpu.memory_space<vmem>>, vector<32x1xf32>
    %c0_21 = arith.constant 0 : index
    %c0_22 = arith.constant 0 : index
    %125 = vector.load %arg8[%c0_21, %c0_22] : memref<32x1xf32, #tpu.memory_space<vmem>>, vector<32x1xf32>
    %126 = vector.broadcast %123 : vector<1x768xf32> to vector<32x768xf32>
    %127 = arith.mulf %122, %126 : vector<32x768xf32>
    %cst_23 = arith.constant dense<0.000000e+00> : vector<32xf32>
    %128 = vector.multi_reduction <add>, %127, %cst_23 [1] : vector<32x768xf32> to vector<32xf32>
    %129 = vector.shape_cast %128 : vector<32xf32> to vector<32x1xf32>
    %130 = arith.mulf %127, %122 : vector<32x768xf32>
    %cst_24 = arith.constant dense<0.000000e+00> : vector<32xf32>
    %131 = vector.multi_reduction <add>, %130, %cst_24 [1] : vector<32x768xf32> to vector<32xf32>
    %132 = vector.shape_cast %131 : vector<32xf32> to vector<32x1xf32>
    %cst_25 = arith.constant 0.001953125 : f32
    %133 = vector.broadcast %cst_25 : f32 to vector<32x1xf32>
    %134 = arith.mulf %129, %133 : vector<32x1xf32>
    %cst_26 = arith.constant 0.001953125 : f32
    %135 = vector.broadcast %cst_26 : f32 to vector<32x1xf32>
    %136 = arith.mulf %132, %135 : vector<32x1xf32>
    %137 = arith.mulf %134, %134 : vector<32x1xf32>
    %138 = arith.subf %136, %137 : vector<32x1xf32>
    %cst_27 = arith.constant 9.99999974E-6 : f32
    %139 = vector.broadcast %cst_27 : f32 to vector<32x1xf32>
    %140 = arith.addf %138, %139 : vector<32x1xf32>
    %141 = math.rsqrt %140 : vector<32x1xf32>
    %142 = arith.mulf %124, %141 : vector<32x1xf32>
    %143 = arith.mulf %134, %142 : vector<32x1xf32>
    %144 = arith.subf %125, %143 : vector<32x1xf32>
    %145 = vector.broadcast %142 : vector<32x1xf32> to vector<32x768xf32>
    %146 = arith.mulf %122, %145 : vector<32x768xf32>
    %147 = vector.broadcast %144 : vector<32x1xf32> to vector<32x768xf32>
    %148 = arith.addf %146, %147 : vector<32x768xf32>
    %cst_28 = arith.constant 0.000000e+00 : f32
    %149 = vector.broadcast %cst_28 : f32 to vector<32x768xf32>
    %150 = arith.maximumf %148, %149 : vector<32x768xf32>
    %cst_29 = arith.constant 6.000000e+00 : f32
    %151 = vector.broadcast %cst_29 : f32 to vector<32x768xf32>
    %152 = arith.minimumf %150, %151 : vector<32x768xf32>
    %c0_30 = arith.constant 0 : index
    %c0_31 = arith.constant 0 : index
    %153 = vector.load %arg9[%c0_30, %c0_31] : memref<8x32xf32, #tpu.memory_space<vmem>>, vector<8x32xf32>
    %154 = vector.extract_strided_slice %152 {offsets = [0, 0], sizes = [1, 768], strides = [1, 1]} : vector<32x768xf32> to vector<1x768xf32>
    %155 = vector.extract_strided_slice %153 {offsets = [0, 0], sizes = [8, 1], strides = [1, 1]} : vector<8x32xf32> to vector<8x1xf32>
    %156 = vector.broadcast %154 : vector<1x768xf32> to vector<8x768xf32>
    %157 = vector.broadcast %155 : vector<8x1xf32> to vector<8x768xf32>
    %158 = arith.mulf %156, %157 : vector<8x768xf32>
    %159 = vector.extract_strided_slice %152 {offsets = [1, 0], sizes = [1, 768], strides = [1, 1]} : vector<32x768xf32> to vector<1x768xf32>
    %160 = vector.extract_strided_slice %153 {offsets = [0, 1], sizes = [8, 1], strides = [1, 1]} : vector<8x32xf32> to vector<8x1xf32>
    %161 = vector.broadcast %159 : vector<1x768xf32> to vector<8x768xf32>
    %162 = vector.broadcast %160 : vector<8x1xf32> to vector<8x768xf32>
    %163 = arith.mulf %161, %162 : vector<8x768xf32>
    %164 = arith.addf %158, %163 : vector<8x768xf32>
    %165 = vector.extract_strided_slice %152 {offsets = [2, 0], sizes = [1, 768], strides = [1, 1]} : vector<32x768xf32> to vector<1x768xf32>
    %166 = vector.extract_strided_slice %153 {offsets = [0, 2], sizes = [8, 1], strides = [1, 1]} : vector<8x32xf32> to vector<8x1xf32>
    %167 = vector.broadcast %165 : vector<1x768xf32> to vector<8x768xf32>
    %168 = vector.broadcast %166 : vector<8x1xf32> to vector<8x768xf32>
    %169 = arith.mulf %167, %168 : vector<8x768xf32>
    %170 = arith.addf %164, %169 : vector<8x768xf32>
    %171 = vector.extract_strided_slice %152 {offsets = [3, 0], sizes = [1, 768], strides = [1, 1]} : vector<32x768xf32> to vector<1x768xf32>
    %172 = vector.extract_strided_slice %153 {offsets = [0, 3], sizes = [8, 1], strides = [1, 1]} : vector<8x32xf32> to vector<8x1xf32>
    %173 = vector.broadcast %171 : vector<1x768xf32> to vector<8x768xf32>
    %174 = vector.broadcast %172 : vector<8x1xf32> to vector<8x768xf32>
    %175 = arith.mulf %173, %174 : vector<8x768xf32>
    %176 = arith.addf %170, %175 : vector<8x768xf32>
    %177 = vector.extract_strided_slice %152 {offsets = [4, 0], sizes = [1, 768], strides = [1, 1]} : vector<32x768xf32> to vector<1x768xf32>
    %178 = vector.extract_strided_slice %153 {offsets = [0, 4], sizes = [8, 1], strides = [1, 1]} : vector<8x32xf32> to vector<8x1xf32>
    %179 = vector.broadcast %177 : vector<1x768xf32> to vector<8x768xf32>
    %180 = vector.broadcast %178 : vector<8x1xf32> to vector<8x768xf32>
    %181 = arith.mulf %179, %180 : vector<8x768xf32>
    %182 = arith.addf %176, %181 : vector<8x768xf32>
    %183 = vector.extract_strided_slice %152 {offsets = [5, 0], sizes = [1, 768], strides = [1, 1]} : vector<32x768xf32> to vector<1x768xf32>
    %184 = vector.extract_strided_slice %153 {offsets = [0, 5], sizes = [8, 1], strides = [1, 1]} : vector<8x32xf32> to vector<8x1xf32>
    %185 = vector.broadcast %183 : vector<1x768xf32> to vector<8x768xf32>
    %186 = vector.broadcast %184 : vector<8x1xf32> to vector<8x768xf32>
    %187 = arith.mulf %185, %186 : vector<8x768xf32>
    %188 = arith.addf %182, %187 : vector<8x768xf32>
    %189 = vector.extract_strided_slice %152 {offsets = [6, 0], sizes = [1, 768], strides = [1, 1]} : vector<32x768xf32> to vector<1x768xf32>
    %190 = vector.extract_strided_slice %153 {offsets = [0, 6], sizes = [8, 1], strides = [1, 1]} : vector<8x32xf32> to vector<8x1xf32>
    %191 = vector.broadcast %189 : vector<1x768xf32> to vector<8x768xf32>
    %192 = vector.broadcast %190 : vector<8x1xf32> to vector<8x768xf32>
    %193 = arith.mulf %191, %192 : vector<8x768xf32>
    %194 = arith.addf %188, %193 : vector<8x768xf32>
    %195 = vector.extract_strided_slice %152 {offsets = [7, 0], sizes = [1, 768], strides = [1, 1]} : vector<32x768xf32> to vector<1x768xf32>
    %196 = vector.extract_strided_slice %153 {offsets = [0, 7], sizes = [8, 1], strides = [1, 1]} : vector<8x32xf32> to vector<8x1xf32>
    %197 = vector.broadcast %195 : vector<1x768xf32> to vector<8x768xf32>
    %198 = vector.broadcast %196 : vector<8x1xf32> to vector<8x768xf32>
    %199 = arith.mulf %197, %198 : vector<8x768xf32>
    %200 = arith.addf %194, %199 : vector<8x768xf32>
    %201 = vector.extract_strided_slice %152 {offsets = [8, 0], sizes = [1, 768], strides = [1, 1]} : vector<32x768xf32> to vector<1x768xf32>
    %202 = vector.extract_strided_slice %153 {offsets = [0, 8], sizes = [8, 1], strides = [1, 1]} : vector<8x32xf32> to vector<8x1xf32>
    %203 = vector.broadcast %201 : vector<1x768xf32> to vector<8x768xf32>
    %204 = vector.broadcast %202 : vector<8x1xf32> to vector<8x768xf32>
    %205 = arith.mulf %203, %204 : vector<8x768xf32>
    %206 = arith.addf %200, %205 : vector<8x768xf32>
    %207 = vector.extract_strided_slice %152 {offsets = [9, 0], sizes = [1, 768], strides = [1, 1]} : vector<32x768xf32> to vector<1x768xf32>
    %208 = vector.extract_strided_slice %153 {offsets = [0, 9], sizes = [8, 1], strides = [1, 1]} : vector<8x32xf32> to vector<8x1xf32>
    %209 = vector.broadcast %207 : vector<1x768xf32> to vector<8x768xf32>
    %210 = vector.broadcast %208 : vector<8x1xf32> to vector<8x768xf32>
    %211 = arith.mulf %209, %210 : vector<8x768xf32>
    %212 = arith.addf %206, %211 : vector<8x768xf32>
    %213 = vector.extract_strided_slice %152 {offsets = [10, 0], sizes = [1, 768], strides = [1, 1]} : vector<32x768xf32> to vector<1x768xf32>
    %214 = vector.extract_strided_slice %153 {offsets = [0, 10], sizes = [8, 1], strides = [1, 1]} : vector<8x32xf32> to vector<8x1xf32>
    %215 = vector.broadcast %213 : vector<1x768xf32> to vector<8x768xf32>
    %216 = vector.broadcast %214 : vector<8x1xf32> to vector<8x768xf32>
    %217 = arith.mulf %215, %216 : vector<8x768xf32>
    %218 = arith.addf %212, %217 : vector<8x768xf32>
    %219 = vector.extract_strided_slice %152 {offsets = [11, 0], sizes = [1, 768], strides = [1, 1]} : vector<32x768xf32> to vector<1x768xf32>
    %220 = vector.extract_strided_slice %153 {offsets = [0, 11], sizes = [8, 1], strides = [1, 1]} : vector<8x32xf32> to vector<8x1xf32>
    %221 = vector.broadcast %219 : vector<1x768xf32> to vector<8x768xf32>
    %222 = vector.broadcast %220 : vector<8x1xf32> to vector<8x768xf32>
    %223 = arith.mulf %221, %222 : vector<8x768xf32>
    %224 = arith.addf %218, %223 : vector<8x768xf32>
    %225 = vector.extract_strided_slice %152 {offsets = [12, 0], sizes = [1, 768], strides = [1, 1]} : vector<32x768xf32> to vector<1x768xf32>
    %226 = vector.extract_strided_slice %153 {offsets = [0, 12], sizes = [8, 1], strides = [1, 1]} : vector<8x32xf32> to vector<8x1xf32>
    %227 = vector.broadcast %225 : vector<1x768xf32> to vector<8x768xf32>
    %228 = vector.broadcast %226 : vector<8x1xf32> to vector<8x768xf32>
    %229 = arith.mulf %227, %228 : vector<8x768xf32>
    %230 = arith.addf %224, %229 : vector<8x768xf32>
    %231 = vector.extract_strided_slice %152 {offsets = [13, 0], sizes = [1, 768], strides = [1, 1]} : vector<32x768xf32> to vector<1x768xf32>
    %232 = vector.extract_strided_slice %153 {offsets = [0, 13], sizes = [8, 1], strides = [1, 1]} : vector<8x32xf32> to vector<8x1xf32>
    %233 = vector.broadcast %231 : vector<1x768xf32> to vector<8x768xf32>
    %234 = vector.broadcast %232 : vector<8x1xf32> to vector<8x768xf32>
    %235 = arith.mulf %233, %234 : vector<8x768xf32>
    %236 = arith.addf %230, %235 : vector<8x768xf32>
    %237 = vector.extract_strided_slice %152 {offsets = [14, 0], sizes = [1, 768], strides = [1, 1]} : vector<32x768xf32> to vector<1x768xf32>
    %238 = vector.extract_strided_slice %153 {offsets = [0, 14], sizes = [8, 1], strides = [1, 1]} : vector<8x32xf32> to vector<8x1xf32>
    %239 = vector.broadcast %237 : vector<1x768xf32> to vector<8x768xf32>
    %240 = vector.broadcast %238 : vector<8x1xf32> to vector<8x768xf32>
    %241 = arith.mulf %239, %240 : vector<8x768xf32>
    %242 = arith.addf %236, %241 : vector<8x768xf32>
    %243 = vector.extract_strided_slice %152 {offsets = [15, 0], sizes = [1, 768], strides = [1, 1]} : vector<32x768xf32> to vector<1x768xf32>
    %244 = vector.extract_strided_slice %153 {offsets = [0, 15], sizes = [8, 1], strides = [1, 1]} : vector<8x32xf32> to vector<8x1xf32>
    %245 = vector.broadcast %243 : vector<1x768xf32> to vector<8x768xf32>
    %246 = vector.broadcast %244 : vector<8x1xf32> to vector<8x768xf32>
    %247 = arith.mulf %245, %246 : vector<8x768xf32>
    %248 = arith.addf %242, %247 : vector<8x768xf32>
    %249 = vector.extract_strided_slice %152 {offsets = [16, 0], sizes = [1, 768], strides = [1, 1]} : vector<32x768xf32> to vector<1x768xf32>
    %250 = vector.extract_strided_slice %153 {offsets = [0, 16], sizes = [8, 1], strides = [1, 1]} : vector<8x32xf32> to vector<8x1xf32>
    %251 = vector.broadcast %249 : vector<1x768xf32> to vector<8x768xf32>
    %252 = vector.broadcast %250 : vector<8x1xf32> to vector<8x768xf32>
    %253 = arith.mulf %251, %252 : vector<8x768xf32>
    %254 = arith.addf %248, %253 : vector<8x768xf32>
    %255 = vector.extract_strided_slice %152 {offsets = [17, 0], sizes = [1, 768], strides = [1, 1]} : vector<32x768xf32> to vector<1x768xf32>
    %256 = vector.extract_strided_slice %153 {offsets = [0, 17], sizes = [8, 1], strides = [1, 1]} : vector<8x32xf32> to vector<8x1xf32>
    %257 = vector.broadcast %255 : vector<1x768xf32> to vector<8x768xf32>
    %258 = vector.broadcast %256 : vector<8x1xf32> to vector<8x768xf32>
    %259 = arith.mulf %257, %258 : vector<8x768xf32>
    %260 = arith.addf %254, %259 : vector<8x768xf32>
    %261 = vector.extract_strided_slice %152 {offsets = [18, 0], sizes = [1, 768], strides = [1, 1]} : vector<32x768xf32> to vector<1x768xf32>
    %262 = vector.extract_strided_slice %153 {offsets = [0, 18], sizes = [8, 1], strides = [1, 1]} : vector<8x32xf32> to vector<8x1xf32>
    %263 = vector.broadcast %261 : vector<1x768xf32> to vector<8x768xf32>
    %264 = vector.broadcast %262 : vector<8x1xf32> to vector<8x768xf32>
    %265 = arith.mulf %263, %264 : vector<8x768xf32>
    %266 = arith.addf %260, %265 : vector<8x768xf32>
    %267 = vector.extract_strided_slice %152 {offsets = [19, 0], sizes = [1, 768], strides = [1, 1]} : vector<32x768xf32> to vector<1x768xf32>
    %268 = vector.extract_strided_slice %153 {offsets = [0, 19], sizes = [8, 1], strides = [1, 1]} : vector<8x32xf32> to vector<8x1xf32>
    %269 = vector.broadcast %267 : vector<1x768xf32> to vector<8x768xf32>
    %270 = vector.broadcast %268 : vector<8x1xf32> to vector<8x768xf32>
    %271 = arith.mulf %269, %270 : vector<8x768xf32>
    %272 = arith.addf %266, %271 : vector<8x768xf32>
    %273 = vector.extract_strided_slice %152 {offsets = [20, 0], sizes = [1, 768], strides = [1, 1]} : vector<32x768xf32> to vector<1x768xf32>
    %274 = vector.extract_strided_slice %153 {offsets = [0, 20], sizes = [8, 1], strides = [1, 1]} : vector<8x32xf32> to vector<8x1xf32>
    %275 = vector.broadcast %273 : vector<1x768xf32> to vector<8x768xf32>
    %276 = vector.broadcast %274 : vector<8x1xf32> to vector<8x768xf32>
    %277 = arith.mulf %275, %276 : vector<8x768xf32>
    %278 = arith.addf %272, %277 : vector<8x768xf32>
    %279 = vector.extract_strided_slice %152 {offsets = [21, 0], sizes = [1, 768], strides = [1, 1]} : vector<32x768xf32> to vector<1x768xf32>
    %280 = vector.extract_strided_slice %153 {offsets = [0, 21], sizes = [8, 1], strides = [1, 1]} : vector<8x32xf32> to vector<8x1xf32>
    %281 = vector.broadcast %279 : vector<1x768xf32> to vector<8x768xf32>
    %282 = vector.broadcast %280 : vector<8x1xf32> to vector<8x768xf32>
    %283 = arith.mulf %281, %282 : vector<8x768xf32>
    %284 = arith.addf %278, %283 : vector<8x768xf32>
    %285 = vector.extract_strided_slice %152 {offsets = [22, 0], sizes = [1, 768], strides = [1, 1]} : vector<32x768xf32> to vector<1x768xf32>
    %286 = vector.extract_strided_slice %153 {offsets = [0, 22], sizes = [8, 1], strides = [1, 1]} : vector<8x32xf32> to vector<8x1xf32>
    %287 = vector.broadcast %285 : vector<1x768xf32> to vector<8x768xf32>
    %288 = vector.broadcast %286 : vector<8x1xf32> to vector<8x768xf32>
    %289 = arith.mulf %287, %288 : vector<8x768xf32>
    %290 = arith.addf %284, %289 : vector<8x768xf32>
    %291 = vector.extract_strided_slice %152 {offsets = [23, 0], sizes = [1, 768], strides = [1, 1]} : vector<32x768xf32> to vector<1x768xf32>
    %292 = vector.extract_strided_slice %153 {offsets = [0, 23], sizes = [8, 1], strides = [1, 1]} : vector<8x32xf32> to vector<8x1xf32>
    %293 = vector.broadcast %291 : vector<1x768xf32> to vector<8x768xf32>
    %294 = vector.broadcast %292 : vector<8x1xf32> to vector<8x768xf32>
    %295 = arith.mulf %293, %294 : vector<8x768xf32>
    %296 = arith.addf %290, %295 : vector<8x768xf32>
    %297 = vector.extract_strided_slice %152 {offsets = [24, 0], sizes = [1, 768], strides = [1, 1]} : vector<32x768xf32> to vector<1x768xf32>
    %298 = vector.extract_strided_slice %153 {offsets = [0, 24], sizes = [8, 1], strides = [1, 1]} : vector<8x32xf32> to vector<8x1xf32>
    %299 = vector.broadcast %297 : vector<1x768xf32> to vector<8x768xf32>
    %300 = vector.broadcast %298 : vector<8x1xf32> to vector<8x768xf32>
    %301 = arith.mulf %299, %300 : vector<8x768xf32>
    %302 = arith.addf %296, %301 : vector<8x768xf32>
    %303 = vector.extract_strided_slice %152 {offsets = [25, 0], sizes = [1, 768], strides = [1, 1]} : vector<32x768xf32> to vector<1x768xf32>
    %304 = vector.extract_strided_slice %153 {offsets = [0, 25], sizes = [8, 1], strides = [1, 1]} : vector<8x32xf32> to vector<8x1xf32>
    %305 = vector.broadcast %303 : vector<1x768xf32> to vector<8x768xf32>
    %306 = vector.broadcast %304 : vector<8x1xf32> to vector<8x768xf32>
    %307 = arith.mulf %305, %306 : vector<8x768xf32>
    %308 = arith.addf %302, %307 : vector<8x768xf32>
    %309 = vector.extract_strided_slice %152 {offsets = [26, 0], sizes = [1, 768], strides = [1, 1]} : vector<32x768xf32> to vector<1x768xf32>
    %310 = vector.extract_strided_slice %153 {offsets = [0, 26], sizes = [8, 1], strides = [1, 1]} : vector<8x32xf32> to vector<8x1xf32>
    %311 = vector.broadcast %309 : vector<1x768xf32> to vector<8x768xf32>
    %312 = vector.broadcast %310 : vector<8x1xf32> to vector<8x768xf32>
    %313 = arith.mulf %311, %312 : vector<8x768xf32>
    %314 = arith.addf %308, %313 : vector<8x768xf32>
    %315 = vector.extract_strided_slice %152 {offsets = [27, 0], sizes = [1, 768], strides = [1, 1]} : vector<32x768xf32> to vector<1x768xf32>
    %316 = vector.extract_strided_slice %153 {offsets = [0, 27], sizes = [8, 1], strides = [1, 1]} : vector<8x32xf32> to vector<8x1xf32>
    %317 = vector.broadcast %315 : vector<1x768xf32> to vector<8x768xf32>
    %318 = vector.broadcast %316 : vector<8x1xf32> to vector<8x768xf32>
    %319 = arith.mulf %317, %318 : vector<8x768xf32>
    %320 = arith.addf %314, %319 : vector<8x768xf32>
    %321 = vector.extract_strided_slice %152 {offsets = [28, 0], sizes = [1, 768], strides = [1, 1]} : vector<32x768xf32> to vector<1x768xf32>
    %322 = vector.extract_strided_slice %153 {offsets = [0, 28], sizes = [8, 1], strides = [1, 1]} : vector<8x32xf32> to vector<8x1xf32>
    %323 = vector.broadcast %321 : vector<1x768xf32> to vector<8x768xf32>
    %324 = vector.broadcast %322 : vector<8x1xf32> to vector<8x768xf32>
    %325 = arith.mulf %323, %324 : vector<8x768xf32>
    %326 = arith.addf %320, %325 : vector<8x768xf32>
    %327 = vector.extract_strided_slice %152 {offsets = [29, 0], sizes = [1, 768], strides = [1, 1]} : vector<32x768xf32> to vector<1x768xf32>
    %328 = vector.extract_strided_slice %153 {offsets = [0, 29], sizes = [8, 1], strides = [1, 1]} : vector<8x32xf32> to vector<8x1xf32>
    %329 = vector.broadcast %327 : vector<1x768xf32> to vector<8x768xf32>
    %330 = vector.broadcast %328 : vector<8x1xf32> to vector<8x768xf32>
    %331 = arith.mulf %329, %330 : vector<8x768xf32>
    %332 = arith.addf %326, %331 : vector<8x768xf32>
    %333 = vector.extract_strided_slice %152 {offsets = [30, 0], sizes = [1, 768], strides = [1, 1]} : vector<32x768xf32> to vector<1x768xf32>
    %334 = vector.extract_strided_slice %153 {offsets = [0, 30], sizes = [8, 1], strides = [1, 1]} : vector<8x32xf32> to vector<8x1xf32>
    %335 = vector.broadcast %333 : vector<1x768xf32> to vector<8x768xf32>
    %336 = vector.broadcast %334 : vector<8x1xf32> to vector<8x768xf32>
    %337 = arith.mulf %335, %336 : vector<8x768xf32>
    %338 = arith.addf %332, %337 : vector<8x768xf32>
    %339 = vector.extract_strided_slice %152 {offsets = [31, 0], sizes = [1, 768], strides = [1, 1]} : vector<32x768xf32> to vector<1x768xf32>
    %340 = vector.extract_strided_slice %153 {offsets = [0, 31], sizes = [8, 1], strides = [1, 1]} : vector<8x32xf32> to vector<8x1xf32>
    %341 = vector.broadcast %339 : vector<1x768xf32> to vector<8x768xf32>
    %342 = vector.broadcast %340 : vector<8x1xf32> to vector<8x768xf32>
    %343 = arith.mulf %341, %342 : vector<8x768xf32>
    %344 = arith.addf %338, %343 : vector<8x768xf32>
    %c0_32 = arith.constant 0 : index
    %c0_33 = arith.constant 0 : index
    %345 = vector.load %arg10[%c0_32, %c0_33] : memref<8x1xf32, #tpu.memory_space<vmem>>, vector<8x1xf32>
    %c0_34 = arith.constant 0 : index
    %c0_35 = arith.constant 0 : index
    %346 = vector.load %arg11[%c0_34, %c0_35] : memref<8x1xf32, #tpu.memory_space<vmem>>, vector<8x1xf32>
    %347 = vector.broadcast %123 : vector<1x768xf32> to vector<8x768xf32>
    %348 = arith.mulf %344, %347 : vector<8x768xf32>
    %cst_36 = arith.constant dense<0.000000e+00> : vector<8xf32>
    %349 = vector.multi_reduction <add>, %348, %cst_36 [1] : vector<8x768xf32> to vector<8xf32>
    %350 = vector.shape_cast %349 : vector<8xf32> to vector<8x1xf32>
    %351 = arith.mulf %348, %344 : vector<8x768xf32>
    %cst_37 = arith.constant dense<0.000000e+00> : vector<8xf32>
    %352 = vector.multi_reduction <add>, %351, %cst_37 [1] : vector<8x768xf32> to vector<8xf32>
    %353 = vector.shape_cast %352 : vector<8xf32> to vector<8x1xf32>
    %cst_38 = arith.constant 0.001953125 : f32
    %354 = vector.broadcast %cst_38 : f32 to vector<8x1xf32>
    %355 = arith.mulf %350, %354 : vector<8x1xf32>
    %cst_39 = arith.constant 0.001953125 : f32
    %356 = vector.broadcast %cst_39 : f32 to vector<8x1xf32>
    %357 = arith.mulf %353, %356 : vector<8x1xf32>
    %358 = arith.mulf %355, %355 : vector<8x1xf32>
    %359 = arith.subf %357, %358 : vector<8x1xf32>
    %cst_40 = arith.constant 9.99999974E-6 : f32
    %360 = vector.broadcast %cst_40 : f32 to vector<8x1xf32>
    %361 = arith.addf %359, %360 : vector<8x1xf32>
    %362 = math.rsqrt %361 : vector<8x1xf32>
    %363 = arith.mulf %345, %362 : vector<8x1xf32>
    %364 = arith.mulf %355, %363 : vector<8x1xf32>
    %365 = arith.subf %346, %364 : vector<8x1xf32>
    %366 = vector.broadcast %363 : vector<8x1xf32> to vector<8x768xf32>
    %367 = arith.mulf %344, %366 : vector<8x768xf32>
    %368 = vector.broadcast %365 : vector<8x1xf32> to vector<8x768xf32>
    %369 = arith.addf %367, %368 : vector<8x768xf32>
    %370 = arith.addf %369, %0 : vector<8x768xf32>
    %c0_41 = arith.constant 0 : index
    %c0_42 = arith.constant 0 : index
    %371 = vector.load %arg12[%c0_41, %c0_42] : memref<8x768xf32, #tpu.memory_space<vmem>>, vector<8x768xf32>
    tpu.vector_store %arg12[%c0_41, %c0_42], %370 {strides = array<i32>} : memref<8x768xf32, #tpu.memory_space<vmem>>, vector<8x768xf32>,
    return
  }
}

</mosaic_0001>

<llo_original>
// kernel: adaptive_inverted_residual.1
$region0: #{adaptive_inverted_residual.1}
  #allocation0 [shape = 'u32[]', space=smem, size = 0x4, offset = 0x4, fixed_abs, tag = 'smem constant byte address 0x4 - core index']
  #allocation1 [shape = 'u32[72,128]{1,0:T(1,128)}', space=vmem, size = 0x9000, scoped, tag = 'internal scratch']
  %s0 = inlined_call_operand.vmem [shape: f32[8,768], index: 0, kind: input, shape index: {}]
  %s1 = inlined_call_operand.vmem [shape: f32[1,768], index: 1, kind: input, shape index: {}, may-alias: {1,2}]
  %s2 = inlined_call_operand.vmem [shape: f32[1,768], index: 2, kind: input, shape index: {}, may-alias: {1,2}]
  %s3 = inlined_call_operand.vmem [shape: f32[32,8], index: 3, kind: input, shape index: {}]
  %s4 = inlined_call_operand.vmem [shape: f32[32,1], index: 4, kind: input, shape index: {}]
  %s5 = inlined_call_operand.vmem [shape: f32[32,1], index: 5, kind: input, shape index: {}]
  %s6 = inlined_call_operand.vmem [shape: f32[32,9], index: 6, kind: input, shape index: {}]
  %s7 = inlined_call_operand.vmem [shape: f32[32,1], index: 7, kind: input, shape index: {}]
  %s8 = inlined_call_operand.vmem [shape: f32[32,1], index: 8, kind: input, shape index: {}]
  %s9 = inlined_call_operand.vmem [shape: f32[8,32], index: 9, kind: input, shape index: {}]
  %s10 = inlined_call_operand.vmem [shape: f32[8,1], index: 10, kind: input, shape index: {}]
  %s11 = inlined_call_operand.vmem [shape: f32[8,1], index: 11, kind: input, shape index: {}]
  %s12 = inlined_call_operand.vmem [shape: f32[8,768], index: 12, kind: output, shape index: {}]
  %s13 = sld [smem:[#allocation0]]
  $region58: #{adaptive_inverted_residual.1} parent=0
    _
  %s15 = ssub.s32 1, %s13
  %s16 = scalar_select 0, %s15, %s13
  // Predicated region
  $region2: #{adaptive_inverted_residual.1} parent=0 // pred_check
    _
  $region3: #{adaptive_inverted_residual.1} parent=0 // pred_check_branch
    %18 = sbr.rel (0) target = $region5
  $region4: #{adaptive_inverted_residual.1} parent=0 // pred_region
    _
  $region5: #{adaptive_inverted_residual.1} parent=0 // pred_fallthru
    _
  // Predicated region
  $region6: #{adaptive_inverted_residual.1} parent=0 // pred_check
    _
  $region7: #{adaptive_inverted_residual.1} parent=0 // pred_check_branch
    %20 = sbr.rel (0) target = $region9
  $region8: #{adaptive_inverted_residual.1} parent=0 // pred_region
    _
  $region9: #{adaptive_inverted_residual.1} parent=0 // pred_fallthru
    _
  // Predicated region
  $region10: #{adaptive_inverted_residual.1} parent=0 // pred_check
    _
  $region11: #{adaptive_inverted_residual.1} parent=0 // pred_check_branch
    %22 = sbr.rel (0) target = $region13
  $region12: #{adaptive_inverted_residual.1} parent=0 // pred_region
    _
  $region13: #{adaptive_inverted_residual.1} parent=0 // pred_fallthru
    _
  // Predicated region
  $region14: #{adaptive_inverted_residual.1} parent=0 // pred_check
    _
  $region15: #{adaptive_inverted_residual.1} parent=0 // pred_check_branch
    %24 = sbr.rel (0) target = $region17
  $region16: #{adaptive_inverted_residual.1} parent=0 // pred_region
    _
  $region17: #{adaptive_inverted_residual.1} parent=0 // pred_fallthru
    _
  // Predicated region
  $region18: #{adaptive_inverted_residual.1} parent=0 // pred_check
    _
  $region19: #{adaptive_inverted_residual.1} parent=0 // pred_check_branch
    %26 = sbr.rel (0) target = $region21
  $region20: #{adaptive_inverted_residual.1} parent=0 // pred_region
    _
  $region21: #{adaptive_inverted_residual.1} parent=0 // pred_fallthru
    _
  // Predicated region
  $region22: #{adaptive_inverted_residual.1} parent=0 // pred_check
    _
  $region23: #{adaptive_inverted_residual.1} parent=0 // pred_check_branch
    %28 = sbr.rel (0) target = $region25
  $region24: #{adaptive_inverted_residual.1} parent=0 // pred_region
    _
  $region25: #{adaptive_inverted_residual.1} parent=0 // pred_fallthru
    _
  // Predicated region
  $region26: #{adaptive_inverted_residual.1} parent=0 // pred_check
    _
  $region27: #{adaptive_inverted_residual.1} parent=0 // pred_check_branch
    %30 = sbr.rel (0) target = $region29
  $region28: #{adaptive_inverted_residual.1} parent=0 // pred_region
    _
  $region29: #{adaptive_inverted_residual.1} parent=0 // pred_fallthru
    _
  // Predicated region
  $region30: #{adaptive_inverted_residual.1} parent=0 // pred_check
    _
  $region31: #{adaptive_inverted_residual.1} parent=0 // pred_check_branch
    %32 = sbr.rel (0) target = $region33
  $region32: #{adaptive_inverted_residual.1} parent=0 // pred_region
    _
  $region33: #{adaptive_inverted_residual.1} parent=0 // pred_fallthru
    _
  // Predicated region
  $region34: #{adaptive_inverted_residual.1} parent=0 // pred_check
    _
  $region35: #{adaptive_inverted_residual.1} parent=0 // pred_check_branch
    %34 = sbr.rel (0) target = $region37
  $region36: #{adaptive_inverted_residual.1} parent=0 // pred_region
    _
  $region37: #{adaptive_inverted_residual.1} parent=0 // pred_fallthru
    _
  // Predicated region
  $region38: #{adaptive_inverted_residual.1} parent=0 // pred_check
    _
  $region39: #{adaptive_inverted_residual.1} parent=0 // pred_check_branch
    %36 = sbr.rel (0) target = $region41
  $region40: #{adaptive_inverted_residual.1} parent=0 // pred_region
    _
  $region41: #{adaptive_inverted_residual.1} parent=0 // pred_fallthru
    _
  // Predicated region
  $region42: #{adaptive_inverted_residual.1} parent=0 // pred_check
    _
  $region43: #{adaptive_inverted_residual.1} parent=0 // pred_check_branch
    %38 = sbr.rel (0) target = $region45
  $region44: #{adaptive_inverted_residual.1} parent=0 // pred_region
    _
  $region45: #{adaptive_inverted_residual.1} parent=0 // pred_fallthru
    _
  // Predicated region
  $region46: #{adaptive_inverted_residual.1} parent=0 // pred_check
    _
  $region47: #{adaptive_inverted_residual.1} parent=0 // pred_check_branch
    %40 = sbr.rel (0) target = $region49
  $region48: #{adaptive_inverted_residual.1} parent=0 // pred_region
    _
  $region49: #{adaptive_inverted_residual.1} parent=0 // pred_fallthru
    _
  %v41 = vld [vmem:[%s0] sm:$0xff]
  %v42 = vld [vmem:[%s0 + $0x8] sm:$0xff]
  %v43 = vld [vmem:[%s0 + $0x10] sm:$0xff]
  %v44 = vld [vmem:[%s0 + $0x18] sm:$0xff]
  %v45 = vld [vmem:[%s0 + $0x20] sm:$0xff]
  %v46 = vld [vmem:[%s0 + $0x28] sm:$0xff]
  %v47 = vld [vmem:[%s3] sm:$0xff]
  %v48 = vld [vmem:[%s3 + $0x8] sm:$0xff]
  %v49 = vld [vmem:[%s3 + $0x10] sm:$0xff]
  %v50 = vld [vmem:[%s3 + $0x18] sm:$0xff]
  %v51 = vperm.slane %v41, 0
  %v52 = vperm.slane %v42, 0
  %v53 = vperm.slane %v43, 0
  %v54 = vperm.slane %v44, 0
  %v55 = vperm.slane %v45, 0
  %v56 = vperm.slane %v46, 0
  %58 = vset.pattern.permute.xlu0 0
  %59 = vperm.xlu0 %58, %v47
  %v60 = vpop.permute.xlu0 %59
  %63 = vset.pattern.permute.xlu0 0
  %64 = vperm.xlu0 %63, %v48
  %v65 = vpop.permute.xlu0 %64
  %68 = vset.pattern.permute.xlu0 0
  %69 = vperm.xlu0 %68, %v49
  %v70 = vpop.permute.xlu0 %69
  %73 = vset.pattern.permute.xlu0 0
  %74 = vperm.xlu0 %73, %v50
  %v75 = vpop.permute.xlu0 %74
  %v77 = vmul.f32 %v51, %v60
  %v78 = vmul.f32 %v52, %v60
  %v79 = vmul.f32 %v53, %v60
  %v80 = vmul.f32 %v54, %v60
  %v81 = vmul.f32 %v55, %v60
  %v82 = vmul.f32 %v56, %v60
  %v83 = vmul.f32 %v51, %v65
  %v84 = vmul.f32 %v52, %v65
  %v85 = vmul.f32 %v53, %v65
  %v86 = vmul.f32 %v54, %v65
  %v87 = vmul.f32 %v55, %v65
  %v88 = vmul.f32 %v56, %v65
  %v89 = vmul.f32 %v51, %v70
  %v90 = vmul.f32 %v52, %v70
  %v91 = vmul.f32 %v53, %v70
  %v92 = vmul.f32 %v54, %v70
  %v93 = vmul.f32 %v55, %v70
  %v94 = vmul.f32 %v56, %v70
  %v95 = vmul.f32 %v51, %v75
  %v96 = vmul.f32 %v52, %v75
  %v97 = vmul.f32 %v53, %v75
  %v98 = vmul.f32 %v54, %v75
  %v99 = vmul.f32 %v55, %v75
  %v100 = vmul.f32 %v56, %v75
  %v101 = vperm.slane %v41, 1
  %v102 = vperm.slane %v42, 1
  %v103 = vperm.slane %v43, 1
  %v104 = vperm.slane %v44, 1
  %v105 = vperm.slane %v45, 1
  %v106 = vperm.slane %v46, 1
  %107 = vset.pattern.permute.xlu0 1
  %108 = vperm.xlu0 %107, %v47
  %v109 = vpop.permute.xlu0 %108
  %111 = vset.pattern.permute.xlu0 1
  %112 = vperm.xlu0 %111, %v48
  %v113 = vpop.permute.xlu0 %112
  %115 = vset.pattern.permute.xlu0 1
  %116 = vperm.xlu0 %115, %v49
  %v117 = vpop.permute.xlu0 %116
  %119 = vset.pattern.permute.xlu0 1
  %120 = vperm.xlu0 %119, %v50
  %v121 = vpop.permute.xlu0 %120
  %v123 = vmul.f32 %v101, %v109
  %v124 = vmul.f32 %v102, %v109
  %v125 = vmul.f32 %v103, %v109
  %v126 = vmul.f32 %v104, %v109
  %v127 = vmul.f32 %v105, %v109
  %v128 = vmul.f32 %v106, %v109
  %v129 = vmul.f32 %v101, %v113
  %v130 = vmul.f32 %v102, %v113
  %v131 = vmul.f32 %v103, %v113
  %v132 = vmul.f32 %v104, %v113
  %v133 = vmul.f32 %v105, %v113
  %v134 = vmul.f32 %v106, %v113
  %v135 = vmul.f32 %v101, %v117
  %v136 = vmul.f32 %v102, %v117
  %v137 = vmul.f32 %v103, %v117
  %v138 = vmul.f32 %v104, %v117
  %v139 = vmul.f32 %v105, %v117
  %v140 = vmul.f32 %v106, %v117
  %v141 = vmul.f32 %v101, %v121
  %v142 = vmul.f32 %v102, %v121
  %v143 = vmul.f32 %v103, %v121
  %v144 = vmul.f32 %v104, %v121
  %v145 = vmul.f32 %v105, %v121
  %v146 = vmul.f32 %v106, %v121
  %v147 = vadd.f32 %v77, %v123
  %v148 = vadd.f32 %v78, %v124
  %v149 = vadd.f32 %v79, %v125
  %v150 = vadd.f32 %v80, %v126
  %v151 = vadd.f32 %v81, %v127
  %v152 = vadd.f32 %v82, %v128
  %v153 = vadd.f32 %v83, %v129
  %v154 = vadd.f32 %v84, %v130
  %v155 = vadd.f32 %v85, %v131
  %v156 = vadd.f32 %v86, %v132
  %v157 = vadd.f32 %v87, %v133
  %v158 = vadd.f32 %v88, %v134
  %v159 = vadd.f32 %v89, %v135
  %v160 = vadd.f32 %v90, %v136
  %v161 = vadd.f32 %v91, %v137
  %v162 = vadd.f32 %v92, %v138
  %v163 = vadd.f32 %v93, %v139
  %v164 = vadd.f32 %v94, %v140
  %v165 = vadd.f32 %v95, %v141
  %v166 = vadd.f32 %v96, %v142
  %v167 = vadd.f32 %v97, %v143
  %v168 = vadd.f32 %v98, %v144
  %v169 = vadd.f32 %v99, %v145
  %v170 = vadd.f32 %v100, %v146
  %v171 = vperm.slane %v41, 2
  %v172 = vperm.slane %v42, 2
  %v173 = vperm.slane %v43, 2
  %v174 = vperm.slane %v44, 2
  %v175 = vperm.slane %v45, 2
  %v176 = vperm.slane %v46, 2
  %177 = vset.pattern.permute.xlu0 2
  %178 = vperm.xlu0 %177, %v47
  %v179 = vpop.permute.xlu0 %178
  %181 = vset.pattern.permute.xlu0 2
  %182 = vperm.xlu0 %181, %v48
  %v183 = vpop.permute.xlu0 %182
  %185 = vset.pattern.permute.xlu0 2
  %186 = vperm.xlu0 %185, %v49
  %v187 = vpop.permute.xlu0 %186
  %189 = vset.pattern.permute.xlu0 2
  %190 = vperm.xlu0 %189, %v50
  %v191 = vpop.permute.xlu0 %190
  %v193 = vmul.f32 %v171, %v179
  %v194 = vmul.f32 %v172, %v179
  %v195 = vmul.f32 %v173, %v179
  %v196 = vmul.f32 %v174, %v179
  %v197 = vmul.f32 %v175, %v179
  %v198 = vmul.f32 %v176, %v179
  %v199 = vmul.f32 %v171, %v183
  %v200 = vmul.f32 %v172, %v183
  %v201 = vmul.f32 %v173, %v183
  %v202 = vmul.f32 %v174, %v183
  %v203 = vmul.f32 %v175, %v183
  %v204 = vmul.f32 %v176, %v183
  %v205 = vmul.f32 %v171, %v187
  %v206 = vmul.f32 %v172, %v187
  %v207 = vmul.f32 %v173, %v187
  %v208 = vmul.f32 %v174, %v187
  %v209 = vmul.f32 %v175, %v187
  %v210 = vmul.f32 %v176, %v187
  %v211 = vmul.f32 %v171, %v191
  %v212 = vmul.f32 %v172, %v191
  %v213 = vmul.f32 %v173, %v191
  %v214 = vmul.f32 %v174, %v191
  %v215 = vmul.f32 %v175, %v191
  %v216 = vmul.f32 %v176, %v191
  %v217 = vadd.f32 %v147, %v193
  %v218 = vadd.f32 %v148, %v194
  %v219 = vadd.f32 %v149, %v195
  %v220 = vadd.f32 %v150, %v196
  %v221 = vadd.f32 %v151, %v197
  %v222 = vadd.f32 %v152, %v198
  %v223 = vadd.f32 %v153, %v199
  %v224 = vadd.f32 %v154, %v200
  %v225 = vadd.f32 %v155, %v201
  %v226 = vadd.f32 %v156, %v202
  %v227 = vadd.f32 %v157, %v203
  %v228 = vadd.f32 %v158, %v204
  %v229 = vadd.f32 %v159, %v205
  %v230 = vadd.f32 %v160, %v206
  %v231 = vadd.f32 %v161, %v207
  %v232 = vadd.f32 %v162, %v208
  %v233 = vadd.f32 %v163, %v209
  %v234 = vadd.f32 %v164, %v210
  %v235 = vadd.f32 %v165, %v211
  %v236 = vadd.f32 %v166, %v212
  %v237 = vadd.f32 %v167, %v213
  %v238 = vadd.f32 %v168, %v214
  %v239 = vadd.f32 %v169, %v215
  %v240 = vadd.f32 %v170, %v216
  %v241 = vperm.slane %v41, 3
  %v242 = vperm.slane %v42, 3
  %v243 = vperm.slane %v43, 3
  %v244 = vperm.slane %v44, 3
  %v245 = vperm.slane %v45, 3
  %v246 = vperm.slane %v46, 3
  %247 = vset.pattern.permute.xlu0 3
  %248 = vperm.xlu0 %247, %v47
  %v249 = vpop.permute.xlu0 %248
  %251 = vset.pattern.permute.xlu0 3
  %252 = vperm.xlu0 %251, %v48
  %v253 = vpop.permute.xlu0 %252
  %255 = vset.pattern.permute.xlu0 3
  %256 = vperm.xlu0 %255, %v49
  %v257 = vpop.permute.xlu0 %256
  %259 = vset.pattern.permute.xlu0 3
  %260 = vperm.xlu0 %259, %v50
  %v261 = vpop.permute.xlu0 %260
  %v263 = vmul.f32 %v241, %v249
  %v264 = vmul.f32 %v242, %v249
  %v265 = vmul.f32 %v243, %v249
  %v266 = vmul.f32 %v244, %v249
  %v267 = vmul.f32 %v245, %v249
  %v268 = vmul.f32 %v246, %v249
  %v269 = vmul.f32 %v241, %v253
  %v270 = vmul.f32 %v242, %v253
  %v271 = vmul.f32 %v243, %v253
  %v272 = vmul.f32 %v244, %v253
  %v273 = vmul.f32 %v245, %v253
  %v274 = vmul.f32 %v246, %v253
  %v275 = vmul.f32 %v241, %v257
  %v276 = vmul.f32 %v242, %v257
  %v277 = vmul.f32 %v243, %v257
  %v278 = vmul.f32 %v244, %v257
  %v279 = vmul.f32 %v245, %v257
  %v280 = vmul.f32 %v246, %v257
  %v281 = vmul.f32 %v241, %v261
  %v282 = vmul.f32 %v242, %v261
  %v283 = vmul.f32 %v243, %v261
  %v284 = vmul.f32 %v244, %v261
  %v285 = vmul.f32 %v245, %v261
  %v286 = vmul.f32 %v246, %v261
  %v287 = vadd.f32 %v217, %v263
  %v288 = vadd.f32 %v218, %v264
  %v289 = vadd.f32 %v219, %v265
  %v290 = vadd.f32 %v220, %v266
  %v291 = vadd.f32 %v221, %v267
  %v292 = vadd.f32 %v222, %v268
  %v293 = vadd.f32 %v223, %v269
  %v294 = vadd.f32 %v224, %v270
  %v295 = vadd.f32 %v225, %v271
  %v296 = vadd.f32 %v226, %v272
  %v297 = vadd.f32 %v227, %v273
  %v298 = vadd.f32 %v228, %v274
  %v299 = vadd.f32 %v229, %v275
  %v300 = vadd.f32 %v230, %v276
  %v301 = vadd.f32 %v231, %v277
  %v302 = vadd.f32 %v232, %v278
  %v303 = vadd.f32 %v233, %v279
  %v304 = vadd.f32 %v234, %v280
  %v305 = vadd.f32 %v235, %v281
  %v306 = vadd.f32 %v236, %v282
  %v307 = vadd.f32 %v237, %v283
  %v308 = vadd.f32 %v238, %v284
  %v309 = vadd.f32 %v239, %v285
  %v310 = vadd.f32 %v240, %v286
  %v311 = vperm.slane %v41, 4
  %v312 = vperm.slane %v42, 4
  %v313 = vperm.slane %v43, 4
  %v314 = vperm.slane %v44, 4
  %v315 = vperm.slane %v45, 4
  %v316 = vperm.slane %v46, 4
  %317 = vset.pattern.permute.xlu0 4
  %318 = vperm.xlu0 %317, %v47
  %v319 = vpop.permute.xlu0 %318
  %321 = vset.pattern.permute.xlu0 4
  %322 = vperm.xlu0 %321, %v48
  %v323 = vpop.permute.xlu0 %322
  %325 = vset.pattern.permute.xlu0 4
  %326 = vperm.xlu0 %325, %v49
  %v327 = vpop.permute.xlu0 %326
  %329 = vset.pattern.permute.xlu0 4
  %330 = vperm.xlu0 %329, %v50
  %v331 = vpop.permute.xlu0 %330
  %v333 = vmul.f32 %v311, %v319
  %v334 = vmul.f32 %v312, %v319
  %v335 = vmul.f32 %v313, %v319
  %v336 = vmul.f32 %v314, %v319
  %v337 = vmul.f32 %v315, %v319
  %v338 = vmul.f32 %v316, %v319
  %v339 = vmul.f32 %v311, %v323
  %v340 = vmul.f32 %v312, %v323
  %v341 = vmul.f32 %v313, %v323
  %v342 = vmul.f32 %v314, %v323
  %v343 = vmul.f32 %v315, %v323
  %v344 = vmul.f32 %v316, %v323
  %v345 = vmul.f32 %v311, %v327
  %v346 = vmul.f32 %v312, %v327
  %v347 = vmul.f32 %v313, %v327
  %v348 = vmul.f32 %v314, %v327
  %v349 = vmul.f32 %v315, %v327
  %v350 = vmul.f32 %v316, %v327
  %v351 = vmul.f32 %v311, %v331
  %v352 = vmul.f32 %v312, %v331
  %v353 = vmul.f32 %v313, %v331
  %v354 = vmul.f32 %v314, %v331
  %v355 = vmul.f32 %v315, %v331
  %v356 = vmul.f32 %v316, %v331
  %v357 = vadd.f32 %v287, %v333
  %v358 = vadd.f32 %v288, %v334
  %v359 = vadd.f32 %v289, %v335
  %v360 = vadd.f32 %v290, %v336
  %v361 = vadd.f32 %v291, %v337
  %v362 = vadd.f32 %v292, %v338
  %v363 = vadd.f32 %v293, %v339
  %v364 = vadd.f32 %v294, %v340
  %v365 = vadd.f32 %v295, %v341
  %v366 = vadd.f32 %v296, %v342
  %v367 = vadd.f32 %v297, %v343
  %v368 = vadd.f32 %v298, %v344
  %v369 = vadd.f32 %v299, %v345
  %v370 = vadd.f32 %v300, %v346
  %v371 = vadd.f32 %v301, %v347
  %v372 = vadd.f32 %v302, %v348
  %v373 = vadd.f32 %v303, %v349
  %v374 = vadd.f32 %v304, %v350
  %v375 = vadd.f32 %v305, %v351
  %v376 = vadd.f32 %v306, %v352
  %v377 = vadd.f32 %v307, %v353
  %v378 = vadd.f32 %v308, %v354
  %v379 = vadd.f32 %v309, %v355
  %v380 = vadd.f32 %v310, %v356
  %v381 = vperm.slane %v41, 5
  %v382 = vperm.slane %v42, 5
  %v383 = vperm.slane %v43, 5
  %v384 = vperm.slane %v44, 5
  %v385 = vperm.slane %v45, 5
  %v386 = vperm.slane %v46, 5
  %387 = vset.pattern.permute.xlu0 5
  %388 = vperm.xlu0 %387, %v47
  %v389 = vpop.permute.xlu0 %388
  %391 = vset.pattern.permute.xlu0 5
  %392 = vperm.xlu0 %391, %v48
  %v393 = vpop.permute.xlu0 %392
  %395 = vset.pattern.permute.xlu0 5
  %396 = vperm.xlu0 %395, %v49
  %v397 = vpop.permute.xlu0 %396
  %399 = vset.pattern.permute.xlu0 5
  %400 = vperm.xlu0 %399, %v50
  %v401 = vpop.permute.xlu0 %400
  %v403 = vmul.f32 %v381, %v389
  %v404 = vmul.f32 %v382, %v389
  %v405 = vmul.f32 %v383, %v389
  %v406 = vmul.f32 %v384, %v389
  %v407 = vmul.f32 %v385, %v389
  %v408 = vmul.f32 %v386, %v389
  %v409 = vmul.f32 %v381, %v393
  %v410 = vmul.f32 %v382, %v393
  %v411 = vmul.f32 %v383, %v393
  %v412 = vmul.f32 %v384, %v393
  %v413 = vmul.f32 %v385, %v393
  %v414 = vmul.f32 %v386, %v393
  %v415 = vmul.f32 %v381, %v397
  %v416 = vmul.f32 %v382, %v397
  %v417 = vmul.f32 %v383, %v397
  %v418 = vmul.f32 %v384, %v397
  %v419 = vmul.f32 %v385, %v397
  %v420 = vmul.f32 %v386, %v397
  %v421 = vmul.f32 %v381, %v401
  %v422 = vmul.f32 %v382, %v401
  %v423 = vmul.f32 %v383, %v401
  %v424 = vmul.f32 %v384, %v401
  %v425 = vmul.f32 %v385, %v401
  %v426 = vmul.f32 %v386, %v401
  %v427 = vadd.f32 %v357, %v403
  %v428 = vadd.f32 %v358, %v404
  %v429 = vadd.f32 %v359, %v405
  %v430 = vadd.f32 %v360, %v406
  %v431 = vadd.f32 %v361, %v407
  %v432 = vadd.f32 %v362, %v408
  %v433 = vadd.f32 %v363, %v409
  %v434 = vadd.f32 %v364, %v410
  %v435 = vadd.f32 %v365, %v411
  %v436 = vadd.f32 %v366, %v412
  %v437 = vadd.f32 %v367, %v413
  %v438 = vadd.f32 %v368, %v414
  %v439 = vadd.f32 %v369, %v415
  %v440 = vadd.f32 %v370, %v416
  %v441 = vadd.f32 %v371, %v417
  %v442 = vadd.f32 %v372, %v418
  %v443 = vadd.f32 %v373, %v419
  %v444 = vadd.f32 %v374, %v420
  %v445 = vadd.f32 %v375, %v421
  %v446 = vadd.f32 %v376, %v422
  %v447 = vadd.f32 %v377, %v423
  %v448 = vadd.f32 %v378, %v424
  %v449 = vadd.f32 %v379, %v425
  %v450 = vadd.f32 %v380, %v426
  %v451 = vperm.slane %v41, 6
  %v452 = vperm.slane %v42, 6
  %v453 = vperm.slane %v43, 6
  %v454 = vperm.slane %v44, 6
  %v455 = vperm.slane %v45, 6
  %v456 = vperm.slane %v46, 6
  %457 = vset.pattern.permute.xlu0 6
  %458 = vperm.xlu0 %457, %v47
  %v459 = vpop.permute.xlu0 %458
  %461 = vset.pattern.permute.xlu0 6
  %462 = vperm.xlu0 %461, %v48
  %v463 = vpop.permute.xlu0 %462
  %465 = vset.pattern.permute.xlu0 6
  %466 = vperm.xlu0 %465, %v49
  %v467 = vpop.permute.xlu0 %466
  %469 = vset.pattern.permute.xlu0 6
  %470 = vperm.xlu0 %469, %v50
  %v471 = vpop.permute.xlu0 %470
  %v473 = vmul.f32 %v451, %v459
  %v474 = vmul.f32 %v452, %v459
  %v475 = vmul.f32 %v453, %v459
  %v476 = vmul.f32 %v454, %v459
  %v477 = vmul.f32 %v455, %v459
  %v478 = vmul.f32 %v456, %v459
  %v479 = vmul.f32 %v451, %v463
  %v480 = vmul.f32 %v452, %v463
  %v481 = vmul.f32 %v453, %v463
  %v482 = vmul.f32 %v454, %v463
  %v483 = vmul.f32 %v455, %v463
  %v484 = vmul.f32 %v456, %v463
  %v485 = vmul.f32 %v451, %v467
  %v486 = vmul.f32 %v452, %v467
  %v487 = vmul.f32 %v453, %v467
  %v488 = vmul.f32 %v454, %v467
  %v489 = vmul.f32 %v455, %v467
  %v490 = vmul.f32 %v456, %v467
  %v491 = vmul.f32 %v451, %v471
  %v492 = vmul.f32 %v452, %v471
  %v493 = vmul.f32 %v453, %v471
  %v494 = vmul.f32 %v454, %v471
  %v495 = vmul.f32 %v455, %v471
  %v496 = vmul.f32 %v456, %v471
  %v497 = vadd.f32 %v427, %v473
  %v498 = vadd.f32 %v428, %v474
  %v499 = vadd.f32 %v429, %v475
  %v500 = vadd.f32 %v430, %v476
  %v501 = vadd.f32 %v431, %v477
  %v502 = vadd.f32 %v432, %v478
  %v503 = vadd.f32 %v433, %v479
  %v504 = vadd.f32 %v434, %v480
  %v505 = vadd.f32 %v435, %v481
  %v506 = vadd.f32 %v436, %v482
  %v507 = vadd.f32 %v437, %v483
  %v508 = vadd.f32 %v438, %v484
  %v509 = vadd.f32 %v439, %v485
  %v510 = vadd.f32 %v440, %v486
  %v511 = vadd.f32 %v441, %v487
  %v512 = vadd.f32 %v442, %v488
  %v513 = vadd.f32 %v443, %v489
  %v514 = vadd.f32 %v444, %v490
  %v515 = vadd.f32 %v445, %v491
  %v516 = vadd.f32 %v446, %v492
  %v517 = vadd.f32 %v447, %v493
  %v518 = vadd.f32 %v448, %v494
  %v519 = vadd.f32 %v449, %v495
  %v520 = vadd.f32 %v450, %v496
  %v521 = vperm.slane %v41, 7
  %v522 = vperm.slane %v42, 7
  %v523 = vperm.slane %v43, 7
  %v524 = vperm.slane %v44, 7
  %v525 = vperm.slane %v45, 7
  %v526 = vperm.slane %v46, 7
  %527 = vset.pattern.permute.xlu0 7
  %528 = vperm.xlu0 %527, %v47
  %v529 = vpop.permute.xlu0 %528
  %531 = vset.pattern.permute.xlu0 7
  %532 = vperm.xlu0 %531, %v48
  %v533 = vpop.permute.xlu0 %532
  %535 = vset.pattern.permute.xlu0 7
  %536 = vperm.xlu0 %535, %v49
  %v537 = vpop.permute.xlu0 %536
  %539 = vset.pattern.permute.xlu0 7
  %540 = vperm.xlu0 %539, %v50
  %v541 = vpop.permute.xlu0 %540
  %v543 = vmul.f32 %v521, %v529
  %v544 = vmul.f32 %v522, %v529
  %v545 = vmul.f32 %v523, %v529
  %v546 = vmul.f32 %v524, %v529
  %v547 = vmul.f32 %v525, %v529
  %v548 = vmul.f32 %v526, %v529
  %v549 = vmul.f32 %v521, %v533
  %v550 = vmul.f32 %v522, %v533
  %v551 = vmul.f32 %v523, %v533
  %v552 = vmul.f32 %v524, %v533
  %v553 = vmul.f32 %v525, %v533
  %v554 = vmul.f32 %v526, %v533
  %v555 = vmul.f32 %v521, %v537
  %v556 = vmul.f32 %v522, %v537
  %v557 = vmul.f32 %v523, %v537
  %v558 = vmul.f32 %v524, %v537
  %v559 = vmul.f32 %v525, %v537
  %v560 = vmul.f32 %v526, %v537
  %v561 = vmul.f32 %v521, %v541
  %v562 = vmul.f32 %v522, %v541
  %v563 = vmul.f32 %v523, %v541
  %v564 = vmul.f32 %v524, %v541
  %v565 = vmul.f32 %v525, %v541
  %v566 = vmul.f32 %v526, %v541
  %v567 = vadd.f32 %v497, %v543
  %v568 = vadd.f32 %v498, %v544
  %v569 = vadd.f32 %v499, %v545
  %v570 = vadd.f32 %v500, %v546
  %v571 = vadd.f32 %v501, %v547
  %v572 = vadd.f32 %v502, %v548
  %v573 = vadd.f32 %v503, %v549
  %v574 = vadd.f32 %v504, %v550
  %v575 = vadd.f32 %v505, %v551
  %v576 = vadd.f32 %v506, %v552
  %v577 = vadd.f32 %v507, %v553
  %v578 = vadd.f32 %v508, %v554
  %v579 = vadd.f32 %v509, %v555
  %v580 = vadd.f32 %v510, %v556
  %v581 = vadd.f32 %v511, %v557
  %v582 = vadd.f32 %v512, %v558
  %v583 = vadd.f32 %v513, %v559
  %v584 = vadd.f32 %v514, %v560
  %v585 = vadd.f32 %v515, %v561
  %v586 = vadd.f32 %v516, %v562
  %v587 = vadd.f32 %v517, %v563
  %v588 = vadd.f32 %v518, %v564
  %v589 = vadd.f32 %v519, %v565
  %v590 = vadd.f32 %v520, %v566
  %v591 = vld [vmem:[%s4] sm:$0xff]
  %v592 = vld [vmem:[%s4 + $0x8] sm:$0xff]
  %v593 = vld [vmem:[%s4 + $0x10] sm:$0xff]
  %v594 = vld [vmem:[%s4 + $0x18] sm:$0xff]
  %v595 = vld [vmem:[%s5] sm:$0xff]
  %v596 = vld [vmem:[%s5 + $0x8] sm:$0xff]
  %v597 = vld [vmem:[%s5 + $0x10] sm:$0xff]
  %v598 = vld [vmem:[%s5 + $0x18] sm:$0xff]
  %v599 = vadd.f32 %v567, %v568
  %v600 = vadd.f32 %v599, %v569
  %v601 = vadd.f32 %v600, %v570
  %v602 = vadd.f32 %v601, %v571
  %v603 = vadd.f32 %v602, %v572
  %604 = vadd.xlane.f32.xlu0 %v603
  %v605 = vpop.xlane.xlu0 %604
  %v606 = vadd.f32 %v573, %v574
  %v607 = vadd.f32 %v606, %v575
  %v608 = vadd.f32 %v607, %v576
  %v609 = vadd.f32 %v608, %v577
  %v610 = vadd.f32 %v609, %v578
  %611 = vadd.xlane.f32.xlu0 %v610
  %v612 = vpop.xlane.xlu0 %611
  %v613 = vadd.f32 %v579, %v580
  %v614 = vadd.f32 %v613, %v581
  %v615 = vadd.f32 %v614, %v582
  %v616 = vadd.f32 %v615, %v583
  %v617 = vadd.f32 %v616, %v584
  %618 = vadd.xlane.f32.xlu0 %v617
  %v619 = vpop.xlane.xlu0 %618
  %v620 = vadd.f32 %v585, %v586
  %v621 = vadd.f32 %v620, %v587
  %v622 = vadd.f32 %v621, %v588
  %v623 = vadd.f32 %v622, %v589
  %v624 = vadd.f32 %v623, %v590
  %625 = vadd.xlane.f32.xlu0 %v624
  %v626 = vpop.xlane.xlu0 %625
  %v627 = vmul.f32 %v567, %v567
  %v628 = vmul.f32 %v568, %v568
  %v629 = vmul.f32 %v569, %v569
  %v630 = vmul.f32 %v570, %v570
  %v631 = vmul.f32 %v571, %v571
  %v632 = vmul.f32 %v572, %v572
  %v633 = vmul.f32 %v573, %v573
  %v634 = vmul.f32 %v574, %v574
  %v635 = vmul.f32 %v575, %v575
  %v636 = vmul.f32 %v576, %v576
  %v637 = vmul.f32 %v577, %v577
  %v638 = vmul.f32 %v578, %v578
  %v639 = vmul.f32 %v579, %v579
  %v640 = vmul.f32 %v580, %v580
  %v641 = vmul.f32 %v581, %v581
  %v642 = vmul.f32 %v582, %v582
  %v643 = vmul.f32 %v583, %v583
  %v644 = vmul.f32 %v584, %v584
  %v645 = vmul.f32 %v585, %v585
  %v646 = vmul.f32 %v586, %v586
  %v647 = vmul.f32 %v587, %v587
  %v648 = vmul.f32 %v588, %v588
  %v649 = vmul.f32 %v589, %v589
  %v650 = vmul.f32 %v590, %v590
  %v651 = vadd.f32 %v627, %v628
  %v652 = vadd.f32 %v651, %v629
  %v653 = vadd.f32 %v652, %v630
  %v654 = vadd.f32 %v653, %v631
  %v655 = vadd.f32 %v654, %v632
  %656 = vadd.xlane.f32.xlu0 %v655
  %v657 = vpop.xlane.xlu0 %656
  %v658 = vadd.f32 %v633, %v634
  %v659 = vadd.f32 %v658, %v635
  %v660 = vadd.f32 %v659, %v636
  %v661 = vadd.f32 %v660, %v637
  %v662 = vadd.f32 %v661, %v638
  %663 = vadd.xlane.f32.xlu0 %v662
  %v664 = vpop.xlane.xlu0 %663
  %v665 = vadd.f32 %v639, %v640
  %v666 = vadd.f32 %v665, %v641
  %v667 = vadd.f32 %v666, %v642
  %v668 = vadd.f32 %v667, %v643
  %v669 = vadd.f32 %v668, %v644
  %670 = vadd.xlane.f32.xlu0 %v669
  %v671 = vpop.xlane.xlu0 %670
  %v672 = vadd.f32 %v645, %v646
  %v673 = vadd.f32 %v672, %v647
  %v674 = vadd.f32 %v673, %v648
  %v675 = vadd.f32 %v674, %v649
  %v676 = vadd.f32 %v675, %v650
  %677 = vadd.xlane.f32.xlu0 %v676
  %v678 = vpop.xlane.xlu0 %677
  %v679 = vmul.f32 %v605, 0.001953125
  %v680 = vmul.f32 %v612, 0.001953125
  %v681 = vmul.f32 %v619, 0.001953125
  %v682 = vmul.f32 %v626, 0.001953125
  %v683 = vmul.f32 %v657, 0.001953125
  %v684 = vmul.f32 %v664, 0.001953125
  %v685 = vmul.f32 %v671, 0.001953125
  %v686 = vmul.f32 %v678, 0.001953125
  %v687 = vmul.f32 %v679, %v679
  %v688 = vmul.f32 %v680, %v680
  %v689 = vmul.f32 %v681, %v681
  %v690 = vmul.f32 %v682, %v682
  %v691 = vsub.f32 %v683, %v687
  %v692 = vsub.f32 %v684, %v688
  %v693 = vsub.f32 %v685, %v689
  %v694 = vsub.f32 %v686, %v690
  %v695 = vadd.f32 %v691, 1e-05
  %v696 = vadd.f32 %v692, 1e-05
  %v697 = vadd.f32 %v693, 1e-05
  %v698 = vadd.f32 %v694, 1e-05
  %v699 = vrsqrt.pop %v695
  %v700 = vmul.f32 %v699, %v695
  %v701 = vmul.f32 %v700, %v699
  %v702 = vmul.f32 0.5, %v701
  %v703 = vsub.f32 1.5, %v702
  %v704 = vmul.f32 %v699, %v703
  %vm705 = vweird.f32 %v695
  %vm706 = vweird.f32 %v699
  %vm707 = vmor %vm705, %vm706
  %v708 = vsel %vm707, %v699, %v704
  %v709 = vrsqrt.pop %v696
  %v710 = vmul.f32 %v709, %v696
  %v711 = vmul.f32 %v710, %v709
  %v712 = vmul.f32 0.5, %v711
  %v713 = vsub.f32 1.5, %v712
  %v714 = vmul.f32 %v709, %v713
  %vm715 = vweird.f32 %v696
  %vm716 = vweird.f32 %v709
  %vm717 = vmor %vm715, %vm716
  %v718 = vsel %vm717, %v709, %v714
  %v719 = vrsqrt.pop %v697
  %v720 = vmul.f32 %v719, %v697
  %v721 = vmul.f32 %v720, %v719
  %v722 = vmul.f32 0.5, %v721
  %v723 = vsub.f32 1.5, %v722
  %v724 = vmul.f32 %v719, %v723
  %vm725 = vweird.f32 %v697
  %vm726 = vweird.f32 %v719
  %vm727 = vmor %vm725, %vm726
  %v728 = vsel %vm727, %v719, %v724
  %v729 = vrsqrt.pop %v698
  %v730 = vmul.f32 %v729, %v698
  %v731 = vmul.f32 %v730, %v729
  %v732 = vmul.f32 0.5, %v731
  %v733 = vsub.f32 1.5, %v732
  %v734 = vmul.f32 %v729, %v733
  %vm735 = vweird.f32 %v698
  %vm736 = vweird.f32 %v729
  %vm737 = vmor %vm735, %vm736
  %v738 = vsel %vm737, %v729, %v734
  %v739 = vmul.f32 %v591, %v708
  %v740 = vmul.f32 %v592, %v718
  %v741 = vmul.f32 %v593, %v728
  %v742 = vmul.f32 %v594, %v738
  %v743 = vmul.f32 %v679, %v739
  %v744 = vmul.f32 %v680, %v740
  %v745 = vmul.f32 %v681, %v741
  %v746 = vmul.f32 %v682, %v742
  %v747 = vsub.f32 %v595, %v743
  %v748 = vsub.f32 %v596, %v744
  %v749 = vsub.f32 %v597, %v745
  %v750 = vsub.f32 %v598, %v746
  %752 = vset.pattern.permute.xlu0 0
  %753 = vperm.xlu0 %752, %v739
  %v754 = vpop.permute.xlu0 %753
  %757 = vset.pattern.permute.xlu0 0
  %758 = vperm.xlu0 %757, %v740
  %v759 = vpop.permute.xlu0 %758
  %762 = vset.pattern.permute.xlu0 0
  %763 = vperm.xlu0 %762, %v741
  %v764 = vpop.permute.xlu0 %763
  %767 = vset.pattern.permute.xlu0 0
  %768 = vperm.xlu0 %767, %v742
  %v769 = vpop.permute.xlu0 %768
  %v771 = vmul.f32 %v567, %v754
  %v772 = vmul.f32 %v568, %v754
  %v773 = vmul.f32 %v569, %v754
  %v774 = vmul.f32 %v570, %v754
  %v775 = vmul.f32 %v571, %v754
  %v776 = vmul.f32 %v572, %v754
  %v777 = vmul.f32 %v573, %v759
  %v778 = vmul.f32 %v574, %v759
  %v779 = vmul.f32 %v575, %v759
  %v780 = vmul.f32 %v576, %v759
  %v781 = vmul.f32 %v577, %v759
  %v782 = vmul.f32 %v578, %v759
  %v783 = vmul.f32 %v579, %v764
  %v784 = vmul.f32 %v580, %v764
  %v785 = vmul.f32 %v581, %v764
  %v786 = vmul.f32 %v582, %v764
  %v787 = vmul.f32 %v583, %v764
  %v788 = vmul.f32 %v584, %v764
  %v789 = vmul.f32 %v585, %v769
  %v790 = vmul.f32 %v586, %v769
  %v791 = vmul.f32 %v587, %v769
  %v792 = vmul.f32 %v588, %v769
  %v793 = vmul.f32 %v589, %v769
  %v794 = vmul.f32 %v590, %v769
  %796 = vset.pattern.permute.xlu0 0
  %797 = vperm.xlu0 %796, %v747
  %v798 = vpop.permute.xlu0 %797
  %801 = vset.pattern.permute.xlu0 0
  %802 = vperm.xlu0 %801, %v748
  %v803 = vpop.permute.xlu0 %802
  %806 = vset.pattern.permute.xlu0 0
  %807 = vperm.xlu0 %806, %v749
  %v808 = vpop.permute.xlu0 %807
  %811 = vset.pattern.permute.xlu0 0
  %812 = vperm.xlu0 %811, %v750
  %v813 = vpop.permute.xlu0 %812
  %v815 = vadd.f32 %v771, %v798
  %v816 = vadd.f32 %v772, %v798
  %v817 = vadd.f32 %v773, %v798
  %v818 = vadd.f32 %v774, %v798
  %v819 = vadd.f32 %v775, %v798
  %v820 = vadd.f32 %v776, %v798
  %v821 = vadd.f32 %v777, %v803
  %v822 = vadd.f32 %v778, %v803
  %v823 = vadd.f32 %v779, %v803
  %v824 = vadd.f32 %v780, %v803
  %v825 = vadd.f32 %v781, %v803
  %v826 = vadd.f32 %v782, %v803
  %v827 = vadd.f32 %v783, %v808
  %v828 = vadd.f32 %v784, %v808
  %v829 = vadd.f32 %v785, %v808
  %v830 = vadd.f32 %v786, %v808
  %v831 = vadd.f32 %v787, %v808
  %v832 = vadd.f32 %v788, %v808
  %v833 = vadd.f32 %v789, %v813
  %v834 = vadd.f32 %v790, %v813
  %v835 = vadd.f32 %v791, %v813
  %v836 = vadd.f32 %v792, %v813
  %v837 = vadd.f32 %v793, %v813
  %v838 = vadd.f32 %v794, %v813
  %v839 = vmax.f32 %v815, 0.0
  %v840 = vmax.f32 %v816, 0.0
  %v841 = vmax.f32 %v817, 0.0
  %v842 = vmax.f32 %v818, 0.0
  %v843 = vmax.f32 %v819, 0.0
  %v844 = vmax.f32 %v820, 0.0
  %v845 = vmax.f32 %v821, 0.0
  %v846 = vmax.f32 %v822, 0.0
  %v847 = vmax.f32 %v823, 0.0
  %v848 = vmax.f32 %v824, 0.0
  %v849 = vmax.f32 %v825, 0.0
  %v850 = vmax.f32 %v826, 0.0
  %v851 = vmax.f32 %v827, 0.0
  %v852 = vmax.f32 %v828, 0.0
  %v853 = vmax.f32 %v829, 0.0
  %v854 = vmax.f32 %v830, 0.0
  %v855 = vmax.f32 %v831, 0.0
  %v856 = vmax.f32 %v832, 0.0
  %v857 = vmax.f32 %v833, 0.0
  %v858 = vmax.f32 %v834, 0.0
  %v859 = vmax.f32 %v835, 0.0
  %v860 = vmax.f32 %v836, 0.0
  %v861 = vmax.f32 %v837, 0.0
  %v862 = vmax.f32 %v838, 0.0
  %v863 = vmin.f32 %v839, 6.0
  %v864 = vmin.f32 %v840, 6.0
  %v865 = vmin.f32 %v841, 6.0
  %v866 = vmin.f32 %v842, 6.0
  %v867 = vmin.f32 %v843, 6.0
  %v868 = vmin.f32 %v844, 6.0
  %v869 = vmin.f32 %v845, 6.0
  %v870 = vmin.f32 %v846, 6.0
  %v871 = vmin.f32 %v847, 6.0
  %v872 = vmin.f32 %v848, 6.0
  %v873 = vmin.f32 %v849, 6.0
  %v874 = vmin.f32 %v850, 6.0
  %v875 = vmin.f32 %v851, 6.0
  %v876 = vmin.f32 %v852, 6.0
  %v877 = vmin.f32 %v853, 6.0
  %v878 = vmin.f32 %v854, 6.0
  %v879 = vmin.f32 %v855, 6.0
  %v880 = vmin.f32 %v856, 6.0
  %v881 = vmin.f32 %v857, 6.0
  %v882 = vmin.f32 %v858, 6.0
  %v883 = vmin.f32 %v859, 6.0
  %v884 = vmin.f32 %v860, 6.0
  %v885 = vmin.f32 %v861, 6.0
  %v886 = vmin.f32 %v862, 6.0
  %v887 = vld [vmem:[%s1] sm:$0x3f]
  %v889 = vperm.slane %v887, 0
  %v890 = vperm.slane %v887, 1
  %v891 = vperm.slane %v887, 2
  %v892 = vperm.slane %v887, 3
  %v893 = vperm.slane %v887, 4
  %v894 = vperm.slane %v887, 5
  %v901 = vmul.f32 %v863, %v889
  %v902 = vmul.f32 %v864, %v890
  %v903 = vmul.f32 %v865, %v891
  %v904 = vmul.f32 %v866, %v892
  %v905 = vmul.f32 %v867, %v893
  %v906 = vmul.f32 %v868, %v894
  %v907 = vmul.f32 %v869, %v889
  %v908 = vmul.f32 %v870, %v890
  %v909 = vmul.f32 %v871, %v891
  %v910 = vmul.f32 %v872, %v892
  %v911 = vmul.f32 %v873, %v893
  %v912 = vmul.f32 %v874, %v894
  %v913 = vmul.f32 %v875, %v889
  %v914 = vmul.f32 %v876, %v890
  %v915 = vmul.f32 %v877, %v891
  %v916 = vmul.f32 %v878, %v892
  %v917 = vmul.f32 %v879, %v893
  %v918 = vmul.f32 %v880, %v894
  %v919 = vmul.f32 %v881, %v889
  %v920 = vmul.f32 %v882, %v890
  %v921 = vmul.f32 %v883, %v891
  %v922 = vmul.f32 %v884, %v892
  %v923 = vmul.f32 %v885, %v893
  %v924 = vmul.f32 %v886, %v894
  %v925 = vld [vmem:[%s6] sm:$0xff]
  %v926 = vld [vmem:[%s6 + $0x8] sm:$0xff]
  %v927 = vld [vmem:[%s6 + $0x10] sm:$0xff]
  %v928 = vld [vmem:[%s6 + $0x18] sm:$0xff]
  %929 = vrot.lane.b32.xlu0 %v901, 19
  %v930 = vpop.permute.xlu0 %929
  %931 = vrot.lane.b32.xlu0 %v907, 19
  %v932 = vpop.permute.xlu0 %931
  %933 = vrot.lane.b32.xlu0 %v913, 19
  %v934 = vpop.permute.xlu0 %933
  %935 = vrot.lane.b32.xlu0 %v919, 19
  %v936 = vpop.permute.xlu0 %935
  %937 = vrot.lane.b32.xlu0 %v902, 19
  %v938 = vpop.permute.xlu0 %937
  %939 = vrot.lane.b32.xlu0 %v908, 19
  %v940 = vpop.permute.xlu0 %939
  %941 = vrot.lane.b32.xlu0 %v914, 19
  %v942 = vpop.permute.xlu0 %941
  %943 = vrot.lane.b32.xlu0 %v920, 19
  %v944 = vpop.permute.xlu0 %943
  %945 = vrot.lane.b32.xlu0 %v903, 19
  %v946 = vpop.permute.xlu0 %945
  %947 = vrot.lane.b32.xlu0 %v909, 19
  %v948 = vpop.permute.xlu0 %947
  %949 = vrot.lane.b32.xlu0 %v915, 19
  %v950 = vpop.permute.xlu0 %949
  %951 = vrot.lane.b32.xlu0 %v921, 19
  %v952 = vpop.permute.xlu0 %951
  %953 = vrot.lane.b32.xlu0 %v904, 19
  %v954 = vpop.permute.xlu0 %953
  %955 = vrot.lane.b32.xlu0 %v910, 19
  %v956 = vpop.permute.xlu0 %955
  %957 = vrot.lane.b32.xlu0 %v916, 19
  %v958 = vpop.permute.xlu0 %957
  %959 = vrot.lane.b32.xlu0 %v922, 19
  %v960 = vpop.permute.xlu0 %959
  %961 = vrot.lane.b32.xlu0 %v905, 19
  %v962 = vpop.permute.xlu0 %961
  %963 = vrot.lane.b32.xlu0 %v911, 19
  %v964 = vpop.permute.xlu0 %963
  %965 = vrot.lane.b32.xlu0 %v917, 19
  %v966 = vpop.permute.xlu0 %965
  %967 = vrot.lane.b32.xlu0 %v923, 19
  %v968 = vpop.permute.xlu0 %967
  %969 = vrot.lane.b32.xlu0 %v906, 19
  %v970 = vpop.permute.xlu0 %969
  %971 = vrot.lane.b32.xlu0 %v912, 19
  %v972 = vpop.permute.xlu0 %971
  %973 = vrot.lane.b32.xlu0 %v918, 19
  %v974 = vpop.permute.xlu0 %973
  %975 = vrot.lane.b32.xlu0 %v924, 19
  %v976 = vpop.permute.xlu0 %975
  %v977 = vlaneseq
  %v978 = vand.u32 %v977, 127
  %vm979 = vcmp.lt.s32.totalorder %v978, 19
  %v980 = vsel %vm979, %v962, %v970
  %v981 = vsel %vm979, %v964, %v972
  %v982 = vsel %vm979, %v966, %v974
  %v983 = vsel %vm979, %v968, %v976
  %v984 = vsel %vm979, %v954, %v962
  %v985 = vsel %vm979, %v956, %v964
  %v986 = vsel %vm979, %v958, %v966
  %v987 = vsel %vm979, %v960, %v968
  %v988 = vsel %vm979, %v946, %v954
  %v989 = vsel %vm979, %v948, %v956
  %v990 = vsel %vm979, %v950, %v958
  %v991 = vsel %vm979, %v952, %v960
  %v992 = vsel %vm979, %v938, %v946
  %v993 = vsel %vm979, %v940, %v948
  %v994 = vsel %vm979, %v942, %v950
  %v995 = vsel %vm979, %v944, %v952
  %v996 = vsel %vm979, %v930, %v938
  %v997 = vsel %vm979, %v932, %v940
  %v998 = vsel %vm979, %v934, %v942
  %v999 = vsel %vm979, %v936, %v944
  %v1000 = vsel %vm979, %v970, %v930
  %v1001 = vsel %vm979, %v972, %v932
  %v1002 = vsel %vm979, %v974, %v934
  %v1003 = vsel %vm979, %v976, %v936
  %1005 = vset.pattern.permute.xlu0 0
  %1006 = vperm.xlu0 %1005, %v925
  %v1007 = vpop.permute.xlu0 %1006
  %1010 = vset.pattern.permute.xlu0 0
  %1011 = vperm.xlu0 %1010, %v926
  %v1012 = vpop.permute.xlu0 %1011
  %1015 = vset.pattern.permute.xlu0 0
  %1016 = vperm.xlu0 %1015, %v927
  %v1017 = vpop.permute.xlu0 %1016
  %1020 = vset.pattern.permute.xlu0 0
  %1021 = vperm.xlu0 %1020, %v928
  %v1022 = vpop.permute.xlu0 %1021
  %v1024 = vmul.f32 %v1000, %v1007
  %v1025 = vmul.f32 %v996, %v1007
  %v1026 = vmul.f32 %v992, %v1007
  %v1027 = vmul.f32 %v988, %v1007
  %v1028 = vmul.f32 %v984, %v1007
  %v1029 = vmul.f32 %v980, %v1007
  %v1030 = vmul.f32 %v1001, %v1012
  %v1031 = vmul.f32 %v997, %v1012
  %v1032 = vmul.f32 %v993, %v1012
  %v1033 = vmul.f32 %v989, %v1012
  %v1034 = vmul.f32 %v985, %v1012
  %v1035 = vmul.f32 %v981, %v1012
  %v1036 = vmul.f32 %v1002, %v1017
  %v1037 = vmul.f32 %v998, %v1017
  %v1038 = vmul.f32 %v994, %v1017
  %v1039 = vmul.f32 %v990, %v1017
  %v1040 = vmul.f32 %v986, %v1017
  %v1041 = vmul.f32 %v982, %v1017
  %v1042 = vmul.f32 %v1003, %v1022
  %v1043 = vmul.f32 %v999, %v1022
  %v1044 = vmul.f32 %v995, %v1022
  %v1045 = vmul.f32 %v991, %v1022
  %v1046 = vmul.f32 %v987, %v1022
  %v1047 = vmul.f32 %v983, %v1022
  %1048 = vrot.lane.b32.xlu0 %v901, 18
  %v1049 = vpop.permute.xlu0 %1048
  %1050 = vrot.lane.b32.xlu0 %v907, 18
  %v1051 = vpop.permute.xlu0 %1050
  %1052 = vrot.lane.b32.xlu0 %v913, 18
  %v1053 = vpop.permute.xlu0 %1052
  %1054 = vrot.lane.b32.xlu0 %v919, 18
  %v1055 = vpop.permute.xlu0 %1054
  %1056 = vrot.lane.b32.xlu0 %v902, 18
  %v1057 = vpop.permute.xlu0 %1056
  %1058 = vrot.lane.b32.xlu0 %v908, 18
  %v1059 = vpop.permute.xlu0 %1058
  %1060 = vrot.lane.b32.xlu0 %v914, 18
  %v1061 = vpop.permute.xlu0 %1060
  %1062 = vrot.lane.b32.xlu0 %v920, 18
  %v1063 = vpop.permute.xlu0 %1062
  %1064 = vrot.lane.b32.xlu0 %v903, 18
  %v1065 = vpop.permute.xlu0 %1064
  %1066 = vrot.lane.b32.xlu0 %v909, 18
  %v1067 = vpop.permute.xlu0 %1066
  %1068 = vrot.lane.b32.xlu0 %v915, 18
  %v1069 = vpop.permute.xlu0 %1068
  %1070 = vrot.lane.b32.xlu0 %v921, 18
  %v1071 = vpop.permute.xlu0 %1070
  %1072 = vrot.lane.b32.xlu0 %v904, 18
  %v1073 = vpop.permute.xlu0 %1072
  %1074 = vrot.lane.b32.xlu0 %v910, 18
  %v1075 = vpop.permute.xlu0 %1074
  %1076 = vrot.lane.b32.xlu0 %v916, 18
  %v1077 = vpop.permute.xlu0 %1076
  %1078 = vrot.lane.b32.xlu0 %v922, 18
  %v1079 = vpop.permute.xlu0 %1078
  %1080 = vrot.lane.b32.xlu0 %v905, 18
  %v1081 = vpop.permute.xlu0 %1080
  %1082 = vrot.lane.b32.xlu0 %v911, 18
  %v1083 = vpop.permute.xlu0 %1082
  %1084 = vrot.lane.b32.xlu0 %v917, 18
  %v1085 = vpop.permute.xlu0 %1084
  %1086 = vrot.lane.b32.xlu0 %v923, 18
  %v1087 = vpop.permute.xlu0 %1086
  %1088 = vrot.lane.b32.xlu0 %v906, 18
  %v1089 = vpop.permute.xlu0 %1088
  %1090 = vrot.lane.b32.xlu0 %v912, 18
  %v1091 = vpop.permute.xlu0 %1090
  %1092 = vrot.lane.b32.xlu0 %v918, 18
  %v1093 = vpop.permute.xlu0 %1092
  %1094 = vrot.lane.b32.xlu0 %v924, 18
  %v1095 = vpop.permute.xlu0 %1094
  %vm1096 = vcmp.lt.s32.totalorder %v978, 18
  %v1097 = vsel %vm1096, %v1081, %v1089
  %v1098 = vsel %vm1096, %v1083, %v1091
  %v1099 = vsel %vm1096, %v1085, %v1093
  %v1100 = vsel %vm1096, %v1087, %v1095
  %v1101 = vsel %vm1096, %v1073, %v1081
  %v1102 = vsel %vm1096, %v1075, %v1083
  %v1103 = vsel %vm1096, %v1077, %v1085
  %v1104 = vsel %vm1096, %v1079, %v1087
  %v1105 = vsel %vm1096, %v1065, %v1073
  %v1106 = vsel %vm1096, %v1067, %v1075
  %v1107 = vsel %vm1096, %v1069, %v1077
  %v1108 = vsel %vm1096, %v1071, %v1079
  %v1109 = vsel %vm1096, %v1057, %v1065
  %v1110 = vsel %vm1096, %v1059, %v1067
  %v1111 = vsel %vm1096, %v1061, %v1069
  %v1112 = vsel %vm1096, %v1063, %v1071
  %v1113 = vsel %vm1096, %v1049, %v1057
  %v1114 = vsel %vm1096, %v1051, %v1059
  %v1115 = vsel %vm1096, %v1053, %v1061
  %v1116 = vsel %vm1096, %v1055, %v1063
  %v1117 = vsel %vm1096, %v1089, %v1049
  %v1118 = vsel %vm1096, %v1091, %v1051
  %v1119 = vsel %vm1096, %v1093, %v1053
  %v1120 = vsel %vm1096, %v1095, %v1055
  %1121 = vset.pattern.permute.xlu0 1
  %1122 = vperm.xlu0 %1121, %v925
  %v1123 = vpop.permute.xlu0 %1122
  %1125 = vset.pattern.permute.xlu0 1
  %1126 = vperm.xlu0 %1125, %v926
  %v1127 = vpop.permute.xlu0 %1126
  %1129 = vset.pattern.permute.xlu0 1
  %1130 = vperm.xlu0 %1129, %v927
  %v1131 = vpop.permute.xlu0 %1130
  %1133 = vset.pattern.permute.xlu0 1
  %1134 = vperm.xlu0 %1133, %v928
  %v1135 = vpop.permute.xlu0 %1134
  %v1137 = vmul.f32 %v1117, %v1123
  %v1138 = vmul.f32 %v1113, %v1123
  %v1139 = vmul.f32 %v1109, %v1123
  %v1140 = vmul.f32 %v1105, %v1123
  %v1141 = vmul.f32 %v1101, %v1123
  %v1142 = vmul.f32 %v1097, %v1123
  %v1143 = vmul.f32 %v1118, %v1127
  %v1144 = vmul.f32 %v1114, %v1127
  %v1145 = vmul.f32 %v1110, %v1127
  %v1146 = vmul.f32 %v1106, %v1127
  %v1147 = vmul.f32 %v1102, %v1127
  %v1148 = vmul.f32 %v1098, %v1127
  %v1149 = vmul.f32 %v1119, %v1131
  %v1150 = vmul.f32 %v1115, %v1131
  %v1151 = vmul.f32 %v1111, %v1131
  %v1152 = vmul.f32 %v1107, %v1131
  %v1153 = vmul.f32 %v1103, %v1131
  %v1154 = vmul.f32 %v1099, %v1131
  %v1155 = vmul.f32 %v1120, %v1135
  %v1156 = vmul.f32 %v1116, %v1135
  %v1157 = vmul.f32 %v1112, %v1135
  %v1158 = vmul.f32 %v1108, %v1135
  %v1159 = vmul.f32 %v1104, %v1135
  %v1160 = vmul.f32 %v1100, %v1135
  %v1161 = vadd.f32 %v1024, %v1137
  %v1162 = vadd.f32 %v1025, %v1138
  %v1163 = vadd.f32 %v1026, %v1139
  %v1164 = vadd.f32 %v1027, %v1140
  %v1165 = vadd.f32 %v1028, %v1141
  %v1166 = vadd.f32 %v1029, %v1142
  %v1167 = vadd.f32 %v1030, %v1143
  %v1168 = vadd.f32 %v1031, %v1144
  %v1169 = vadd.f32 %v1032, %v1145
  %v1170 = vadd.f32 %v1033, %v1146
  %v1171 = vadd.f32 %v1034, %v1147
  %v1172 = vadd.f32 %v1035, %v1148
  %v1173 = vadd.f32 %v1036, %v1149
  %v1174 = vadd.f32 %v1037, %v1150
  %v1175 = vadd.f32 %v1038, %v1151
  %v1176 = vadd.f32 %v1039, %v1152
  %v1177 = vadd.f32 %v1040, %v1153
  %v1178 = vadd.f32 %v1041, %v1154
  %v1179 = vadd.f32 %v1042, %v1155
  %v1180 = vadd.f32 %v1043, %v1156
  %v1181 = vadd.f32 %v1044, %v1157
  %v1182 = vadd.f32 %v1045, %v1158
  %v1183 = vadd.f32 %v1046, %v1159
  %v1184 = vadd.f32 %v1047, %v1160
  %1185 = vrot.lane.b32.xlu0 %v901, 17
  %v1186 = vpop.permute.xlu0 %1185
  %1187 = vrot.lane.b32.xlu0 %v907, 17
  %v1188 = vpop.permute.xlu0 %1187
  %1189 = vrot.lane.b32.xlu0 %v913, 17
  %v1190 = vpop.permute.xlu0 %1189
  %1191 = vrot.lane.b32.xlu0 %v919, 17
  %v1192 = vpop.permute.xlu0 %1191
  %1193 = vrot.lane.b32.xlu0 %v902, 17
  %v1194 = vpop.permute.xlu0 %1193
  %1195 = vrot.lane.b32.xlu0 %v908, 17
  %v1196 = vpop.permute.xlu0 %1195
  %1197 = vrot.lane.b32.xlu0 %v914, 17
  %v1198 = vpop.permute.xlu0 %1197
  %1199 = vrot.lane.b32.xlu0 %v920, 17
  %v1200 = vpop.permute.xlu0 %1199
  %1201 = vrot.lane.b32.xlu0 %v903, 17
  %v1202 = vpop.permute.xlu0 %1201
  %1203 = vrot.lane.b32.xlu0 %v909, 17
  %v1204 = vpop.permute.xlu0 %1203
  %1205 = vrot.lane.b32.xlu0 %v915, 17
  %v1206 = vpop.permute.xlu0 %1205
  %1207 = vrot.lane.b32.xlu0 %v921, 17
  %v1208 = vpop.permute.xlu0 %1207
  %1209 = vrot.lane.b32.xlu0 %v904, 17
  %v1210 = vpop.permute.xlu0 %1209
  %1211 = vrot.lane.b32.xlu0 %v910, 17
  %v1212 = vpop.permute.xlu0 %1211
  %1213 = vrot.lane.b32.xlu0 %v916, 17
  %v1214 = vpop.permute.xlu0 %1213
  %1215 = vrot.lane.b32.xlu0 %v922, 17
  %v1216 = vpop.permute.xlu0 %1215
  %1217 = vrot.lane.b32.xlu0 %v905, 17
  %v1218 = vpop.permute.xlu0 %1217
  %1219 = vrot.lane.b32.xlu0 %v911, 17
  %v1220 = vpop.permute.xlu0 %1219
  %1221 = vrot.lane.b32.xlu0 %v917, 17
  %v1222 = vpop.permute.xlu0 %1221
  %1223 = vrot.lane.b32.xlu0 %v923, 17
  %v1224 = vpop.permute.xlu0 %1223
  %1225 = vrot.lane.b32.xlu0 %v906, 17
  %v1226 = vpop.permute.xlu0 %1225
  %1227 = vrot.lane.b32.xlu0 %v912, 17
  %v1228 = vpop.permute.xlu0 %1227
  %1229 = vrot.lane.b32.xlu0 %v918, 17
  %v1230 = vpop.permute.xlu0 %1229
  %1231 = vrot.lane.b32.xlu0 %v924, 17
  %v1232 = vpop.permute.xlu0 %1231
  %vm1233 = vcmp.lt.s32.totalorder %v978, 17
  %v1234 = vsel %vm1233, %v1218, %v1226
  %v1235 = vsel %vm1233, %v1220, %v1228
  %v1236 = vsel %vm1233, %v1222, %v1230
  %v1237 = vsel %vm1233, %v1224, %v1232
  %v1238 = vsel %vm1233, %v1210, %v1218
  %v1239 = vsel %vm1233, %v1212, %v1220
  %v1240 = vsel %vm1233, %v1214, %v1222
  %v1241 = vsel %vm1233, %v1216, %v1224
  %v1242 = vsel %vm1233, %v1202, %v1210
  %v1243 = vsel %vm1233, %v1204, %v1212
  %v1244 = vsel %vm1233, %v1206, %v1214
  %v1245 = vsel %vm1233, %v1208, %v1216
  %v1246 = vsel %vm1233, %v1194, %v1202
  %v1247 = vsel %vm1233, %v1196, %v1204
  %v1248 = vsel %vm1233, %v1198, %v1206
  %v1249 = vsel %vm1233, %v1200, %v1208
  %v1250 = vsel %vm1233, %v1186, %v1194
  %v1251 = vsel %vm1233, %v1188, %v1196
  %v1252 = vsel %vm1233, %v1190, %v1198
  %v1253 = vsel %vm1233, %v1192, %v1200
  %v1254 = vsel %vm1233, %v1226, %v1186
  %v1255 = vsel %vm1233, %v1228, %v1188
  %v1256 = vsel %vm1233, %v1230, %v1190
  %v1257 = vsel %vm1233, %v1232, %v1192
  %1258 = vset.pattern.permute.xlu0 2
  %1259 = vperm.xlu0 %1258, %v925
  %v1260 = vpop.permute.xlu0 %1259
  %1262 = vset.pattern.permute.xlu0 2
  %1263 = vperm.xlu0 %1262, %v926
  %v1264 = vpop.permute.xlu0 %1263
  %1266 = vset.pattern.permute.xlu0 2
  %1267 = vperm.xlu0 %1266, %v927
  %v1268 = vpop.permute.xlu0 %1267
  %1270 = vset.pattern.permute.xlu0 2
  %1271 = vperm.xlu0 %1270, %v928
  %v1272 = vpop.permute.xlu0 %1271
  %v1274 = vmul.f32 %v1254, %v1260
  %v1275 = vmul.f32 %v1250, %v1260
  %v1276 = vmul.f32 %v1246, %v1260
  %v1277 = vmul.f32 %v1242, %v1260
  %v1278 = vmul.f32 %v1238, %v1260
  %v1279 = vmul.f32 %v1234, %v1260
  %v1280 = vmul.f32 %v1255, %v1264
  %v1281 = vmul.f32 %v1251, %v1264
  %v1282 = vmul.f32 %v1247, %v1264
  %v1283 = vmul.f32 %v1243, %v1264
  %v1284 = vmul.f32 %v1239, %v1264
  %v1285 = vmul.f32 %v1235, %v1264
  %v1286 = vmul.f32 %v1256, %v1268
  %v1287 = vmul.f32 %v1252, %v1268
  %v1288 = vmul.f32 %v1248, %v1268
  %v1289 = vmul.f32 %v1244, %v1268
  %v1290 = vmul.f32 %v1240, %v1268
  %v1291 = vmul.f32 %v1236, %v1268
  %v1292 = vmul.f32 %v1257, %v1272
  %v1293 = vmul.f32 %v1253, %v1272
  %v1294 = vmul.f32 %v1249, %v1272
  %v1295 = vmul.f32 %v1245, %v1272
  %v1296 = vmul.f32 %v1241, %v1272
  %v1297 = vmul.f32 %v1237, %v1272
  %v1298 = vadd.f32 %v1161, %v1274
  %v1299 = vadd.f32 %v1162, %v1275
  %v1300 = vadd.f32 %v1163, %v1276
  %v1301 = vadd.f32 %v1164, %v1277
  %v1302 = vadd.f32 %v1165, %v1278
  %v1303 = vadd.f32 %v1166, %v1279
  %v1304 = vadd.f32 %v1167, %v1280
  %v1305 = vadd.f32 %v1168, %v1281
  %v1306 = vadd.f32 %v1169, %v1282
  %v1307 = vadd.f32 %v1170, %v1283
  %v1308 = vadd.f32 %v1171, %v1284
  %v1309 = vadd.f32 %v1172, %v1285
  %v1310 = vadd.f32 %v1173, %v1286
  %v1311 = vadd.f32 %v1174, %v1287
  %v1312 = vadd.f32 %v1175, %v1288
  %v1313 = vadd.f32 %v1176, %v1289
  %v1314 = vadd.f32 %v1177, %v1290
  %v1315 = vadd.f32 %v1178, %v1291
  %v1316 = vadd.f32 %v1179, %v1292
  %v1317 = vadd.f32 %v1180, %v1293
  %v1318 = vadd.f32 %v1181, %v1294
  %v1319 = vadd.f32 %v1182, %v1295
  %v1320 = vadd.f32 %v1183, %v1296
  %v1321 = vadd.f32 %v1184, %v1297
  %1322 = vrot.lane.b32.xlu0 %v901, 1
  %v1323 = vpop.permute.xlu0 %1322
  %1324 = vrot.lane.b32.xlu0 %v907, 1
  %v1325 = vpop.permute.xlu0 %1324
  %1326 = vrot.lane.b32.xlu0 %v913, 1
  %v1327 = vpop.permute.xlu0 %1326
  %1328 = vrot.lane.b32.xlu0 %v919, 1
  %v1329 = vpop.permute.xlu0 %1328
  %1330 = vrot.lane.b32.xlu0 %v902, 1
  %v1331 = vpop.permute.xlu0 %1330
  %1332 = vrot.lane.b32.xlu0 %v908, 1
  %v1333 = vpop.permute.xlu0 %1332
  %1334 = vrot.lane.b32.xlu0 %v914, 1
  %v1335 = vpop.permute.xlu0 %1334
  %1336 = vrot.lane.b32.xlu0 %v920, 1
  %v1337 = vpop.permute.xlu0 %1336
  %1338 = vrot.lane.b32.xlu0 %v903, 1
  %v1339 = vpop.permute.xlu0 %1338
  %1340 = vrot.lane.b32.xlu0 %v909, 1
  %v1341 = vpop.permute.xlu0 %1340
  %1342 = vrot.lane.b32.xlu0 %v915, 1
  %v1343 = vpop.permute.xlu0 %1342
  %1344 = vrot.lane.b32.xlu0 %v921, 1
  %v1345 = vpop.permute.xlu0 %1344
  %1346 = vrot.lane.b32.xlu0 %v904, 1
  %v1347 = vpop.permute.xlu0 %1346
  %1348 = vrot.lane.b32.xlu0 %v910, 1
  %v1349 = vpop.permute.xlu0 %1348
  %1350 = vrot.lane.b32.xlu0 %v916, 1
  %v1351 = vpop.permute.xlu0 %1350
  %1352 = vrot.lane.b32.xlu0 %v922, 1
  %v1353 = vpop.permute.xlu0 %1352
  %1354 = vrot.lane.b32.xlu0 %v905, 1
  %v1355 = vpop.permute.xlu0 %1354
  %1356 = vrot.lane.b32.xlu0 %v911, 1
  %v1357 = vpop.permute.xlu0 %1356
  %1358 = vrot.lane.b32.xlu0 %v917, 1
  %v1359 = vpop.permute.xlu0 %1358
  %1360 = vrot.lane.b32.xlu0 %v923, 1
  %v1361 = vpop.permute.xlu0 %1360
  %1362 = vrot.lane.b32.xlu0 %v906, 1
  %v1363 = vpop.permute.xlu0 %1362
  %1364 = vrot.lane.b32.xlu0 %v912, 1
  %v1365 = vpop.permute.xlu0 %1364
  %1366 = vrot.lane.b32.xlu0 %v918, 1
  %v1367 = vpop.permute.xlu0 %1366
  %1368 = vrot.lane.b32.xlu0 %v924, 1
  %v1369 = vpop.permute.xlu0 %1368
  %vm1370 = vcmp.lt.s32.totalorder %v978, 1
  %v1371 = vsel %vm1370, %v1355, %v1363
  %v1372 = vsel %vm1370, %v1357, %v1365
  %v1373 = vsel %vm1370, %v1359, %v1367
  %v1374 = vsel %vm1370, %v1361, %v1369
  %v1375 = vsel %vm1370, %v1347, %v1355
  %v1376 = vsel %vm1370, %v1349, %v1357
  %v1377 = vsel %vm1370, %v1351, %v1359
  %v1378 = vsel %vm1370, %v1353, %v1361
  %v1379 = vsel %vm1370, %v1339, %v1347
  %v1380 = vsel %vm1370, %v1341, %v1349
  %v1381 = vsel %vm1370, %v1343, %v1351
  %v1382 = vsel %vm1370, %v1345, %v1353
  %v1383 = vsel %vm1370, %v1331, %v1339
  %v1384 = vsel %vm1370, %v1333, %v1341
  %v1385 = vsel %vm1370, %v1335, %v1343
  %v1386 = vsel %vm1370, %v1337, %v1345
  %v1387 = vsel %vm1370, %v1323, %v1331
  %v1388 = vsel %vm1370, %v1325, %v1333
  %v1389 = vsel %vm1370, %v1327, %v1335
  %v1390 = vsel %vm1370, %v1329, %v1337
  %v1391 = vsel %vm1370, %v1363, %v1323
  %v1392 = vsel %vm1370, %v1365, %v1325
  %v1393 = vsel %vm1370, %v1367, %v1327
  %v1394 = vsel %vm1370, %v1369, %v1329
  %1395 = vset.pattern.permute.xlu0 3
  %1396 = vperm.xlu0 %1395, %v925
  %v1397 = vpop.permute.xlu0 %1396
  %1399 = vset.pattern.permute.xlu0 3
  %1400 = vperm.xlu0 %1399, %v926
  %v1401 = vpop.permute.xlu0 %1400
  %1403 = vset.pattern.permute.xlu0 3
  %1404 = vperm.xlu0 %1403, %v927
  %v1405 = vpop.permute.xlu0 %1404
  %1407 = vset.pattern.permute.xlu0 3
  %1408 = vperm.xlu0 %1407, %v928
  %v1409 = vpop.permute.xlu0 %1408
  %v1411 = vmul.f32 %v1391, %v1397
  %v1412 = vmul.f32 %v1387, %v1397
  %v1413 = vmul.f32 %v1383, %v1397
  %v1414 = vmul.f32 %v1379, %v1397
  %v1415 = vmul.f32 %v1375, %v1397
  %v1416 = vmul.f32 %v1371, %v1397
  %v1417 = vmul.f32 %v1392, %v1401
  %v1418 = vmul.f32 %v1388, %v1401
  %v1419 = vmul.f32 %v1384, %v1401
  %v1420 = vmul.f32 %v1380, %v1401
  %v1421 = vmul.f32 %v1376, %v1401
  %v1422 = vmul.f32 %v1372, %v1401
  %v1423 = vmul.f32 %v1393, %v1405
  %v1424 = vmul.f32 %v1389, %v1405
  %v1425 = vmul.f32 %v1385, %v1405
  %v1426 = vmul.f32 %v1381, %v1405
  %v1427 = vmul.f32 %v1377, %v1405
  %v1428 = vmul.f32 %v1373, %v1405
  %v1429 = vmul.f32 %v1394, %v1409
  %v1430 = vmul.f32 %v1390, %v1409
  %v1431 = vmul.f32 %v1386, %v1409
  %v1432 = vmul.f32 %v1382, %v1409
  %v1433 = vmul.f32 %v1378, %v1409
  %v1434 = vmul.f32 %v1374, %v1409
  %v1435 = vadd.f32 %v1298, %v1411
  %v1436 = vadd.f32 %v1299, %v1412
  %v1437 = vadd.f32 %v1300, %v1413
  %v1438 = vadd.f32 %v1301, %v1414
  %v1439 = vadd.f32 %v1302, %v1415
  %v1440 = vadd.f32 %v1303, %v1416
  %v1441 = vadd.f32 %v1304, %v1417
  %v1442 = vadd.f32 %v1305, %v1418
  %v1443 = vadd.f32 %v1306, %v1419
  %v1444 = vadd.f32 %v1307, %v1420
  %v1445 = vadd.f32 %v1308, %v1421
  %v1446 = vadd.f32 %v1309, %v1422
  %v1447 = vadd.f32 %v1310, %v1423
  %v1448 = vadd.f32 %v1311, %v1424
  %v1449 = vadd.f32 %v1312, %v1425
  %v1450 = vadd.f32 %v1313, %v1426
  %v1451 = vadd.f32 %v1314, %v1427
  %v1452 = vadd.f32 %v1315, %v1428
  %v1453 = vadd.f32 %v1316, %v1429
  %v1454 = vadd.f32 %v1317, %v1430
  %v1455 = vadd.f32 %v1318, %v1431
  %v1456 = vadd.f32 %v1319, %v1432
  %v1457 = vadd.f32 %v1320, %v1433
  %v1458 = vadd.f32 %v1321, %v1434
  %1459 = vset.pattern.permute.xlu0 4
  %1460 = vperm.xlu0 %1459, %v925
  %v1461 = vpop.permute.xlu0 %1460
  %1463 = vset.pattern.permute.xlu0 4
  %1464 = vperm.xlu0 %1463, %v926
  %v1465 = vpop.permute.xlu0 %1464
  %1467 = vset.pattern.permute.xlu0 4
  %1468 = vperm.xlu0 %1467, %v927
  %v1469 = vpop.permute.xlu0 %1468
  %1471 = vset.pattern.permute.xlu0 4
  %1472 = vperm.xlu0 %1471, %v928
  %v1473 = vpop.permute.xlu0 %1472
  %v1475 = vmul.f32 %v901, %v1461
  %v1476 = vmul.f32 %v902, %v1461
  %v1477 = vmul.f32 %v903, %v1461
  %v1478 = vmul.f32 %v904, %v1461
  %v1479 = vmul.f32 %v905, %v1461
  %v1480 = vmul.f32 %v906, %v1461
  %v1481 = vmul.f32 %v907, %v1465
  %v1482 = vmul.f32 %v908, %v1465
  %v1483 = vmul.f32 %v909, %v1465
  %v1484 = vmul.f32 %v910, %v1465
  %v1485 = vmul.f32 %v911, %v1465
  %v1486 = vmul.f32 %v912, %v1465
  %v1487 = vmul.f32 %v913, %v1469
  %v1488 = vmul.f32 %v914, %v1469
  %v1489 = vmul.f32 %v915, %v1469
  %v1490 = vmul.f32 %v916, %v1469
  %v1491 = vmul.f32 %v917, %v1469
  %v1492 = vmul.f32 %v918, %v1469
  %v1493 = vmul.f32 %v919, %v1473
  %v1494 = vmul.f32 %v920, %v1473
  %v1495 = vmul.f32 %v921, %v1473
  %v1496 = vmul.f32 %v922, %v1473
  %v1497 = vmul.f32 %v923, %v1473
  %v1498 = vmul.f32 %v924, %v1473
  %v1499 = vadd.f32 %v1435, %v1475
  %v1500 = vadd.f32 %v1436, %v1476
  %v1501 = vadd.f32 %v1437, %v1477
  %v1502 = vadd.f32 %v1438, %v1478
  %v1503 = vadd.f32 %v1439, %v1479
  %v1504 = vadd.f32 %v1440, %v1480
  %v1505 = vadd.f32 %v1441, %v1481
  %v1506 = vadd.f32 %v1442, %v1482
  %v1507 = vadd.f32 %v1443, %v1483
  %v1508 = vadd.f32 %v1444, %v1484
  %v1509 = vadd.f32 %v1445, %v1485
  %v1510 = vadd.f32 %v1446, %v1486
  %v1511 = vadd.f32 %v1447, %v1487
  %v1512 = vadd.f32 %v1448, %v1488
  %v1513 = vadd.f32 %v1449, %v1489
  %v1514 = vadd.f32 %v1450, %v1490
  %v1515 = vadd.f32 %v1451, %v1491
  %v1516 = vadd.f32 %v1452, %v1492
  %v1517 = vadd.f32 %v1453, %v1493
  %v1518 = vadd.f32 %v1454, %v1494
  %v1519 = vadd.f32 %v1455, %v1495
  %v1520 = vadd.f32 %v1456, %v1496
  %v1521 = vadd.f32 %v1457, %v1497
  %v1522 = vadd.f32 %v1458, %v1498
  %1523 = vrot.lane.b32.xlu0 %v901, 127
  %v1524 = vpop.permute.xlu0 %1523
  %1525 = vrot.lane.b32.xlu0 %v907, 127
  %v1526 = vpop.permute.xlu0 %1525
  %1527 = vrot.lane.b32.xlu0 %v913, 127
  %v1528 = vpop.permute.xlu0 %1527
  %1529 = vrot.lane.b32.xlu0 %v919, 127
  %v1530 = vpop.permute.xlu0 %1529
  %1531 = vrot.lane.b32.xlu0 %v902, 127
  %v1532 = vpop.permute.xlu0 %1531
  %1533 = vrot.lane.b32.xlu0 %v908, 127
  %v1534 = vpop.permute.xlu0 %1533
  %1535 = vrot.lane.b32.xlu0 %v914, 127
  %v1536 = vpop.permute.xlu0 %1535
  %1537 = vrot.lane.b32.xlu0 %v920, 127
  %v1538 = vpop.permute.xlu0 %1537
  %1539 = vrot.lane.b32.xlu0 %v903, 127
  %v1540 = vpop.permute.xlu0 %1539
  %1541 = vrot.lane.b32.xlu0 %v909, 127
  %v1542 = vpop.permute.xlu0 %1541
  %1543 = vrot.lane.b32.xlu0 %v915, 127
  %v1544 = vpop.permute.xlu0 %1543
  %1545 = vrot.lane.b32.xlu0 %v921, 127
  %v1546 = vpop.permute.xlu0 %1545
  %1547 = vrot.lane.b32.xlu0 %v904, 127
  %v1548 = vpop.permute.xlu0 %1547
  %1549 = vrot.lane.b32.xlu0 %v910, 127
  %v1550 = vpop.permute.xlu0 %1549
  %1551 = vrot.lane.b32.xlu0 %v916, 127
  %v1552 = vpop.permute.xlu0 %1551
  %1553 = vrot.lane.b32.xlu0 %v922, 127
  %v1554 = vpop.permute.xlu0 %1553
  %1555 = vrot.lane.b32.xlu0 %v905, 127
  %v1556 = vpop.permute.xlu0 %1555
  %1557 = vrot.lane.b32.xlu0 %v911, 127
  %v1558 = vpop.permute.xlu0 %1557
  %1559 = vrot.lane.b32.xlu0 %v917, 127
  %v1560 = vpop.permute.xlu0 %1559
  %1561 = vrot.lane.b32.xlu0 %v923, 127
  %v1562 = vpop.permute.xlu0 %1561
  %1563 = vrot.lane.b32.xlu0 %v906, 127
  %v1564 = vpop.permute.xlu0 %1563
  %1565 = vrot.lane.b32.xlu0 %v912, 127
  %v1566 = vpop.permute.xlu0 %1565
  %1567 = vrot.lane.b32.xlu0 %v918, 127
  %v1568 = vpop.permute.xlu0 %1567
  %1569 = vrot.lane.b32.xlu0 %v924, 127
  %v1570 = vpop.permute.xlu0 %1569
  %vm1571 = vcmp.lt.s32.totalorder %v978, 127
  %v1572 = vsel %vm1571, %v1556, %v1564
  %v1573 = vsel %vm1571, %v1558, %v1566
  %v1574 = vsel %vm1571, %v1560, %v1568
  %v1575 = vsel %vm1571, %v1562, %v1570
  %v1576 = vsel %vm1571, %v1548, %v1556
  %v1577 = vsel %vm1571, %v1550, %v1558
  %v1578 = vsel %vm1571, %v1552, %v1560
  %v1579 = vsel %vm1571, %v1554, %v1562
  %v1580 = vsel %vm1571, %v1540, %v1548
  %v1581 = vsel %vm1571, %v1542, %v1550
  %v1582 = vsel %vm1571, %v1544, %v1552
  %v1583 = vsel %vm1571, %v1546, %v1554
  %v1584 = vsel %vm1571, %v1532, %v1540
  %v1585 = vsel %vm1571, %v1534, %v1542
  %v1586 = vsel %vm1571, %v1536, %v1544
  %v1587 = vsel %vm1571, %v1538, %v1546
  %v1588 = vsel %vm1571, %v1524, %v1532
  %v1589 = vsel %vm1571, %v1526, %v1534
  %v1590 = vsel %vm1571, %v1528, %v1536
  %v1591 = vsel %vm1571, %v1530, %v1538
  %v1592 = vsel %vm1571, %v1564, %v1524
  %v1593 = vsel %vm1571, %v1566, %v1526
  %v1594 = vsel %vm1571, %v1568, %v1528
  %v1595 = vsel %vm1571, %v1570, %v1530
  %1596 = vset.pattern.permute.xlu0 5
  %1597 = vperm.xlu0 %1596, %v925
  %v1598 = vpop.permute.xlu0 %1597
  %1600 = vset.pattern.permute.xlu0 5
  %1601 = vperm.xlu0 %1600, %v926
  %v1602 = vpop.permute.xlu0 %1601
  %1604 = vset.pattern.permute.xlu0 5
  %1605 = vperm.xlu0 %1604, %v927
  %v1606 = vpop.permute.xlu0 %1605
  %1608 = vset.pattern.permute.xlu0 5
  %1609 = vperm.xlu0 %1608, %v928
  %v1610 = vpop.permute.xlu0 %1609
  %v1612 = vmul.f32 %v1588, %v1598
  %v1613 = vmul.f32 %v1584, %v1598
  %v1614 = vmul.f32 %v1580, %v1598
  %v1615 = vmul.f32 %v1576, %v1598
  %v1616 = vmul.f32 %v1572, %v1598
  %v1617 = vmul.f32 %v1592, %v1598
  %v1618 = vmul.f32 %v1589, %v1602
  %v1619 = vmul.f32 %v1585, %v1602
  %v1620 = vmul.f32 %v1581, %v1602
  %v1621 = vmul.f32 %v1577, %v1602
  %v1622 = vmul.f32 %v1573, %v1602
  %v1623 = vmul.f32 %v1593, %v1602
  %v1624 = vmul.f32 %v1590, %v1606
  %v1625 = vmul.f32 %v1586, %v1606
  %v1626 = vmul.f32 %v1582, %v1606
  %v1627 = vmul.f32 %v1578, %v1606
  %v1628 = vmul.f32 %v1574, %v1606
  %v1629 = vmul.f32 %v1594, %v1606
  %v1630 = vmul.f32 %v1591, %v1610
  %v1631 = vmul.f32 %v1587, %v1610
  %v1632 = vmul.f32 %v1583, %v1610
  %v1633 = vmul.f32 %v1579, %v1610
  %v1634 = vmul.f32 %v1575, %v1610
  %v1635 = vmul.f32 %v1595, %v1610
  %v1636 = vadd.f32 %v1499, %v1612
  %v1637 = vadd.f32 %v1500, %v1613
  %v1638 = vadd.f32 %v1501, %v1614
  %v1639 = vadd.f32 %v1502, %v1615
  %v1640 = vadd.f32 %v1503, %v1616
  %v1641 = vadd.f32 %v1504, %v1617
  %v1642 = vadd.f32 %v1505, %v1618
  %v1643 = vadd.f32 %v1506, %v1619
  %v1644 = vadd.f32 %v1507, %v1620
  %v1645 = vadd.f32 %v1508, %v1621
  %v1646 = vadd.f32 %v1509, %v1622
  %v1647 = vadd.f32 %v1510, %v1623
  %v1648 = vadd.f32 %v1511, %v1624
  %v1649 = vadd.f32 %v1512, %v1625
  %v1650 = vadd.f32 %v1513, %v1626
  %v1651 = vadd.f32 %v1514, %v1627
  %v1652 = vadd.f32 %v1515, %v1628
  %v1653 = vadd.f32 %v1516, %v1629
  %v1654 = vadd.f32 %v1517, %v1630
  %v1655 = vadd.f32 %v1518, %v1631
  %v1656 = vadd.f32 %v1519, %v1632
  %v1657 = vadd.f32 %v1520, %v1633
  %v1658 = vadd.f32 %v1521, %v1634
  %v1659 = vadd.f32 %v1522, %v1635
  %1660 = vrot.lane.b32.xlu0 %v901, 111
  %v1661 = vpop.permute.xlu0 %1660
  %1662 = vrot.lane.b32.xlu0 %v907, 111
  %v1663 = vpop.permute.xlu0 %1662
  %1664 = vrot.lane.b32.xlu0 %v913, 111
  %v1665 = vpop.permute.xlu0 %1664
  %1666 = vrot.lane.b32.xlu0 %v919, 111
  %v1667 = vpop.permute.xlu0 %1666
  %1668 = vrot.lane.b32.xlu0 %v902, 111
  %v1669 = vpop.permute.xlu0 %1668
  %1670 = vrot.lane.b32.xlu0 %v908, 111
  %v1671 = vpop.permute.xlu0 %1670
  %1672 = vrot.lane.b32.xlu0 %v914, 111
  %v1673 = vpop.permute.xlu0 %1672
  %1674 = vrot.lane.b32.xlu0 %v920, 111
  %v1675 = vpop.permute.xlu0 %1674
  %1676 = vrot.lane.b32.xlu0 %v903, 111
  %v1677 = vpop.permute.xlu0 %1676
  %1678 = vrot.lane.b32.xlu0 %v909, 111
  %v1679 = vpop.permute.xlu0 %1678
  %1680 = vrot.lane.b32.xlu0 %v915, 111
  %v1681 = vpop.permute.xlu0 %1680
  %1682 = vrot.lane.b32.xlu0 %v921, 111
  %v1683 = vpop.permute.xlu0 %1682
  %1684 = vrot.lane.b32.xlu0 %v904, 111
  %v1685 = vpop.permute.xlu0 %1684
  %1686 = vrot.lane.b32.xlu0 %v910, 111
  %v1687 = vpop.permute.xlu0 %1686
  %1688 = vrot.lane.b32.xlu0 %v916, 111
  %v1689 = vpop.permute.xlu0 %1688
  %1690 = vrot.lane.b32.xlu0 %v922, 111
  %v1691 = vpop.permute.xlu0 %1690
  %1692 = vrot.lane.b32.xlu0 %v905, 111
  %v1693 = vpop.permute.xlu0 %1692
  %1694 = vrot.lane.b32.xlu0 %v911, 111
  %v1695 = vpop.permute.xlu0 %1694
  %1696 = vrot.lane.b32.xlu0 %v917, 111
  %v1697 = vpop.permute.xlu0 %1696
  %1698 = vrot.lane.b32.xlu0 %v923, 111
  %v1699 = vpop.permute.xlu0 %1698
  %1700 = vrot.lane.b32.xlu0 %v906, 111
  %v1701 = vpop.permute.xlu0 %1700
  %1702 = vrot.lane.b32.xlu0 %v912, 111
  %v1703 = vpop.permute.xlu0 %1702
  %1704 = vrot.lane.b32.xlu0 %v918, 111
  %v1705 = vpop.permute.xlu0 %1704
  %1706 = vrot.lane.b32.xlu0 %v924, 111
  %v1707 = vpop.permute.xlu0 %1706
  %vm1708 = vcmp.lt.s32.totalorder %v978, 111
  %v1709 = vsel %vm1708, %v1693, %v1701
  %v1710 = vsel %vm1708, %v1695, %v1703
  %v1711 = vsel %vm1708, %v1697, %v1705
  %v1712 = vsel %vm1708, %v1699, %v1707
  %v1713 = vsel %vm1708, %v1685, %v1693
  %v1714 = vsel %vm1708, %v1687, %v1695
  %v1715 = vsel %vm1708, %v1689, %v1697
  %v1716 = vsel %vm1708, %v1691, %v1699
  %v1717 = vsel %vm1708, %v1677, %v1685
  %v1718 = vsel %vm1708, %v1679, %v1687
  %v1719 = vsel %vm1708, %v1681, %v1689
  %v1720 = vsel %vm1708, %v1683, %v1691
  %v1721 = vsel %vm1708, %v1669, %v1677
  %v1722 = vsel %vm1708, %v1671, %v1679
  %v1723 = vsel %vm1708, %v1673, %v1681
  %v1724 = vsel %vm1708, %v1675, %v1683
  %v1725 = vsel %vm1708, %v1661, %v1669
  %v1726 = vsel %vm1708, %v1663, %v1671
  %v1727 = vsel %vm1708, %v1665, %v1673
  %v1728 = vsel %vm1708, %v1667, %v1675
  %v1729 = vsel %vm1708, %v1701, %v1661
  %v1730 = vsel %vm1708, %v1703, %v1663
  %v1731 = vsel %vm1708, %v1705, %v1665
  %v1732 = vsel %vm1708, %v1707, %v1667
  %1733 = vset.pattern.permute.xlu0 6
  %1734 = vperm.xlu0 %1733, %v925
  %v1735 = vpop.permute.xlu0 %1734
  %1737 = vset.pattern.permute.xlu0 6
  %1738 = vperm.xlu0 %1737, %v926
  %v1739 = vpop.permute.xlu0 %1738
  %1741 = vset.pattern.permute.xlu0 6
  %1742 = vperm.xlu0 %1741, %v927
  %v1743 = vpop.permute.xlu0 %1742
  %1745 = vset.pattern.permute.xlu0 6
  %1746 = vperm.xlu0 %1745, %v928
  %v1747 = vpop.permute.xlu0 %1746
  %v1749 = vmul.f32 %v1725, %v1735
  %v1750 = vmul.f32 %v1721, %v1735
  %v1751 = vmul.f32 %v1717, %v1735
  %v1752 = vmul.f32 %v1713, %v1735
  %v1753 = vmul.f32 %v1709, %v1735
  %v1754 = vmul.f32 %v1729, %v1735
  %v1755 = vmul.f32 %v1726, %v1739
  %v1756 = vmul.f32 %v1722, %v1739
  %v1757 = vmul.f32 %v1718, %v1739
  %v1758 = vmul.f32 %v1714, %v1739
  %v1759 = vmul.f32 %v1710, %v1739
  %v1760 = vmul.f32 %v1730, %v1739
  %v1761 = vmul.f32 %v1727, %v1743
  %v1762 = vmul.f32 %v1723, %v1743
  %v1763 = vmul.f32 %v1719, %v1743
  %v1764 = vmul.f32 %v1715, %v1743
  %v1765 = vmul.f32 %v1711, %v1743
  %v1766 = vmul.f32 %v1731, %v1743
  %v1767 = vmul.f32 %v1728, %v1747
  %v1768 = vmul.f32 %v1724, %v1747
  %v1769 = vmul.f32 %v1720, %v1747
  %v1770 = vmul.f32 %v1716, %v1747
  %v1771 = vmul.f32 %v1712, %v1747
  %v1772 = vmul.f32 %v1732, %v1747
  %v1773 = vadd.f32 %v1636, %v1749
  %v1774 = vadd.f32 %v1637, %v1750
  %v1775 = vadd.f32 %v1638, %v1751
  %v1776 = vadd.f32 %v1639, %v1752
  %v1777 = vadd.f32 %v1640, %v1753
  %v1778 = vadd.f32 %v1641, %v1754
  %v1779 = vadd.f32 %v1642, %v1755
  %v1780 = vadd.f32 %v1643, %v1756
  %v1781 = vadd.f32 %v1644, %v1757
  %v1782 = vadd.f32 %v1645, %v1758
  %v1783 = vadd.f32 %v1646, %v1759
  %v1784 = vadd.f32 %v1647, %v1760
  %v1785 = vadd.f32 %v1648, %v1761
  %v1786 = vadd.f32 %v1649, %v1762
  %v1787 = vadd.f32 %v1650, %v1763
  %v1788 = vadd.f32 %v1651, %v1764
  %v1789 = vadd.f32 %v1652, %v1765
  %v1790 = vadd.f32 %v1653, %v1766
  %v1791 = vadd.f32 %v1654, %v1767
  %v1792 = vadd.f32 %v1655, %v1768
  %v1793 = vadd.f32 %v1656, %v1769
  %v1794 = vadd.f32 %v1657, %v1770
  %v1795 = vadd.f32 %v1658, %v1771
  %v1796 = vadd.f32 %v1659, %v1772
  %1797 = vrot.lane.b32.xlu0 %v901, 110
  %v1798 = vpop.permute.xlu0 %1797
  %1799 = vrot.lane.b32.xlu0 %v907, 110
  %v1800 = vpop.permute.xlu0 %1799
  %1801 = vrot.lane.b32.xlu0 %v913, 110
  %v1802 = vpop.permute.xlu0 %1801
  %1803 = vrot.lane.b32.xlu0 %v919, 110
  %v1804 = vpop.permute.xlu0 %1803
  %1805 = vrot.lane.b32.xlu0 %v902, 110
  %v1806 = vpop.permute.xlu0 %1805
  %1807 = vrot.lane.b32.xlu0 %v908, 110
  %v1808 = vpop.permute.xlu0 %1807
  %1809 = vrot.lane.b32.xlu0 %v914, 110
  %v1810 = vpop.permute.xlu0 %1809
  %1811 = vrot.lane.b32.xlu0 %v920, 110
  %v1812 = vpop.permute.xlu0 %1811
  %1813 = vrot.lane.b32.xlu0 %v903, 110
  %v1814 = vpop.permute.xlu0 %1813
  %1815 = vrot.lane.b32.xlu0 %v909, 110
  %v1816 = vpop.permute.xlu0 %1815
  %1817 = vrot.lane.b32.xlu0 %v915, 110
  %v1818 = vpop.permute.xlu0 %1817
  %1819 = vrot.lane.b32.xlu0 %v921, 110
  %v1820 = vpop.permute.xlu0 %1819
  %1821 = vrot.lane.b32.xlu0 %v904, 110
  %v1822 = vpop.permute.xlu0 %1821
  %1823 = vrot.lane.b32.xlu0 %v910, 110
  %v1824 = vpop.permute.xlu0 %1823
  %1825 = vrot.lane.b32.xlu0 %v916, 110
  %v1826 = vpop.permute.xlu0 %1825
  %1827 = vrot.lane.b32.xlu0 %v922, 110
  %v1828 = vpop.permute.xlu0 %1827
  %1829 = vrot.lane.b32.xlu0 %v905, 110
  %v1830 = vpop.permute.xlu0 %1829
  %1831 = vrot.lane.b32.xlu0 %v911, 110
  %v1832 = vpop.permute.xlu0 %1831
  %1833 = vrot.lane.b32.xlu0 %v917, 110
  %v1834 = vpop.permute.xlu0 %1833
  %1835 = vrot.lane.b32.xlu0 %v923, 110
  %v1836 = vpop.permute.xlu0 %1835
  %1837 = vrot.lane.b32.xlu0 %v906, 110
  %v1838 = vpop.permute.xlu0 %1837
  %1839 = vrot.lane.b32.xlu0 %v912, 110
  %v1840 = vpop.permute.xlu0 %1839
  %1841 = vrot.lane.b32.xlu0 %v918, 110
  %v1842 = vpop.permute.xlu0 %1841
  %1843 = vrot.lane.b32.xlu0 %v924, 110
  %v1844 = vpop.permute.xlu0 %1843
  %vm1845 = vcmp.lt.s32.totalorder %v978, 110
  %v1846 = vsel %vm1845, %v1830, %v1838
  %v1847 = vsel %vm1845, %v1832, %v1840
  %v1848 = vsel %vm1845, %v1834, %v1842
  %v1849 = vsel %vm1845, %v1836, %v1844
  %v1850 = vsel %vm1845, %v1822, %v1830
  %v1851 = vsel %vm1845, %v1824, %v1832
  %v1852 = vsel %vm1845, %v1826, %v1834
  %v1853 = vsel %vm1845, %v1828, %v1836
  %v1854 = vsel %vm1845, %v1814, %v1822
  %v1855 = vsel %vm1845, %v1816, %v1824
  %v1856 = vsel %vm1845, %v1818, %v1826
  %v1857 = vsel %vm1845, %v1820, %v1828
  %v1858 = vsel %vm1845, %v1806, %v1814
  %v1859 = vsel %vm1845, %v1808, %v1816
  %v1860 = vsel %vm1845, %v1810, %v1818
  %v1861 = vsel %vm1845, %v1812, %v1820
  %v1862 = vsel %vm1845, %v1798, %v1806
  %v1863 = vsel %vm1845, %v1800, %v1808
  %v1864 = vsel %vm1845, %v1802, %v1810
  %v1865 = vsel %vm1845, %v1804, %v1812
  %v1866 = vsel %vm1845, %v1838, %v1798
  %v1867 = vsel %vm1845, %v1840, %v1800
  %v1868 = vsel %vm1845, %v1842, %v1802
  %v1869 = vsel %vm1845, %v1844, %v1804
  %1870 = vset.pattern.permute.xlu0 7
  %1871 = vperm.xlu0 %1870, %v925
  %v1872 = vpop.permute.xlu0 %1871
  %1874 = vset.pattern.permute.xlu0 7
  %1875 = vperm.xlu0 %1874, %v926
  %v1876 = vpop.permute.xlu0 %1875
  %1878 = vset.pattern.permute.xlu0 7
  %1879 = vperm.xlu0 %1878, %v927
  %v1880 = vpop.permute.xlu0 %1879
  %1882 = vset.pattern.permute.xlu0 7
  %1883 = vperm.xlu0 %1882, %v928
  %v1884 = vpop.permute.xlu0 %1883
  %v1886 = vmul.f32 %v1862, %v1872
  %v1887 = vmul.f32 %v1858, %v1872
  %v1888 = vmul.f32 %v1854, %v1872
  %v1889 = vmul.f32 %v1850, %v1872
  %v1890 = vmul.f32 %v1846, %v1872
  %v1891 = vmul.f32 %v1866, %v1872
  %v1892 = vmul.f32 %v1863, %v1876
  %v1893 = vmul.f32 %v1859, %v1876
  %v1894 = vmul.f32 %v1855, %v1876
  %v1895 = vmul.f32 %v1851, %v1876
  %v1896 = vmul.f32 %v1847, %v1876
  %v1897 = vmul.f32 %v1867, %v1876
  %v1898 = vmul.f32 %v1864, %v1880
  %v1899 = vmul.f32 %v1860, %v1880
  %v1900 = vmul.f32 %v1856, %v1880
  %v1901 = vmul.f32 %v1852, %v1880
  %v1902 = vmul.f32 %v1848, %v1880
  %v1903 = vmul.f32 %v1868, %v1880
  %v1904 = vmul.f32 %v1865, %v1884
  %v1905 = vmul.f32 %v1861, %v1884
  %v1906 = vmul.f32 %v1857, %v1884
  %v1907 = vmul.f32 %v1853, %v1884
  %v1908 = vmul.f32 %v1849, %v1884
  %v1909 = vmul.f32 %v1869, %v1884
  %v1910 = vadd.f32 %v1773, %v1886
  %v1911 = vadd.f32 %v1774, %v1887
  %v1912 = vadd.f32 %v1775, %v1888
  %v1913 = vadd.f32 %v1776, %v1889
  %v1914 = vadd.f32 %v1777, %v1890
  %v1915 = vadd.f32 %v1778, %v1891
  %v1916 = vadd.f32 %v1779, %v1892
  %v1917 = vadd.f32 %v1780, %v1893
  %v1918 = vadd.f32 %v1781, %v1894
  %v1919 = vadd.f32 %v1782, %v1895
  %v1920 = vadd.f32 %v1783, %v1896
  %v1921 = vadd.f32 %v1784, %v1897
  %v1922 = vadd.f32 %v1785, %v1898
  %v1923 = vadd.f32 %v1786, %v1899
  %v1924 = vadd.f32 %v1787, %v1900
  %v1925 = vadd.f32 %v1788, %v1901
  %v1926 = vadd.f32 %v1789, %v1902
  %v1927 = vadd.f32 %v1790, %v1903
  %v1928 = vadd.f32 %v1791, %v1904
  %v1929 = vadd.f32 %v1792, %v1905
  %v1930 = vadd.f32 %v1793, %v1906
  %v1931 = vadd.f32 %v1794, %v1907
  %v1932 = vadd.f32 %v1795, %v1908
  %v1933 = vadd.f32 %v1796, %v1909
  %1934 = vrot.lane.b32.xlu0 %v901, 109
  %v1935 = vpop.permute.xlu0 %1934
  %1936 = vrot.lane.b32.xlu0 %v907, 109
  %v1937 = vpop.permute.xlu0 %1936
  %1938 = vrot.lane.b32.xlu0 %v913, 109
  %v1939 = vpop.permute.xlu0 %1938
  %1940 = vrot.lane.b32.xlu0 %v919, 109
  %v1941 = vpop.permute.xlu0 %1940
  %1942 = vrot.lane.b32.xlu0 %v902, 109
  %v1943 = vpop.permute.xlu0 %1942
  %1944 = vrot.lane.b32.xlu0 %v908, 109
  %v1945 = vpop.permute.xlu0 %1944
  %1946 = vrot.lane.b32.xlu0 %v914, 109
  %v1947 = vpop.permute.xlu0 %1946
  %1948 = vrot.lane.b32.xlu0 %v920, 109
  %v1949 = vpop.permute.xlu0 %1948
  %1950 = vrot.lane.b32.xlu0 %v903, 109
  %v1951 = vpop.permute.xlu0 %1950
  %1952 = vrot.lane.b32.xlu0 %v909, 109
  %v1953 = vpop.permute.xlu0 %1952
  %1954 = vrot.lane.b32.xlu0 %v915, 109
  %v1955 = vpop.permute.xlu0 %1954
  %1956 = vrot.lane.b32.xlu0 %v921, 109
  %v1957 = vpop.permute.xlu0 %1956
  %1958 = vrot.lane.b32.xlu0 %v904, 109
  %v1959 = vpop.permute.xlu0 %1958
  %1960 = vrot.lane.b32.xlu0 %v910, 109
  %v1961 = vpop.permute.xlu0 %1960
  %1962 = vrot.lane.b32.xlu0 %v916, 109
  %v1963 = vpop.permute.xlu0 %1962
  %1964 = vrot.lane.b32.xlu0 %v922, 109
  %v1965 = vpop.permute.xlu0 %1964
  %1966 = vrot.lane.b32.xlu0 %v905, 109
  %v1967 = vpop.permute.xlu0 %1966
  %1968 = vrot.lane.b32.xlu0 %v911, 109
  %v1969 = vpop.permute.xlu0 %1968
  %1970 = vrot.lane.b32.xlu0 %v917, 109
  %v1971 = vpop.permute.xlu0 %1970
  %1972 = vrot.lane.b32.xlu0 %v923, 109
  %v1973 = vpop.permute.xlu0 %1972
  %1974 = vrot.lane.b32.xlu0 %v906, 109
  %v1975 = vpop.permute.xlu0 %1974
  %1976 = vrot.lane.b32.xlu0 %v912, 109
  %v1977 = vpop.permute.xlu0 %1976
  %1978 = vrot.lane.b32.xlu0 %v918, 109
  %v1979 = vpop.permute.xlu0 %1978
  %1980 = vrot.lane.b32.xlu0 %v924, 109
  %v1981 = vpop.permute.xlu0 %1980
  %vm1982 = vcmp.lt.s32.totalorder %v978, 109
  %v1983 = vsel %vm1982, %v1967, %v1975
  %v1984 = vsel %vm1982, %v1969, %v1977
  %v1985 = vsel %vm1982, %v1971, %v1979
  %v1986 = vsel %vm1982, %v1973, %v1981
  %v1987 = vsel %vm1982, %v1959, %v1967
  %v1988 = vsel %vm1982, %v1961, %v1969
  %v1989 = vsel %vm1982, %v1963, %v1971
  %v1990 = vsel %vm1982, %v1965, %v1973
  %v1991 = vsel %vm1982, %v1951, %v1959
  %v1992 = vsel %vm1982, %v1953, %v1961
  %v1993 = vsel %vm1982, %v1955, %v1963
  %v1994 = vsel %vm1982, %v1957, %v1965
  %v1995 = vsel %vm1982, %v1943, %v1951
  %v1996 = vsel %vm1982, %v1945, %v1953
  %v1997 = vsel %vm1982, %v1947, %v1955
  %v1998 = vsel %vm1982, %v1949, %v1957
  %v1999 = vsel %vm1982, %v1935, %v1943
  %v2000 = vsel %vm1982, %v1937, %v1945
  %v2001 = vsel %vm1982, %v1939, %v1947
  %v2002 = vsel %vm1982, %v1941, %v1949
  %v2003 = vsel %vm1982, %v1975, %v1935
  %v2004 = vsel %vm1982, %v1977, %v1937
  %v2005 = vsel %vm1982, %v1979, %v1939
  %v2006 = vsel %vm1982, %v1981, %v1941
  %2007 = vset.pattern.permute.xlu0 8
  %2008 = vperm.xlu0 %2007, %v925
  %v2009 = vpop.permute.xlu0 %2008
  %2011 = vset.pattern.permute.xlu0 8
  %2012 = vperm.xlu0 %2011, %v926
  %v2013 = vpop.permute.xlu0 %2012
  %2015 = vset.pattern.permute.xlu0 8
  %2016 = vperm.xlu0 %2015, %v927
  %v2017 = vpop.permute.xlu0 %2016
  %2019 = vset.pattern.permute.xlu0 8
  %2020 = vperm.xlu0 %2019, %v928
  %v2021 = vpop.permute.xlu0 %2020
  %v2023 = vmul.f32 %v1999, %v2009
  %v2024 = vmul.f32 %v1995, %v2009
  %v2025 = vmul.f32 %v1991, %v2009
  %v2026 = vmul.f32 %v1987, %v2009
  %v2027 = vmul.f32 %v1983, %v2009
  %v2028 = vmul.f32 %v2003, %v2009
  %v2029 = vmul.f32 %v2000, %v2013
  %v2030 = vmul.f32 %v1996, %v2013
  %v2031 = vmul.f32 %v1992, %v2013
  %v2032 = vmul.f32 %v1988, %v2013
  %v2033 = vmul.f32 %v1984, %v2013
  %v2034 = vmul.f32 %v2004, %v2013
  %v2035 = vmul.f32 %v2001, %v2017
  %v2036 = vmul.f32 %v1997, %v2017
  %v2037 = vmul.f32 %v1993, %v2017
  %v2038 = vmul.f32 %v1989, %v2017
  %v2039 = vmul.f32 %v1985, %v2017
  %v2040 = vmul.f32 %v2005, %v2017
  %v2041 = vmul.f32 %v2002, %v2021
  %v2042 = vmul.f32 %v1998, %v2021
  %v2043 = vmul.f32 %v1994, %v2021
  %v2044 = vmul.f32 %v1990, %v2021
  %v2045 = vmul.f32 %v1986, %v2021
  %v2046 = vmul.f32 %v2006, %v2021
  %v2047 = vadd.f32 %v1910, %v2023
  %v2048 = vadd.f32 %v1911, %v2024
  %v2049 = vadd.f32 %v1912, %v2025
  %v2050 = vadd.f32 %v1913, %v2026
  %v2051 = vadd.f32 %v1914, %v2027
  %v2052 = vadd.f32 %v1915, %v2028
  %v2053 = vadd.f32 %v1916, %v2029
  %v2054 = vadd.f32 %v1917, %v2030
  %v2055 = vadd.f32 %v1918, %v2031
  %v2056 = vadd.f32 %v1919, %v2032
  %v2057 = vadd.f32 %v1920, %v2033
  %v2058 = vadd.f32 %v1921, %v2034
  %v2059 = vadd.f32 %v1922, %v2035
  %v2060 = vadd.f32 %v1923, %v2036
  %v2061 = vadd.f32 %v1924, %v2037
  %v2062 = vadd.f32 %v1925, %v2038
  %v2063 = vadd.f32 %v1926, %v2039
  %v2064 = vadd.f32 %v1927, %v2040
  %v2065 = vadd.f32 %v1928, %v2041
  %v2066 = vadd.f32 %v1929, %v2042
  %v2067 = vadd.f32 %v1930, %v2043
  %v2068 = vadd.f32 %v1931, %v2044
  %v2069 = vadd.f32 %v1932, %v2045
  %v2070 = vadd.f32 %v1933, %v2046
  %v2071 = vld [vmem:[%s2] sm:$0x3f]
  %v2072 = vld [vmem:[%s7] sm:$0xff]
  %v2073 = vld [vmem:[%s7 + $0x8] sm:$0xff]
  %v2074 = vld [vmem:[%s7 + $0x10] sm:$0xff]
  %v2075 = vld [vmem:[%s7 + $0x18] sm:$0xff]
  %v2076 = vld [vmem:[%s8] sm:$0xff]
  %v2077 = vld [vmem:[%s8 + $0x8] sm:$0xff]
  %v2078 = vld [vmem:[%s8 + $0x10] sm:$0xff]
  %v2079 = vld [vmem:[%s8 + $0x18] sm:$0xff]
  %v2081 = vperm.slane %v2071, 0
  %v2082 = vperm.slane %v2071, 1
  %v2083 = vperm.slane %v2071, 2
  %v2084 = vperm.slane %v2071, 3
  %v2085 = vperm.slane %v2071, 4
  %v2086 = vperm.slane %v2071, 5
  %v2093 = vmul.f32 %v2047, %v2081
  %v2094 = vmul.f32 %v2048, %v2082
  %v2095 = vmul.f32 %v2049, %v2083
  %v2096 = vmul.f32 %v2050, %v2084
  %v2097 = vmul.f32 %v2051, %v2085
  %v2098 = vmul.f32 %v2052, %v2086
  %v2099 = vmul.f32 %v2053, %v2081
  %v2100 = vmul.f32 %v2054, %v2082
  %v2101 = vmul.f32 %v2055, %v2083
  %v2102 = vmul.f32 %v2056, %v2084
  %v2103 = vmul.f32 %v2057, %v2085
  %v2104 = vmul.f32 %v2058, %v2086
  %v2105 = vmul.f32 %v2059, %v2081
  %v2106 = vmul.f32 %v2060, %v2082
  %v2107 = vmul.f32 %v2061, %v2083
  %v2108 = vmul.f32 %v2062, %v2084
  %v2109 = vmul.f32 %v2063, %v2085
  %v2110 = vmul.f32 %v2064, %v2086
  %v2111 = vmul.f32 %v2065, %v2081
  %v2112 = vmul.f32 %v2066, %v2082
  %v2113 = vmul.f32 %v2067, %v2083
  %v2114 = vmul.f32 %v2068, %v2084
  %v2115 = vmul.f32 %v2069, %v2085
  %v2116 = vmul.f32 %v2070, %v2086
  %v2117 = vadd.f32 %v2093, %v2094
  %v2118 = vadd.f32 %v2117, %v2095
  %v2119 = vadd.f32 %v2118, %v2096
  %v2120 = vadd.f32 %v2119, %v2097
  %v2121 = vadd.f32 %v2120, %v2098
  %2122 = vadd.xlane.f32.xlu0 %v2121
  %v2123 = vpop.xlane.xlu0 %2122
  %v2124 = vadd.f32 %v2099, %v2100
  %v2125 = vadd.f32 %v2124, %v2101
  %v2126 = vadd.f32 %v2125, %v2102
  %v2127 = vadd.f32 %v2126, %v2103
  %v2128 = vadd.f32 %v2127, %v2104
  %2129 = vadd.xlane.f32.xlu0 %v2128
  %v2130 = vpop.xlane.xlu0 %2129
  %v2131 = vadd.f32 %v2105, %v2106
  %v2132 = vadd.f32 %v2131, %v2107
  %v2133 = vadd.f32 %v2132, %v2108
  %v2134 = vadd.f32 %v2133, %v2109
  %v2135 = vadd.f32 %v2134, %v2110
  %2136 = vadd.xlane.f32.xlu0 %v2135
  %v2137 = vpop.xlane.xlu0 %2136
  %v2138 = vadd.f32 %v2111, %v2112
  %v2139 = vadd.f32 %v2138, %v2113
  %v2140 = vadd.f32 %v2139, %v2114
  %v2141 = vadd.f32 %v2140, %v2115
  %v2142 = vadd.f32 %v2141, %v2116
  %2143 = vadd.xlane.f32.xlu0 %v2142
  %v2144 = vpop.xlane.xlu0 %2143
  %v2145 = vmul.f32 %v2093, %v2047
  %v2146 = vmul.f32 %v2094, %v2048
  %v2147 = vmul.f32 %v2095, %v2049
  %v2148 = vmul.f32 %v2096, %v2050
  %v2149 = vmul.f32 %v2097, %v2051
  %v2150 = vmul.f32 %v2098, %v2052
  %v2151 = vmul.f32 %v2099, %v2053
  %v2152 = vmul.f32 %v2100, %v2054
  %v2153 = vmul.f32 %v2101, %v2055
  %v2154 = vmul.f32 %v2102, %v2056
  %v2155 = vmul.f32 %v2103, %v2057
  %v2156 = vmul.f32 %v2104, %v2058
  %v2157 = vmul.f32 %v2105, %v2059
  %v2158 = vmul.f32 %v2106, %v2060
  %v2159 = vmul.f32 %v2107, %v2061
  %v2160 = vmul.f32 %v2108, %v2062
  %v2161 = vmul.f32 %v2109, %v2063
  %v2162 = vmul.f32 %v2110, %v2064
  %v2163 = vmul.f32 %v2111, %v2065
  %v2164 = vmul.f32 %v2112, %v2066
  %v2165 = vmul.f32 %v2113, %v2067
  %v2166 = vmul.f32 %v2114, %v2068
  %v2167 = vmul.f32 %v2115, %v2069
  %v2168 = vmul.f32 %v2116, %v2070
  %v2169 = vadd.f32 %v2145, %v2146
  %v2170 = vadd.f32 %v2169, %v2147
  %v2171 = vadd.f32 %v2170, %v2148
  %v2172 = vadd.f32 %v2171, %v2149
  %v2173 = vadd.f32 %v2172, %v2150
  %2174 = vadd.xlane.f32.xlu0 %v2173
  %v2175 = vpop.xlane.xlu0 %2174
  %v2176 = vadd.f32 %v2151, %v2152
  %v2177 = vadd.f32 %v2176, %v2153
  %v2178 = vadd.f32 %v2177, %v2154
  %v2179 = vadd.f32 %v2178, %v2155
  %v2180 = vadd.f32 %v2179, %v2156
  %2181 = vadd.xlane.f32.xlu0 %v2180
  %v2182 = vpop.xlane.xlu0 %2181
  %v2183 = vadd.f32 %v2157, %v2158
  %v2184 = vadd.f32 %v2183, %v2159
  %v2185 = vadd.f32 %v2184, %v2160
  %v2186 = vadd.f32 %v2185, %v2161
  %v2187 = vadd.f32 %v2186, %v2162
  %2188 = vadd.xlane.f32.xlu0 %v2187
  %v2189 = vpop.xlane.xlu0 %2188
  %v2190 = vadd.f32 %v2163, %v2164
  %v2191 = vadd.f32 %v2190, %v2165
  %v2192 = vadd.f32 %v2191, %v2166
  %v2193 = vadd.f32 %v2192, %v2167
  %v2194 = vadd.f32 %v2193, %v2168
  %2195 = vadd.xlane.f32.xlu0 %v2194
  %v2196 = vpop.xlane.xlu0 %2195
  %v2197 = vmul.f32 %v2123, 0.001953125
  %v2198 = vmul.f32 %v2130, 0.001953125
  %v2199 = vmul.f32 %v2137, 0.001953125
  %v2200 = vmul.f32 %v2144, 0.001953125
  %v2201 = vmul.f32 %v2175, 0.001953125
  %v2202 = vmul.f32 %v2182, 0.001953125
  %v2203 = vmul.f32 %v2189, 0.001953125
  %v2204 = vmul.f32 %v2196, 0.001953125
  %v2205 = vmul.f32 %v2197, %v2197
  %v2206 = vmul.f32 %v2198, %v2198
  %v2207 = vmul.f32 %v2199, %v2199
  %v2208 = vmul.f32 %v2200, %v2200
  %v2209 = vsub.f32 %v2201, %v2205
  %v2210 = vsub.f32 %v2202, %v2206
  %v2211 = vsub.f32 %v2203, %v2207
  %v2212 = vsub.f32 %v2204, %v2208
  %v2213 = vadd.f32 %v2209, 1e-05
  %v2214 = vadd.f32 %v2210, 1e-05
  %v2215 = vadd.f32 %v2211, 1e-05
  %v2216 = vadd.f32 %v2212, 1e-05
  %v2217 = vrsqrt.pop %v2213
  %v2218 = vmul.f32 %v2217, %v2213
  %v2219 = vmul.f32 %v2218, %v2217
  %v2220 = vmul.f32 0.5, %v2219
  %v2221 = vsub.f32 1.5, %v2220
  %v2222 = vmul.f32 %v2217, %v2221
  %vm2223 = vweird.f32 %v2213
  %vm2224 = vweird.f32 %v2217
  %vm2225 = vmor %vm2223, %vm2224
  %v2226 = vsel %vm2225, %v2217, %v2222
  %v2227 = vrsqrt.pop %v2214
  %v2228 = vmul.f32 %v2227, %v2214
  %v2229 = vmul.f32 %v2228, %v2227
  %v2230 = vmul.f32 0.5, %v2229
  %v2231 = vsub.f32 1.5, %v2230
  %v2232 = vmul.f32 %v2227, %v2231
  %vm2233 = vweird.f32 %v2214
  %vm2234 = vweird.f32 %v2227
  %vm2235 = vmor %vm2233, %vm2234
  %v2236 = vsel %vm2235, %v2227, %v2232
  %v2237 = vrsqrt.pop %v2215
  %v2238 = vmul.f32 %v2237, %v2215
  %v2239 = vmul.f32 %v2238, %v2237
  %v2240 = vmul.f32 0.5, %v2239
  %v2241 = vsub.f32 1.5, %v2240
  %v2242 = vmul.f32 %v2237, %v2241
  %vm2243 = vweird.f32 %v2215
  %vm2244 = vweird.f32 %v2237
  %vm2245 = vmor %vm2243, %vm2244
  %v2246 = vsel %vm2245, %v2237, %v2242
  %v2247 = vrsqrt.pop %v2216
  %v2248 = vmul.f32 %v2247, %v2216
  %v2249 = vmul.f32 %v2248, %v2247
  %v2250 = vmul.f32 0.5, %v2249
  %v2251 = vsub.f32 1.5, %v2250
  %v2252 = vmul.f32 %v2247, %v2251
  %vm2253 = vweird.f32 %v2216
  %vm2254 = vweird.f32 %v2247
  %vm2255 = vmor %vm2253, %vm2254
  %v2256 = vsel %vm2255, %v2247, %v2252
  %v2257 = vmul.f32 %v2072, %v2226
  %v2258 = vmul.f32 %v2073, %v2236
  %v2259 = vmul.f32 %v2074, %v2246
  %v2260 = vmul.f32 %v2075, %v2256
  %v2261 = vmul.f32 %v2197, %v2257
  %v2262 = vmul.f32 %v2198, %v2258
  %v2263 = vmul.f32 %v2199, %v2259
  %v2264 = vmul.f32 %v2200, %v2260
  %v2265 = vsub.f32 %v2076, %v2261
  %v2266 = vsub.f32 %v2077, %v2262
  %v2267 = vsub.f32 %v2078, %v2263
  %v2268 = vsub.f32 %v2079, %v2264
  %2270 = vset.pattern.permute.xlu0 0
  %2271 = vperm.xlu0 %2270, %v2257
  %v2272 = vpop.permute.xlu0 %2271
  %2275 = vset.pattern.permute.xlu0 0
  %2276 = vperm.xlu0 %2275, %v2258
  %v2277 = vpop.permute.xlu0 %2276
  %2280 = vset.pattern.permute.xlu0 0
  %2281 = vperm.xlu0 %2280, %v2259
  %v2282 = vpop.permute.xlu0 %2281
  %2285 = vset.pattern.permute.xlu0 0
  %2286 = vperm.xlu0 %2285, %v2260
  %v2287 = vpop.permute.xlu0 %2286
  %v2289 = vmul.f32 %v2047, %v2272
  %v2290 = vmul.f32 %v2048, %v2272
  %v2291 = vmul.f32 %v2049, %v2272
  %v2292 = vmul.f32 %v2050, %v2272
  %v2293 = vmul.f32 %v2051, %v2272
  %v2294 = vmul.f32 %v2052, %v2272
  %v2295 = vmul.f32 %v2053, %v2277
  %v2296 = vmul.f32 %v2054, %v2277
  %v2297 = vmul.f32 %v2055, %v2277
  %v2298 = vmul.f32 %v2056, %v2277
  %v2299 = vmul.f32 %v2057, %v2277
  %v2300 = vmul.f32 %v2058, %v2277
  %v2301 = vmul.f32 %v2059, %v2282
  %v2302 = vmul.f32 %v2060, %v2282
  %v2303 = vmul.f32 %v2061, %v2282
  %v2304 = vmul.f32 %v2062, %v2282
  %v2305 = vmul.f32 %v2063, %v2282
  %v2306 = vmul.f32 %v2064, %v2282
  %v2307 = vmul.f32 %v2065, %v2287
  %v2308 = vmul.f32 %v2066, %v2287
  %v2309 = vmul.f32 %v2067, %v2287
  %v2310 = vmul.f32 %v2068, %v2287
  %v2311 = vmul.f32 %v2069, %v2287
  %v2312 = vmul.f32 %v2070, %v2287
  %2314 = vset.pattern.permute.xlu0 0
  %2315 = vperm.xlu0 %2314, %v2265
  %v2316 = vpop.permute.xlu0 %2315
  %2319 = vset.pattern.permute.xlu0 0
  %2320 = vperm.xlu0 %2319, %v2266
  %v2321 = vpop.permute.xlu0 %2320
  %2324 = vset.pattern.permute.xlu0 0
  %2325 = vperm.xlu0 %2324, %v2267
  %v2326 = vpop.permute.xlu0 %2325
  %2329 = vset.pattern.permute.xlu0 0
  %2330 = vperm.xlu0 %2329, %v2268
  %v2331 = vpop.permute.xlu0 %2330
  %v2333 = vadd.f32 %v2289, %v2316
  %v2334 = vadd.f32 %v2290, %v2316
  %v2335 = vadd.f32 %v2291, %v2316
  %v2336 = vadd.f32 %v2292, %v2316
  %v2337 = vadd.f32 %v2293, %v2316
  %v2338 = vadd.f32 %v2294, %v2316
  %v2339 = vadd.f32 %v2295, %v2321
  %v2340 = vadd.f32 %v2296, %v2321
  %v2341 = vadd.f32 %v2297, %v2321
  %v2342 = vadd.f32 %v2298, %v2321
  %v2343 = vadd.f32 %v2299, %v2321
  %v2344 = vadd.f32 %v2300, %v2321
  %v2345 = vadd.f32 %v2301, %v2326
  %v2346 = vadd.f32 %v2302, %v2326
  %v2347 = vadd.f32 %v2303, %v2326
  %v2348 = vadd.f32 %v2304, %v2326
  %v2349 = vadd.f32 %v2305, %v2326
  %v2350 = vadd.f32 %v2306, %v2326
  %v2351 = vadd.f32 %v2307, %v2331
  %v2352 = vadd.f32 %v2308, %v2331
  %v2353 = vadd.f32 %v2309, %v2331
  %v2354 = vadd.f32 %v2310, %v2331
  %v2355 = vadd.f32 %v2311, %v2331
  %v2356 = vadd.f32 %v2312, %v2331
  %v2357 = vmax.f32 %v2333, 0.0
  %v2358 = vmax.f32 %v2334, 0.0
  %v2359 = vmax.f32 %v2335, 0.0
  %v2360 = vmax.f32 %v2336, 0.0
  %v2361 = vmax.f32 %v2337, 0.0
  %v2362 = vmax.f32 %v2338, 0.0
  %v2363 = vmax.f32 %v2339, 0.0
  %v2364 = vmax.f32 %v2340, 0.0
  %v2365 = vmax.f32 %v2341, 0.0
  %v2366 = vmax.f32 %v2342, 0.0
  %v2367 = vmax.f32 %v2343, 0.0
  %v2368 = vmax.f32 %v2344, 0.0
  %v2369 = vmax.f32 %v2345, 0.0
  %v2370 = vmax.f32 %v2346, 0.0
  %v2371 = vmax.f32 %v2347, 0.0
  %v2372 = vmax.f32 %v2348, 0.0
  %v2373 = vmax.f32 %v2349, 0.0
  %v2374 = vmax.f32 %v2350, 0.0
  %v2375 = vmax.f32 %v2351, 0.0
  %v2376 = vmax.f32 %v2352, 0.0
  %v2377 = vmax.f32 %v2353, 0.0
  %v2378 = vmax.f32 %v2354, 0.0
  %v2379 = vmax.f32 %v2355, 0.0
  %v2380 = vmax.f32 %v2356, 0.0
  %v2381 = vmin.f32 %v2357, 6.0
  %v2382 = vmin.f32 %v2358, 6.0
  %v2383 = vmin.f32 %v2359, 6.0
  %v2384 = vmin.f32 %v2360, 6.0
  %v2385 = vmin.f32 %v2361, 6.0
  %v2386 = vmin.f32 %v2362, 6.0
  %v2387 = vmin.f32 %v2363, 6.0
  %v2388 = vmin.f32 %v2364, 6.0
  %v2389 = vmin.f32 %v2365, 6.0
  %v2390 = vmin.f32 %v2366, 6.0
  %v2391 = vmin.f32 %v2367, 6.0
  %v2392 = vmin.f32 %v2368, 6.0
  %v2393 = vmin.f32 %v2369, 6.0
  %v2394 = vmin.f32 %v2370, 6.0
  %v2395 = vmin.f32 %v2371, 6.0
  %v2396 = vmin.f32 %v2372, 6.0
  %v2397 = vmin.f32 %v2373, 6.0
  %v2398 = vmin.f32 %v2374, 6.0
  %v2399 = vmin.f32 %v2375, 6.0
  %v2400 = vmin.f32 %v2376, 6.0
  %v2401 = vmin.f32 %v2377, 6.0
  %v2402 = vmin.f32 %v2378, 6.0
  %v2403 = vmin.f32 %v2379, 6.0
  %v2404 = vmin.f32 %v2380, 6.0
  %v2405 = vld [vmem:[%s9] sm:$0xff]
  %v2406 = vperm.slane %v2381, 0
  %v2407 = vperm.slane %v2382, 0
  %v2408 = vperm.slane %v2383, 0
  %v2409 = vperm.slane %v2384, 0
  %v2410 = vperm.slane %v2385, 0
  %v2411 = vperm.slane %v2386, 0
  %2413 = vset.pattern.permute.xlu0 0
  %2414 = vperm.xlu0 %2413, %v2405
  %v2415 = vpop.permute.xlu0 %2414
  %v2417 = vmul.f32 %v2406, %v2415
  %v2418 = vmul.f32 %v2407, %v2415
  %v2419 = vmul.f32 %v2408, %v2415
  %v2420 = vmul.f32 %v2409, %v2415
  %v2421 = vmul.f32 %v2410, %v2415
  %v2422 = vmul.f32 %v2411, %v2415
  %v2423 = vperm.slane %v2381, 1
  %v2424 = vperm.slane %v2382, 1
  %v2425 = vperm.slane %v2383, 1
  %v2426 = vperm.slane %v2384, 1
  %v2427 = vperm.slane %v2385, 1
  %v2428 = vperm.slane %v2386, 1
  %2429 = vset.pattern.permute.xlu0 1
  %2430 = vperm.xlu0 %2429, %v2405
  %v2431 = vpop.permute.xlu0 %2430
  %v2433 = vmul.f32 %v2423, %v2431
  %v2434 = vmul.f32 %v2424, %v2431
  %v2435 = vmul.f32 %v2425, %v2431
  %v2436 = vmul.f32 %v2426, %v2431
  %v2437 = vmul.f32 %v2427, %v2431
  %v2438 = vmul.f32 %v2428, %v2431
  %v2439 = vadd.f32 %v2417, %v2433
  %v2440 = vadd.f32 %v2418, %v2434
  %v2441 = vadd.f32 %v2419, %v2435
  %v2442 = vadd.f32 %v2420, %v2436
  %v2443 = vadd.f32 %v2421, %v2437
  %v2444 = vadd.f32 %v2422, %v2438
  %v2445 = vperm.slane %v2381, 2
  %v2446 = vperm.slane %v2382, 2
  %v2447 = vperm.slane %v2383, 2
  %v2448 = vperm.slane %v2384, 2
  %v2449 = vperm.slane %v2385, 2
  %v2450 = vperm.slane %v2386, 2
  %2451 = vset.pattern.permute.xlu0 2
  %2452 = vperm.xlu0 %2451, %v2405
  %v2453 = vpop.permute.xlu0 %2452
  %v2455 = vmul.f32 %v2445, %v2453
  %v2456 = vmul.f32 %v2446, %v2453
  %v2457 = vmul.f32 %v2447, %v2453
  %v2458 = vmul.f32 %v2448, %v2453
  %v2459 = vmul.f32 %v2449, %v2453
  %v2460 = vmul.f32 %v2450, %v2453
  %v2461 = vadd.f32 %v2439, %v2455
  %v2462 = vadd.f32 %v2440, %v2456
  %v2463 = vadd.f32 %v2441, %v2457
  %v2464 = vadd.f32 %v2442, %v2458
  %v2465 = vadd.f32 %v2443, %v2459
  %v2466 = vadd.f32 %v2444, %v2460
  %v2467 = vperm.slane %v2381, 3
  %v2468 = vperm.slane %v2382, 3
  %v2469 = vperm.slane %v2383, 3
  %v2470 = vperm.slane %v2384, 3
  %v2471 = vperm.slane %v2385, 3
  %v2472 = vperm.slane %v2386, 3
  %2473 = vset.pattern.permute.xlu0 3
  %2474 = vperm.xlu0 %2473, %v2405
  %v2475 = vpop.permute.xlu0 %2474
  %v2477 = vmul.f32 %v2467, %v2475
  %v2478 = vmul.f32 %v2468, %v2475
  %v2479 = vmul.f32 %v2469, %v2475
  %v2480 = vmul.f32 %v2470, %v2475
  %v2481 = vmul.f32 %v2471, %v2475
  %v2482 = vmul.f32 %v2472, %v2475
  %v2483 = vadd.f32 %v2461, %v2477
  %v2484 = vadd.f32 %v2462, %v2478
  %v2485 = vadd.f32 %v2463, %v2479
  %v2486 = vadd.f32 %v2464, %v2480
  %v2487 = vadd.f32 %v2465, %v2481
  %v2488 = vadd.f32 %v2466, %v2482
  %v2489 = vperm.slane %v2381, 4
  %v2490 = vperm.slane %v2382, 4
  %v2491 = vperm.slane %v2383, 4
  %v2492 = vperm.slane %v2384, 4
  %v2493 = vperm.slane %v2385, 4
  %v2494 = vperm.slane %v2386, 4
  %2495 = vset.pattern.permute.xlu0 4
  %2496 = vperm.xlu0 %2495, %v2405
  %v2497 = vpop.permute.xlu0 %2496
  %v2499 = vmul.f32 %v2489, %v2497
  %v2500 = vmul.f32 %v2490, %v2497
  %v2501 = vmul.f32 %v2491, %v2497
  %v2502 = vmul.f32 %v2492, %v2497
  %v2503 = vmul.f32 %v2493, %v2497
  %v2504 = vmul.f32 %v2494, %v2497
  %v2505 = vadd.f32 %v2483, %v2499
  %v2506 = vadd.f32 %v2484, %v2500
  %v2507 = vadd.f32 %v2485, %v2501
  %v2508 = vadd.f32 %v2486, %v2502
  %v2509 = vadd.f32 %v2487, %v2503
  %v2510 = vadd.f32 %v2488, %v2504
  %v2511 = vperm.slane %v2381, 5
  %v2512 = vperm.slane %v2382, 5
  %v2513 = vperm.slane %v2383, 5
  %v2514 = vperm.slane %v2384, 5
  %v2515 = vperm.slane %v2385, 5
  %v2516 = vperm.slane %v2386, 5
  %2517 = vset.pattern.permute.xlu0 5
  %2518 = vperm.xlu0 %2517, %v2405
  %v2519 = vpop.permute.xlu0 %2518
  %v2521 = vmul.f32 %v2511, %v2519
  %v2522 = vmul.f32 %v2512, %v2519
  %v2523 = vmul.f32 %v2513, %v2519
  %v2524 = vmul.f32 %v2514, %v2519
  %v2525 = vmul.f32 %v2515, %v2519
  %v2526 = vmul.f32 %v2516, %v2519
  %v2527 = vadd.f32 %v2505, %v2521
  %v2528 = vadd.f32 %v2506, %v2522
  %v2529 = vadd.f32 %v2507, %v2523
  %v2530 = vadd.f32 %v2508, %v2524
  %v2531 = vadd.f32 %v2509, %v2525
  %v2532 = vadd.f32 %v2510, %v2526
  %v2533 = vperm.slane %v2381, 6
  %v2534 = vperm.slane %v2382, 6
  %v2535 = vperm.slane %v2383, 6
  %v2536 = vperm.slane %v2384, 6
  %v2537 = vperm.slane %v2385, 6
  %v2538 = vperm.slane %v2386, 6
  %2539 = vset.pattern.permute.xlu0 6
  %2540 = vperm.xlu0 %2539, %v2405
  %v2541 = vpop.permute.xlu0 %2540
  %v2543 = vmul.f32 %v2533, %v2541
  %v2544 = vmul.f32 %v2534, %v2541
  %v2545 = vmul.f32 %v2535, %v2541
  %v2546 = vmul.f32 %v2536, %v2541
  %v2547 = vmul.f32 %v2537, %v2541
  %v2548 = vmul.f32 %v2538, %v2541
  %v2549 = vadd.f32 %v2527, %v2543
  %v2550 = vadd.f32 %v2528, %v2544
  %v2551 = vadd.f32 %v2529, %v2545
  %v2552 = vadd.f32 %v2530, %v2546
  %v2553 = vadd.f32 %v2531, %v2547
  %v2554 = vadd.f32 %v2532, %v2548
  %v2555 = vperm.slane %v2381, 7
  %v2556 = vperm.slane %v2382, 7
  %v2557 = vperm.slane %v2383, 7
  %v2558 = vperm.slane %v2384, 7
  %v2559 = vperm.slane %v2385, 7
  %v2560 = vperm.slane %v2386, 7
  %2561 = vset.pattern.permute.xlu0 7
  %2562 = vperm.xlu0 %2561, %v2405
  %v2563 = vpop.permute.xlu0 %2562
  %v2565 = vmul.f32 %v2555, %v2563
  %v2566 = vmul.f32 %v2556, %v2563
  %v2567 = vmul.f32 %v2557, %v2563
  %v2568 = vmul.f32 %v2558, %v2563
  %v2569 = vmul.f32 %v2559, %v2563
  %v2570 = vmul.f32 %v2560, %v2563
  %v2571 = vadd.f32 %v2549, %v2565
  %v2572 = vadd.f32 %v2550, %v2566
  %v2573 = vadd.f32 %v2551, %v2567
  %v2574 = vadd.f32 %v2552, %v2568
  %v2575 = vadd.f32 %v2553, %v2569
  %v2576 = vadd.f32 %v2554, %v2570
  %v2577 = vperm.slane %v2387, 0
  %v2578 = vperm.slane %v2388, 0
  %v2579 = vperm.slane %v2389, 0
  %v2580 = vperm.slane %v2390, 0
  %v2581 = vperm.slane %v2391, 0
  %v2582 = vperm.slane %v2392, 0
  %2583 = vset.pattern.permute.xlu0 8
  %2584 = vperm.xlu0 %2583, %v2405
  %v2585 = vpop.permute.xlu0 %2584
  %v2587 = vmul.f32 %v2577, %v2585
  %v2588 = vmul.f32 %v2578, %v2585
  %v2589 = vmul.f32 %v2579, %v2585
  %v2590 = vmul.f32 %v2580, %v2585
  %v2591 = vmul.f32 %v2581, %v2585
  %v2592 = vmul.f32 %v2582, %v2585
  %v2593 = vadd.f32 %v2571, %v2587
  %v2594 = vadd.f32 %v2572, %v2588
  %v2595 = vadd.f32 %v2573, %v2589
  %v2596 = vadd.f32 %v2574, %v2590
  %v2597 = vadd.f32 %v2575, %v2591
  %v2598 = vadd.f32 %v2576, %v2592
  %v2599 = vperm.slane %v2387, 1
  %v2600 = vperm.slane %v2388, 1
  %v2601 = vperm.slane %v2389, 1
  %v2602 = vperm.slane %v2390, 1
  %v2603 = vperm.slane %v2391, 1
  %v2604 = vperm.slane %v2392, 1
  %2605 = vset.pattern.permute.xlu0 9
  %2606 = vperm.xlu0 %2605, %v2405
  %v2607 = vpop.permute.xlu0 %2606
  %v2609 = vmul.f32 %v2599, %v2607
  %v2610 = vmul.f32 %v2600, %v2607
  %v2611 = vmul.f32 %v2601, %v2607
  %v2612 = vmul.f32 %v2602, %v2607
  %v2613 = vmul.f32 %v2603, %v2607
  %v2614 = vmul.f32 %v2604, %v2607
  %v2615 = vadd.f32 %v2593, %v2609
  %v2616 = vadd.f32 %v2594, %v2610
  %v2617 = vadd.f32 %v2595, %v2611
  %v2618 = vadd.f32 %v2596, %v2612
  %v2619 = vadd.f32 %v2597, %v2613
  %v2620 = vadd.f32 %v2598, %v2614
  %v2621 = vperm.slane %v2387, 2
  %v2622 = vperm.slane %v2388, 2
  %v2623 = vperm.slane %v2389, 2
  %v2624 = vperm.slane %v2390, 2
  %v2625 = vperm.slane %v2391, 2
  %v2626 = vperm.slane %v2392, 2
  %2627 = vset.pattern.permute.xlu0 10
  %2628 = vperm.xlu0 %2627, %v2405
  %v2629 = vpop.permute.xlu0 %2628
  %v2631 = vmul.f32 %v2621, %v2629
  %v2632 = vmul.f32 %v2622, %v2629
  %v2633 = vmul.f32 %v2623, %v2629
  %v2634 = vmul.f32 %v2624, %v2629
  %v2635 = vmul.f32 %v2625, %v2629
  %v2636 = vmul.f32 %v2626, %v2629
  %v2637 = vadd.f32 %v2615, %v2631
  %v2638 = vadd.f32 %v2616, %v2632
  %v2639 = vadd.f32 %v2617, %v2633
  %v2640 = vadd.f32 %v2618, %v2634
  %v2641 = vadd.f32 %v2619, %v2635
  %v2642 = vadd.f32 %v2620, %v2636
  %v2643 = vperm.slane %v2387, 3
  %v2644 = vperm.slane %v2388, 3
  %v2645 = vperm.slane %v2389, 3
  %v2646 = vperm.slane %v2390, 3
  %v2647 = vperm.slane %v2391, 3
  %v2648 = vperm.slane %v2392, 3
  %2649 = vset.pattern.permute.xlu0 11
  %2650 = vperm.xlu0 %2649, %v2405
  %v2651 = vpop.permute.xlu0 %2650
  %v2653 = vmul.f32 %v2643, %v2651
  %v2654 = vmul.f32 %v2644, %v2651
  %v2655 = vmul.f32 %v2645, %v2651
  %v2656 = vmul.f32 %v2646, %v2651
  %v2657 = vmul.f32 %v2647, %v2651
  %v2658 = vmul.f32 %v2648, %v2651
  %v2659 = vadd.f32 %v2637, %v2653
  %v2660 = vadd.f32 %v2638, %v2654
  %v2661 = vadd.f32 %v2639, %v2655
  %v2662 = vadd.f32 %v2640, %v2656
  %v2663 = vadd.f32 %v2641, %v2657
  %v2664 = vadd.f32 %v2642, %v2658
  %v2665 = vperm.slane %v2387, 4
  %v2666 = vperm.slane %v2388, 4
  %v2667 = vperm.slane %v2389, 4
  %v2668 = vperm.slane %v2390, 4
  %v2669 = vperm.slane %v2391, 4
  %v2670 = vperm.slane %v2392, 4
  %2671 = vset.pattern.permute.xlu0 12
  %2672 = vperm.xlu0 %2671, %v2405
  %v2673 = vpop.permute.xlu0 %2672
  %v2675 = vmul.f32 %v2665, %v2673
  %v2676 = vmul.f32 %v2666, %v2673
  %v2677 = vmul.f32 %v2667, %v2673
  %v2678 = vmul.f32 %v2668, %v2673
  %v2679 = vmul.f32 %v2669, %v2673
  %v2680 = vmul.f32 %v2670, %v2673
  %v2681 = vadd.f32 %v2659, %v2675
  %v2682 = vadd.f32 %v2660, %v2676
  %v2683 = vadd.f32 %v2661, %v2677
  %v2684 = vadd.f32 %v2662, %v2678
  %v2685 = vadd.f32 %v2663, %v2679
  %v2686 = vadd.f32 %v2664, %v2680
  %v2687 = vperm.slane %v2387, 5
  %v2688 = vperm.slane %v2388, 5
  %v2689 = vperm.slane %v2389, 5
  %v2690 = vperm.slane %v2390, 5
  %v2691 = vperm.slane %v2391, 5
  %v2692 = vperm.slane %v2392, 5
  %2693 = vset.pattern.permute.xlu0 13
  %2694 = vperm.xlu0 %2693, %v2405
  %v2695 = vpop.permute.xlu0 %2694
  %v2697 = vmul.f32 %v2687, %v2695
  %v2698 = vmul.f32 %v2688, %v2695
  %v2699 = vmul.f32 %v2689, %v2695
  %v2700 = vmul.f32 %v2690, %v2695
  %v2701 = vmul.f32 %v2691, %v2695
  %v2702 = vmul.f32 %v2692, %v2695
  %v2703 = vadd.f32 %v2681, %v2697
  %v2704 = vadd.f32 %v2682, %v2698
  %v2705 = vadd.f32 %v2683, %v2699
  %v2706 = vadd.f32 %v2684, %v2700
  %v2707 = vadd.f32 %v2685, %v2701
  %v2708 = vadd.f32 %v2686, %v2702
  %v2709 = vperm.slane %v2387, 6
  %v2710 = vperm.slane %v2388, 6
  %v2711 = vperm.slane %v2389, 6
  %v2712 = vperm.slane %v2390, 6
  %v2713 = vperm.slane %v2391, 6
  %v2714 = vperm.slane %v2392, 6
  %2715 = vset.pattern.permute.xlu0 14
  %2716 = vperm.xlu0 %2715, %v2405
  %v2717 = vpop.permute.xlu0 %2716
  %v2719 = vmul.f32 %v2709, %v2717
  %v2720 = vmul.f32 %v2710, %v2717
  %v2721 = vmul.f32 %v2711, %v2717
  %v2722 = vmul.f32 %v2712, %v2717
  %v2723 = vmul.f32 %v2713, %v2717
  %v2724 = vmul.f32 %v2714, %v2717
  %v2725 = vadd.f32 %v2703, %v2719
  %v2726 = vadd.f32 %v2704, %v2720
  %v2727 = vadd.f32 %v2705, %v2721
  %v2728 = vadd.f32 %v2706, %v2722
  %v2729 = vadd.f32 %v2707, %v2723
  %v2730 = vadd.f32 %v2708, %v2724
  %v2731 = vperm.slane %v2387, 7
  %v2732 = vperm.slane %v2388, 7
  %v2733 = vperm.slane %v2389, 7
  %v2734 = vperm.slane %v2390, 7
  %v2735 = vperm.slane %v2391, 7
  %v2736 = vperm.slane %v2392, 7
  %2737 = vset.pattern.permute.xlu0 15
  %2738 = vperm.xlu0 %2737, %v2405
  %v2739 = vpop.permute.xlu0 %2738
  %v2741 = vmul.f32 %v2731, %v2739
  %v2742 = vmul.f32 %v2732, %v2739
  %v2743 = vmul.f32 %v2733, %v2739
  %v2744 = vmul.f32 %v2734, %v2739
  %v2745 = vmul.f32 %v2735, %v2739
  %v2746 = vmul.f32 %v2736, %v2739
  %v2747 = vadd.f32 %v2725, %v2741
  %v2748 = vadd.f32 %v2726, %v2742
  %v2749 = vadd.f32 %v2727, %v2743
  %v2750 = vadd.f32 %v2728, %v2744
  %v2751 = vadd.f32 %v2729, %v2745
  %v2752 = vadd.f32 %v2730, %v2746
  %v2753 = vperm.slane %v2393, 0
  %v2754 = vperm.slane %v2394, 0
  %v2755 = vperm.slane %v2395, 0
  %v2756 = vperm.slane %v2396, 0
  %v2757 = vperm.slane %v2397, 0
  %v2758 = vperm.slane %v2398, 0
  %2759 = vset.pattern.permute.xlu0 16
  %2760 = vperm.xlu0 %2759, %v2405
  %v2761 = vpop.permute.xlu0 %2760
  %v2763 = vmul.f32 %v2753, %v2761
  %v2764 = vmul.f32 %v2754, %v2761
  %v2765 = vmul.f32 %v2755, %v2761
  %v2766 = vmul.f32 %v2756, %v2761
  %v2767 = vmul.f32 %v2757, %v2761
  %v2768 = vmul.f32 %v2758, %v2761
  %v2769 = vadd.f32 %v2747, %v2763
  %v2770 = vadd.f32 %v2748, %v2764
  %v2771 = vadd.f32 %v2749, %v2765
  %v2772 = vadd.f32 %v2750, %v2766
  %v2773 = vadd.f32 %v2751, %v2767
  %v2774 = vadd.f32 %v2752, %v2768
  %v2775 = vperm.slane %v2393, 1
  %v2776 = vperm.slane %v2394, 1
  %v2777 = vperm.slane %v2395, 1
  %v2778 = vperm.slane %v2396, 1
  %v2779 = vperm.slane %v2397, 1
  %v2780 = vperm.slane %v2398, 1
  %2781 = vset.pattern.permute.xlu0 17
  %2782 = vperm.xlu0 %2781, %v2405
  %v2783 = vpop.permute.xlu0 %2782
  %v2785 = vmul.f32 %v2775, %v2783
  %v2786 = vmul.f32 %v2776, %v2783
  %v2787 = vmul.f32 %v2777, %v2783
  %v2788 = vmul.f32 %v2778, %v2783
  %v2789 = vmul.f32 %v2779, %v2783
  %v2790 = vmul.f32 %v2780, %v2783
  %v2791 = vadd.f32 %v2769, %v2785
  %v2792 = vadd.f32 %v2770, %v2786
  %v2793 = vadd.f32 %v2771, %v2787
  %v2794 = vadd.f32 %v2772, %v2788
  %v2795 = vadd.f32 %v2773, %v2789
  %v2796 = vadd.f32 %v2774, %v2790
  %v2797 = vperm.slane %v2393, 2
  %v2798 = vperm.slane %v2394, 2
  %v2799 = vperm.slane %v2395, 2
  %v2800 = vperm.slane %v2396, 2
  %v2801 = vperm.slane %v2397, 2
  %v2802 = vperm.slane %v2398, 2
  %2803 = vset.pattern.permute.xlu0 18
  %2804 = vperm.xlu0 %2803, %v2405
  %v2805 = vpop.permute.xlu0 %2804
  %v2807 = vmul.f32 %v2797, %v2805
  %v2808 = vmul.f32 %v2798, %v2805
  %v2809 = vmul.f32 %v2799, %v2805
  %v2810 = vmul.f32 %v2800, %v2805
  %v2811 = vmul.f32 %v2801, %v2805
  %v2812 = vmul.f32 %v2802, %v2805
  %v2813 = vadd.f32 %v2791, %v2807
  %v2814 = vadd.f32 %v2792, %v2808
  %v2815 = vadd.f32 %v2793, %v2809
  %v2816 = vadd.f32 %v2794, %v2810
  %v2817 = vadd.f32 %v2795, %v2811
  %v2818 = vadd.f32 %v2796, %v2812
  %v2819 = vperm.slane %v2393, 3
  %v2820 = vperm.slane %v2394, 3
  %v2821 = vperm.slane %v2395, 3
  %v2822 = vperm.slane %v2396, 3
  %v2823 = vperm.slane %v2397, 3
  %v2824 = vperm.slane %v2398, 3
  %2825 = vset.pattern.permute.xlu0 19
  %2826 = vperm.xlu0 %2825, %v2405
  %v2827 = vpop.permute.xlu0 %2826
  %v2829 = vmul.f32 %v2819, %v2827
  %v2830 = vmul.f32 %v2820, %v2827
  %v2831 = vmul.f32 %v2821, %v2827
  %v2832 = vmul.f32 %v2822, %v2827
  %v2833 = vmul.f32 %v2823, %v2827
  %v2834 = vmul.f32 %v2824, %v2827
  %v2835 = vadd.f32 %v2813, %v2829
  %v2836 = vadd.f32 %v2814, %v2830
  %v2837 = vadd.f32 %v2815, %v2831
  %v2838 = vadd.f32 %v2816, %v2832
  %v2839 = vadd.f32 %v2817, %v2833
  %v2840 = vadd.f32 %v2818, %v2834
  %v2841 = vperm.slane %v2393, 4
  %v2842 = vperm.slane %v2394, 4
  %v2843 = vperm.slane %v2395, 4
  %v2844 = vperm.slane %v2396, 4
  %v2845 = vperm.slane %v2397, 4
  %v2846 = vperm.slane %v2398, 4
  %2847 = vset.pattern.permute.xlu0 20
  %2848 = vperm.xlu0 %2847, %v2405
  %v2849 = vpop.permute.xlu0 %2848
  %v2851 = vmul.f32 %v2841, %v2849
  %v2852 = vmul.f32 %v2842, %v2849
  %v2853 = vmul.f32 %v2843, %v2849
  %v2854 = vmul.f32 %v2844, %v2849
  %v2855 = vmul.f32 %v2845, %v2849
  %v2856 = vmul.f32 %v2846, %v2849
  %v2857 = vadd.f32 %v2835, %v2851
  %v2858 = vadd.f32 %v2836, %v2852
  %v2859 = vadd.f32 %v2837, %v2853
  %v2860 = vadd.f32 %v2838, %v2854
  %v2861 = vadd.f32 %v2839, %v2855
  %v2862 = vadd.f32 %v2840, %v2856
  %v2863 = vperm.slane %v2393, 5
  %v2864 = vperm.slane %v2394, 5
  %v2865 = vperm.slane %v2395, 5
  %v2866 = vperm.slane %v2396, 5
  %v2867 = vperm.slane %v2397, 5
  %v2868 = vperm.slane %v2398, 5
  %2869 = vset.pattern.permute.xlu0 21
  %2870 = vperm.xlu0 %2869, %v2405
  %v2871 = vpop.permute.xlu0 %2870
  %v2873 = vmul.f32 %v2863, %v2871
  %v2874 = vmul.f32 %v2864, %v2871
  %v2875 = vmul.f32 %v2865, %v2871
  %v2876 = vmul.f32 %v2866, %v2871
  %v2877 = vmul.f32 %v2867, %v2871
  %v2878 = vmul.f32 %v2868, %v2871
  %v2879 = vadd.f32 %v2857, %v2873
  %v2880 = vadd.f32 %v2858, %v2874
  %v2881 = vadd.f32 %v2859, %v2875
  %v2882 = vadd.f32 %v2860, %v2876
  %v2883 = vadd.f32 %v2861, %v2877
  %v2884 = vadd.f32 %v2862, %v2878
  %v2885 = vperm.slane %v2393, 6
  %v2886 = vperm.slane %v2394, 6
  %v2887 = vperm.slane %v2395, 6
  %v2888 = vperm.slane %v2396, 6
  %v2889 = vperm.slane %v2397, 6
  %v2890 = vperm.slane %v2398, 6
  %2891 = vset.pattern.permute.xlu0 22
  %2892 = vperm.xlu0 %2891, %v2405
  %v2893 = vpop.permute.xlu0 %2892
  %v2895 = vmul.f32 %v2885, %v2893
  %v2896 = vmul.f32 %v2886, %v2893
  %v2897 = vmul.f32 %v2887, %v2893
  %v2898 = vmul.f32 %v2888, %v2893
  %v2899 = vmul.f32 %v2889, %v2893
  %v2900 = vmul.f32 %v2890, %v2893
  %v2901 = vadd.f32 %v2879, %v2895
  %v2902 = vadd.f32 %v2880, %v2896
  %v2903 = vadd.f32 %v2881, %v2897
  %v2904 = vadd.f32 %v2882, %v2898
  %v2905 = vadd.f32 %v2883, %v2899
  %v2906 = vadd.f32 %v2884, %v2900
  %v2907 = vperm.slane %v2393, 7
  %v2908 = vperm.slane %v2394, 7
  %v2909 = vperm.slane %v2395, 7
  %v2910 = vperm.slane %v2396, 7
  %v2911 = vperm.slane %v2397, 7
  %v2912 = vperm.slane %v2398, 7
  %2913 = vset.pattern.permute.xlu0 23
  %2914 = vperm.xlu0 %2913, %v2405
  %v2915 = vpop.permute.xlu0 %2914
  %v2917 = vmul.f32 %v2907, %v2915
  %v2918 = vmul.f32 %v2908, %v2915
  %v2919 = vmul.f32 %v2909, %v2915
  %v2920 = vmul.f32 %v2910, %v2915
  %v2921 = vmul.f32 %v2911, %v2915
  %v2922 = vmul.f32 %v2912, %v2915
  %v2923 = vadd.f32 %v2901, %v2917
  %v2924 = vadd.f32 %v2902, %v2918
  %v2925 = vadd.f32 %v2903, %v2919
  %v2926 = vadd.f32 %v2904, %v2920
  %v2927 = vadd.f32 %v2905, %v2921
  %v2928 = vadd.f32 %v2906, %v2922
  %v2929 = vperm.slane %v2399, 0
  %v2930 = vperm.slane %v2400, 0
  %v2931 = vperm.slane %v2401, 0
  %v2932 = vperm.slane %v2402, 0
  %v2933 = vperm.slane %v2403, 0
  %v2934 = vperm.slane %v2404, 0
  %2935 = vset.pattern.permute.xlu0 24
  %2936 = vperm.xlu0 %2935, %v2405
  %v2937 = vpop.permute.xlu0 %2936
  %v2939 = vmul.f32 %v2929, %v2937
  %v2940 = vmul.f32 %v2930, %v2937
  %v2941 = vmul.f32 %v2931, %v2937
  %v2942 = vmul.f32 %v2932, %v2937
  %v2943 = vmul.f32 %v2933, %v2937
  %v2944 = vmul.f32 %v2934, %v2937
  %v2945 = vadd.f32 %v2923, %v2939
  %v2946 = vadd.f32 %v2924, %v2940
  %v2947 = vadd.f32 %v2925, %v2941
  %v2948 = vadd.f32 %v2926, %v2942
  %v2949 = vadd.f32 %v2927, %v2943
  %v2950 = vadd.f32 %v2928, %v2944
  %v2951 = vperm.slane %v2399, 1
  %v2952 = vperm.slane %v2400, 1
  %v2953 = vperm.slane %v2401, 1
  %v2954 = vperm.slane %v2402, 1
  %v2955 = vperm.slane %v2403, 1
  %v2956 = vperm.slane %v2404, 1
  %2957 = vset.pattern.permute.xlu0 25
  %2958 = vperm.xlu0 %2957, %v2405
  %v2959 = vpop.permute.xlu0 %2958
  %v2961 = vmul.f32 %v2951, %v2959
  %v2962 = vmul.f32 %v2952, %v2959
  %v2963 = vmul.f32 %v2953, %v2959
  %v2964 = vmul.f32 %v2954, %v2959
  %v2965 = vmul.f32 %v2955, %v2959
  %v2966 = vmul.f32 %v2956, %v2959
  %v2967 = vadd.f32 %v2945, %v2961
  %v2968 = vadd.f32 %v2946, %v2962
  %v2969 = vadd.f32 %v2947, %v2963
  %v2970 = vadd.f32 %v2948, %v2964
  %v2971 = vadd.f32 %v2949, %v2965
  %v2972 = vadd.f32 %v2950, %v2966
  %v2973 = vperm.slane %v2399, 2
  %v2974 = vperm.slane %v2400, 2
  %v2975 = vperm.slane %v2401, 2
  %v2976 = vperm.slane %v2402, 2
  %v2977 = vperm.slane %v2403, 2
  %v2978 = vperm.slane %v2404, 2
  %2979 = vset.pattern.permute.xlu0 26
  %2980 = vperm.xlu0 %2979, %v2405
  %v2981 = vpop.permute.xlu0 %2980
  %v2983 = vmul.f32 %v2973, %v2981
  %v2984 = vmul.f32 %v2974, %v2981
  %v2985 = vmul.f32 %v2975, %v2981
  %v2986 = vmul.f32 %v2976, %v2981
  %v2987 = vmul.f32 %v2977, %v2981
  %v2988 = vmul.f32 %v2978, %v2981
  %v2989 = vadd.f32 %v2967, %v2983
  %v2990 = vadd.f32 %v2968, %v2984
  %v2991 = vadd.f32 %v2969, %v2985
  %v2992 = vadd.f32 %v2970, %v2986
  %v2993 = vadd.f32 %v2971, %v2987
  %v2994 = vadd.f32 %v2972, %v2988
  %v2995 = vperm.slane %v2399, 3
  %v2996 = vperm.slane %v2400, 3
  %v2997 = vperm.slane %v2401, 3
  %v2998 = vperm.slane %v2402, 3
  %v2999 = vperm.slane %v2403, 3
  %v3000 = vperm.slane %v2404, 3
  %3001 = vset.pattern.permute.xlu0 27
  %3002 = vperm.xlu0 %3001, %v2405
  %v3003 = vpop.permute.xlu0 %3002
  %v3005 = vmul.f32 %v2995, %v3003
  %v3006 = vmul.f32 %v2996, %v3003
  %v3007 = vmul.f32 %v2997, %v3003
  %v3008 = vmul.f32 %v2998, %v3003
  %v3009 = vmul.f32 %v2999, %v3003
  %v3010 = vmul.f32 %v3000, %v3003
  %v3011 = vadd.f32 %v2989, %v3005
  %v3012 = vadd.f32 %v2990, %v3006
  %v3013 = vadd.f32 %v2991, %v3007
  %v3014 = vadd.f32 %v2992, %v3008
  %v3015 = vadd.f32 %v2993, %v3009
  %v3016 = vadd.f32 %v2994, %v3010
  %v3017 = vperm.slane %v2399, 4
  %v3018 = vperm.slane %v2400, 4
  %v3019 = vperm.slane %v2401, 4
  %v3020 = vperm.slane %v2402, 4
  %v3021 = vperm.slane %v2403, 4
  %v3022 = vperm.slane %v2404, 4
  %3023 = vset.pattern.permute.xlu0 28
  %3024 = vperm.xlu0 %3023, %v2405
  %v3025 = vpop.permute.xlu0 %3024
  %v3027 = vmul.f32 %v3017, %v3025
  %v3028 = vmul.f32 %v3018, %v3025
  %v3029 = vmul.f32 %v3019, %v3025
  %v3030 = vmul.f32 %v3020, %v3025
  %v3031 = vmul.f32 %v3021, %v3025
  %v3032 = vmul.f32 %v3022, %v3025
  %v3033 = vadd.f32 %v3011, %v3027
  %v3034 = vadd.f32 %v3012, %v3028
  %v3035 = vadd.f32 %v3013, %v3029
  %v3036 = vadd.f32 %v3014, %v3030
  %v3037 = vadd.f32 %v3015, %v3031
  %v3038 = vadd.f32 %v3016, %v3032
  %v3039 = vperm.slane %v2399, 5
  %v3040 = vperm.slane %v2400, 5
  %v3041 = vperm.slane %v2401, 5
  %v3042 = vperm.slane %v2402, 5
  %v3043 = vperm.slane %v2403, 5
  %v3044 = vperm.slane %v2404, 5
  %3045 = vset.pattern.permute.xlu0 29
  %3046 = vperm.xlu0 %3045, %v2405
  %v3047 = vpop.permute.xlu0 %3046
  %v3049 = vmul.f32 %v3039, %v3047
  %v3050 = vmul.f32 %v3040, %v3047
  %v3051 = vmul.f32 %v3041, %v3047
  %v3052 = vmul.f32 %v3042, %v3047
  %v3053 = vmul.f32 %v3043, %v3047
  %v3054 = vmul.f32 %v3044, %v3047
  %v3055 = vadd.f32 %v3033, %v3049
  %v3056 = vadd.f32 %v3034, %v3050
  %v3057 = vadd.f32 %v3035, %v3051
  %v3058 = vadd.f32 %v3036, %v3052
  %v3059 = vadd.f32 %v3037, %v3053
  %v3060 = vadd.f32 %v3038, %v3054
  %v3061 = vperm.slane %v2399, 6
  %v3062 = vperm.slane %v2400, 6
  %v3063 = vperm.slane %v2401, 6
  %v3064 = vperm.slane %v2402, 6
  %v3065 = vperm.slane %v2403, 6
  %v3066 = vperm.slane %v2404, 6
  %3067 = vset.pattern.permute.xlu0 30
  %3068 = vperm.xlu0 %3067, %v2405
  %v3069 = vpop.permute.xlu0 %3068
  %v3071 = vmul.f32 %v3061, %v3069
  %v3072 = vmul.f32 %v3062, %v3069
  %v3073 = vmul.f32 %v3063, %v3069
  %v3074 = vmul.f32 %v3064, %v3069
  %v3075 = vmul.f32 %v3065, %v3069
  %v3076 = vmul.f32 %v3066, %v3069
  %v3077 = vadd.f32 %v3055, %v3071
  %v3078 = vadd.f32 %v3056, %v3072
  %v3079 = vadd.f32 %v3057, %v3073
  %v3080 = vadd.f32 %v3058, %v3074
  %v3081 = vadd.f32 %v3059, %v3075
  %v3082 = vadd.f32 %v3060, %v3076
  %v3083 = vperm.slane %v2399, 7
  %v3084 = vperm.slane %v2400, 7
  %v3085 = vperm.slane %v2401, 7
  %v3086 = vperm.slane %v2402, 7
  %v3087 = vperm.slane %v2403, 7
  %v3088 = vperm.slane %v2404, 7
  %3089 = vset.pattern.permute.xlu0 31
  %3090 = vperm.xlu0 %3089, %v2405
  %v3091 = vpop.permute.xlu0 %3090
  %v3093 = vmul.f32 %v3083, %v3091
  %v3094 = vmul.f32 %v3084, %v3091
  %v3095 = vmul.f32 %v3085, %v3091
  %v3096 = vmul.f32 %v3086, %v3091
  %v3097 = vmul.f32 %v3087, %v3091
  %v3098 = vmul.f32 %v3088, %v3091
  %v3099 = vadd.f32 %v3077, %v3093
  %v3100 = vadd.f32 %v3078, %v3094
  %v3101 = vadd.f32 %v3079, %v3095
  %v3102 = vadd.f32 %v3080, %v3096
  %v3103 = vadd.f32 %v3081, %v3097
  %v3104 = vadd.f32 %v3082, %v3098
  %v3105 = vld [vmem:[%s10] sm:$0xff]
  %v3106 = vld [vmem:[%s11] sm:$0xff]
  %v3107 = vmul.f32 %v3099, %v2081
  %v3108 = vmul.f32 %v3100, %v2082
  %v3109 = vmul.f32 %v3101, %v2083
  %v3110 = vmul.f32 %v3102, %v2084
  %v3111 = vmul.f32 %v3103, %v2085
  %v3112 = vmul.f32 %v3104, %v2086
  %v3113 = vadd.f32 %v3107, %v3108
  %v3114 = vadd.f32 %v3113, %v3109
  %v3115 = vadd.f32 %v3114, %v3110
  %v3116 = vadd.f32 %v3115, %v3111
  %v3117 = vadd.f32 %v3116, %v3112
  %3118 = vadd.xlane.f32.xlu0 %v3117
  %v3119 = vpop.xlane.xlu0 %3118
  %v3120 = vmul.f32 %v3107, %v3099
  %v3121 = vmul.f32 %v3108, %v3100
  %v3122 = vmul.f32 %v3109, %v3101
  %v3123 = vmul.f32 %v3110, %v3102
  %v3124 = vmul.f32 %v3111, %v3103
  %v3125 = vmul.f32 %v3112, %v3104
  %v3126 = vadd.f32 %v3120, %v3121
  %v3127 = vadd.f32 %v3126, %v3122
  %v3128 = vadd.f32 %v3127, %v3123
  %v3129 = vadd.f32 %v3128, %v3124
  %v3130 = vadd.f32 %v3129, %v3125
  %3131 = vadd.xlane.f32.xlu0 %v3130
  %v3132 = vpop.xlane.xlu0 %3131
  %v3133 = vmul.f32 %v3119, 0.001953125
  %v3134 = vmul.f32 %v3132, 0.001953125
  %v3135 = vmul.f32 %v3133, %v3133
  %v3136 = vsub.f32 %v3134, %v3135
  %v3137 = vadd.f32 %v3136, 1e-05
  %v3138 = vrsqrt.pop %v3137
  %v3139 = vmul.f32 %v3138, %v3137
  %v3140 = vmul.f32 %v3139, %v3138
  %v3141 = vmul.f32 0.5, %v3140
  %v3142 = vsub.f32 1.5, %v3141
  %v3143 = vmul.f32 %v3138, %v3142
  %vm3144 = vweird.f32 %v3137
  %vm3145 = vweird.f32 %v3138
  %vm3146 = vmor %vm3144, %vm3145
  %v3147 = vsel %vm3146, %v3138, %v3143
  %v3148 = vmul.f32 %v3105, %v3147
  %v3149 = vmul.f32 %v3133, %v3148
  %v3150 = vsub.f32 %v3106, %v3149
  %3152 = vset.pattern.permute.xlu0 0
  %3153 = vperm.xlu0 %3152, %v3148
  %v3154 = vpop.permute.xlu0 %3153
  %v3156 = vmul.f32 %v3099, %v3154
  %v3157 = vmul.f32 %v3100, %v3154
  %v3158 = vmul.f32 %v3101, %v3154
  %v3159 = vmul.f32 %v3102, %v3154
  %v3160 = vmul.f32 %v3103, %v3154
  %v3161 = vmul.f32 %v3104, %v3154
  %3163 = vset.pattern.permute.xlu0 0
  %3164 = vperm.xlu0 %3163, %v3150
  %v3165 = vpop.permute.xlu0 %3164
  %v3167 = vadd.f32 %v3156, %v3165
  %v3168 = vadd.f32 %v3157, %v3165
  %v3169 = vadd.f32 %v3158, %v3165
  %v3170 = vadd.f32 %v3159, %v3165
  %v3171 = vadd.f32 %v3160, %v3165
  %v3172 = vadd.f32 %v3161, %v3165
  %v3173 = vadd.f32 %v3167, %v41
  %v3174 = vadd.f32 %v3168, %v42
  %v3175 = vadd.f32 %v3169, %v43
  %v3176 = vadd.f32 %v3170, %v44
  %v3177 = vadd.f32 %v3171, %v45
  %v3178 = vadd.f32 %v3172, %v46
  %3179 = vst [vmem:[%s12] sm:$0xff] %v3173
  %3180 = vst [vmem:[%s12 + $0x8] sm:$0xff] %v3174
  %3181 = vst [vmem:[%s12 + $0x10] sm:$0xff] %v3175
  %3182 = vst [vmem:[%s12 + $0x18] sm:$0xff] %v3176
  %3183 = vst [vmem:[%s12 + $0x20] sm:$0xff] %v3177
  %3184 = vst [vmem:[%s12 + $0x28] sm:$0xff] %v3178
  // Predicated region
  $region50: #{adaptive_inverted_residual.1} parent=0 // pred_check
    _
  $region51: #{adaptive_inverted_residual.1} parent=0 // pred_check_branch
    %3186 = sbr.rel (0) target = $region53
  $region52: #{adaptive_inverted_residual.1} parent=0 // pred_region
    _
  $region53: #{adaptive_inverted_residual.1} parent=0 // pred_fallthru
    _
  // Predicated region
  $region54: #{adaptive_inverted_residual.1} parent=0 // pred_check
    _
  $region55: #{adaptive_inverted_residual.1} parent=0 // pred_check_branch
    %3188 = sbr.rel (0) target = $region57
  $region56: #{adaptive_inverted_residual.1} parent=0 // pred_region
    _
  $region57: #{adaptive_inverted_residual.1} parent=0 // pred_fallthru
    _

</llo_original>
